<compile_context>
chip_gen: v5e
topology: v5e:2x2
jax: 0.10.0
libtpu: 0.0.40
codegen_flags: <defaults>
</compile_context>

<pallas_src>
import functools

import jax
import jax.numpy as jnp
from jax import lax
from jax.experimental import pallas as pl
from jax.experimental.pallas import tpu as pltpu

EPS_GN = 1e-5            # torch_geometric GraphNorm eps
NEG_SLOPE = 0.2          # SuperGATConv default leaky-relu slope
LANE = 128
MET_ROW_STRIP = 256      # dst-row strip size for the SuperGAT softmax
VMEM_LIMIT = 64 * 1024 * 1024   # <= v7x physical VMEM; above v5e/v6e scoped default


def _rup(n, m=LANE):
    return ((n + m - 1) // m) * m


def _pick_tn(dp):
    for t in (512, 256, 128):
        if dp % t == 0:
            return t
    return dp


# ----------------------------------------------------------------------------
# in-kernel helpers
# ----------------------------------------------------------------------------
_SQRT_2_OVER_PI = 0.7978845608028654


def _gelu(x):
    # tanh approximation -> EUP, keeps the VALU slot free
    return 0.5 * x * (1.0 + jnp.tanh(_SQRT_2_OVER_PI * (x + 0.044715 * x * x * x)))


def _mm(a, b):
    # bf16 operands, f32 accumulation on the MXU
    return jnp.dot(a.astype(jnp.bfloat16), b.astype(jnp.bfloat16),
                   preferred_element_type=jnp.float32)


def _gn_gelu(y, aux):
    # GraphNorm over all rows (PyG MLP norm with batch=None) + GELU.
    # aux rows: [bias, gn_weight, gn_bias, gn_mean_scale]
    gw, gb, gm = aux[1:2, :], aux[2:3, :], aux[3:4, :]
    mean = jnp.mean(y, axis=0, keepdims=True)
    c = y - mean * gm
    var = jnp.mean(c * c, axis=0, keepdims=True)
    return _gelu(gw * c * lax.rsqrt(var + EPS_GN) + gb)


def _dense(x, w, aux):
    return _mm(x, w) + aux[0:1, :]


def _dense_gn_gelu(x, w, aux):
    return _gn_gelu(_dense(x, w, aux), aux)


# ----------------------------------------------------------------------------
# whole-array-in-VMEM pallas_call helper (small operands only)
# ----------------------------------------------------------------------------
def _vmem_call(kernel, out_shape, *args):
    vmem = pl.BlockSpec(memory_space=pltpu.MemorySpace.VMEM)
    multi = isinstance(out_shape, (tuple, list))
    return pl.pallas_call(
        kernel,
        out_shape=tuple(out_shape) if multi else out_shape,
        in_specs=[vmem] * len(args),
        out_specs=tuple(vmem for _ in out_shape) if multi else vmem,
        compiler_params=pltpu.CompilerParams(vmem_limit_bytes=VMEM_LIMIT),
    )(*args)


# ----------------------------------------------------------------------------
# kernel 1: ST path (GraphNorm -> projections -> GIN x2 -> pooled embedding)
# ----------------------------------------------------------------------------
def _st_kernel(*refs, ep, rp, gin_eps):
    (x_ref, p_ref, pt_ref, inv_ref, adj_ref, gnin_ref, wproj_ref, bproj_ref) = refs[:8]
    gin0 = refs[8:16]
    gin1 = refs[16:24]
    stc_ref, xr_ref = refs[24], refs[25]

    x = x_ref[...]            # (N, GP) f32
    Pb = p_ref[...]           # (N, G) bf16 one-hot (exact 0/1)
    Ptb = pt_ref[...]         # (G, N) bf16
    inv = inv_ref[...]        # (G, 1) = 1 / max(nodes-per-graph, 1)
    gn = gnin_ref[...]        # (3, GP): weight, bias, mean_scale

    def scat(onehot_b, v):    # one-hot matmul == scatter/gather-add, bf16 MXU
        return jnp.dot(onehot_b, v.astype(jnp.bfloat16),
                       preferred_element_type=jnp.float32)

    # input GraphNorm with per-graph statistics
    gmean = scat(Ptb, x) * inv
    c = x - scat(Pb, gmean) * gn[2:3, :]
    gvar = scat(Ptb, c * c) * inv
    h = gn[0:1, :] * c * lax.rsqrt(scat(Pb, gvar) + EPS_GN) + gn[1:2, :]

    # fused projection: [identity | gene_rxn_map] then GELU, split at lane ep
    proj = _gelu(_mm(h, wproj_ref[...]) + bproj_ref[...])
    x_identity = proj[:, :ep]
    x_rxn = proj[:, ep:ep + rp]
    xr_ref[...] = x_rxn

    adj = adj_ref[...]        # bf16 edge counts, adj[dst, src]

    def gin_block(xin, layers):
        agg = jnp.dot(adj, xin.astype(jnp.bfloat16),
                      preferred_element_type=jnp.float32) + (1.0 + gin_eps) * xin
        hh = agg
        for i in range(len(layers) - 1):
            w_r, a_r = layers[i]
            hh = _dense_gn_gelu(hh, w_r[...], a_r[...])
        w_r, a_r = layers[-1]
        return _gelu(_dense(hh, w_r[...], a_r[...]))       # plain last + outer GELU

    g0 = [(gin0[2 * i], gin0[2 * i + 1]) for i in range(4)]
    g1 = [(gin1[2 * i], gin1[2 * i + 1]) for i in range(4)]

    st_embed = gin_block(x_rxn, g0)
    t0 = st_embed + x_identity
    pool0 = _gelu(scat(Ptb, t0))
    st_embed = gin_block(t0, g1)
    pool1 = _gelu(scat(Ptb, st_embed))
    stc_ref[...] = pool0 + pool1


# ----------------------------------------------------------------------------
# kernel 2: metabolic path, ONE GRAPH PER GRID STEP ("parallel" axis)
#   SuperGAT x2 ('MX' attention) + learnable SoftmaxAggregation, lane-dense out.
# ----------------------------------------------------------------------------
def _met_kernel(x_ref, adj_ref, w0_ref, al0_ref, ar0_ref, b0_ref,
                w1_ref, al1_ref, ar1_ref, b1_ref, t_ref, out_ref, *,
                heads, mp, rp, n_rxn_real, n_feat_real, neg_slope, row_strip):
    x0 = x_ref[...]                               # (RP, MP) shared feature block
    adj = adj_ref[...].astype(jnp.float32)        # (RP, RP) this graph's edge counts
    mask = adj > 0.0
    neg_inf = jnp.float32(-jnp.inf)

    def sgat(xin, w_r, al_r, ar_r, b_r):
        xh_all = _mm(xin, w_r[...])               # (RP, H*MP): all heads, one matmul
        xh_all_b = xh_all.astype(jnp.bfloat16)
        # packed per-node logit halves for every head (2 matmuls total)
        al_all = lax.dot_general(al_r[...], xh_all_b, (((1,), (1,)), ((), ())),
                                 preferred_element_type=jnp.float32)   # (H, RP): att_l.x_j
        ar_all = lax.dot_general(xh_all_b, ar_r[...], (((1,), (1,)), ((), ())),
                                 preferred_element_type=jnp.float32)   # (RP, H): att_r.x_i
        acc = jnp.zeros((rp, mp), jnp.float32)
        for h in range(heads):
            xh_b = xh_all_b[:, h * mp:(h + 1) * mp]
            al = al_all[h:h + 1, :]                                    # (1, RP) over src j
            rows = []
            for r0 in range(0, rp, row_strip):                         # strip-mine dst rows
                rs = min(row_strip, rp - r0)
                s = lax.dot_general(xh_b[r0:r0 + rs, :], xh_b, (((1,), (1,)), ((), ())),
                                    preferred_element_type=jnp.float32)  # x_i.x_j
                e = (al + ar_all[r0:r0 + rs, h:h + 1]) * jax.nn.sigmoid(s)
                e = jnp.maximum(e, neg_slope * e)                        # fused leaky relu
                e = jnp.where(mask[r0:r0 + rs, :], e, neg_inf)
                m = jnp.max(e, axis=1, keepdims=True)
                m = jnp.where(m == neg_inf, 0.0, m)
                p = adj[r0:r0 + rs, :] * jnp.exp(e - m)   # multiplicity-weighted softmax
                denom = jnp.sum(p, axis=1, keepdims=True)
                attn = p * pl.reciprocal(jnp.where(denom > 0.0, denom, 1.0), approx=True)
                rows.append(jnp.dot(attn.astype(jnp.bfloat16), xh_b,
                                    preferred_element_type=jnp.float32))
            acc = acc + (rows[0] if len(rows) == 1 else jnp.concatenate(rows, axis=0))
        return _gelu(acc * (1.0 / heads) + b_r[...])      # concat=False -> head mean

    lane_ids = lax.broadcasted_iota(jnp.int32, (1, mp), 1)
    fmask = lane_ids < n_feat_real                        # mask padded feature lanes
    ones_row = jnp.ones((1, mp), jnp.float32)

    def soft_agg(xin, t):
        # learnable SoftmaxAggregation over dim=-1, vectorized over all rxn rows
        a = jnp.where(fmask, xin * t, neg_inf)
        m = jnp.max(a, axis=-1, keepdims=True)
        w = jnp.where(fmask, jnp.exp(a - m), 0.0)
        z = w * pl.reciprocal(jnp.sum(w, axis=-1, keepdims=True), approx=True) * xin
        return lax.dot_general(ones_row, z, (((1,), (1,)), ((), ())),
                               preferred_element_type=jnp.float32)      # (1, RP)

    t = t_ref[...]
    me0 = sgat(x0, w0_ref, al0_ref, ar0_ref, b0_ref)
    y0 = me0 + x0                        # + x_identity_met (== x_met, closure bug)
    me1 = sgat(y0, w1_ref, al1_ref, ar1_ref, b1_ref)
    out = _gelu(soft_agg(y0, t[:, 0:1])) + _gelu(soft_agg(me1, t[:, 1:2]))
    col_ids = lax.broadcasted_iota(jnp.int32, (1, rp), 1)
    out_ref[...] = jnp.where(col_ids < n_rxn_real, out, 0.0)   # zero padded rxn cols


# ----------------------------------------------------------------------------
# kernel 3a: head MLPs (met_compress + embed_rxn_map layers 1-3), small weights
# ----------------------------------------------------------------------------
def _head_mlp_kernel(stc_ref, metc_ref,
                     mc_w1, mc_a1, mc_w2, mc_a2, mc_w3, mc_a3,
                     er_w1a, er_w1b, er_a1, er_w2, er_a2, er_w3, er_a3, y_ref):
    m = metc_ref[...]
    m = _dense_gn_gelu(m, mc_w1[...], mc_a1[...])
    m = _dense_gn_gelu(m, mc_w2[...], mc_a2[...])
    m = _gelu(_dense(m, mc_w3[...], mc_a3[...]))       # met_compress + outer GELU

    # embed_rxn_map layer 1 on cat([st_concat, met]) realized as two matmuls
    a1 = er_a1[...]
    y = _mm(stc_ref[...], er_w1a[...]) + _mm(m, er_w1b[...]) + a1[0:1, :]
    y = _gn_gelu(y, a1)
    y = _dense_gn_gelu(y, er_w2[...], er_a2[...])
    y_ref[...] = _dense_gn_gelu(y, er_w3[...], er_a3[...])


# ----------------------------------------------------------------------------
# kernel 3b/3c: column-streamed dense (+ activation), weights double-buffered
# ----------------------------------------------------------------------------
def _colstream_dense_kernel(x_ref, w_ref, b_ref, o_ref, *, act):
    y = _mm(x_ref[...], w_ref[...]) + b_ref[...]
    if act == "gelu":
        y = _gelu(y)
    elif act == "relu":
        y = jnp.maximum(y, 0.0)
    o_ref[...] = y


def _colstream_dense(x, w, b, act):
    M, K = x.shape
    NP = w.shape[1]
    tn = _pick_tn(NP)
    return pl.pallas_call(
        functools.partial(_colstream_dense_kernel, act=act),
        out_shape=jax.ShapeDtypeStruct((M, NP), jnp.float32),
        grid_spec=pltpu.PrefetchScalarGridSpec(
            num_scalar_prefetch=0, grid=(NP // tn,),
            in_specs=[pl.BlockSpec((M, K), lambda j: (0, 0)),
                      pl.BlockSpec((K, tn), lambda j: (0, j)),
                      pl.BlockSpec((1, tn), lambda j: (0, j))],
            out_specs=pl.BlockSpec((M, tn), lambda j: (0, j))),
        compiler_params=pltpu.CompilerParams(
            dimension_semantics=("parallel",), vmem_limit_bytes=VMEM_LIMIT),
    )(x, w, b)


# ----------------------------------------------------------------------------
# parameter init (deterministic, synthetic, true sizes)
# ----------------------------------------------------------------------------
def init_linear(key, din, dout, scale=0.05):
    kw, kb = jax.random.split(key)
    return {"w": jax.random.normal(kw, (din, dout), jnp.float32) * scale,
            "b": jax.random.normal(kb, (1, dout), jnp.float32) * scale}


def init_mlp(key, channels):
    layers = []
    keys = jax.random.split(key, len(channels) - 1)
    for i in range(len(channels) - 1):
        lyr = init_linear(keys[i], channels[i], channels[i + 1])
        if i < len(channels) - 2:                      # plain_last: no norm at end
            d = channels[i + 1]
            lyr["gn_w"] = jnp.ones((1, d), jnp.float32)
            lyr["gn_b"] = jnp.zeros((1, d), jnp.float32)
            lyr["gn_m"] = jnp.ones((1, d), jnp.float32)
        layers.append(lyr)
    return layers


def init_sgat(key, fin, cout, heads, scale=0.05):
    k1, k2, k3 = jax.random.split(key, 3)
    return {"w": jax.random.normal(k1, (heads, fin, cout), jnp.float32) * scale,
            "att_l": jax.random.normal(k2, (heads, cout), jnp.float32) * scale,
            "att_r": jax.random.normal(k3, (heads, cout), jnp.float32) * scale,
            "bias": jnp.zeros((1, cout), jnp.float32)}


def init_params(key, n_gene, n_rxn, nf_embed, nf_met, heads):
    ks = jax.random.split(key, 10)
    return {
        "gn_in": {"w": jnp.ones((1, n_gene), jnp.float32),
                  "b": jnp.zeros((1, n_gene), jnp.float32),
                  "m": jnp.ones((1, n_gene), jnp.float32)},
        "identity": init_linear(ks[0], n_gene, nf_embed),
        "identity_met": init_linear(ks[1], n_gene, n_rxn),     # dead (closure bug)
        "gene_rxn_map": init_linear(ks[2], n_gene, n_rxn),
        "gin0": init_mlp(ks[3], [n_rxn, 1024, 512, 128, nf_embed]),
        "gin1": init_mlp(ks[4], [nf_embed, 256, 128, 256, nf_embed]),
        "sgat0": init_sgat(ks[5], nf_met, nf_met, heads),
        "sgat1": init_sgat(ks[6], nf_met, nf_met, heads),
        "aggr_t": [jnp.ones((1, 1), jnp.float32), jnp.ones((1, 1), jnp.float32)],
        "met_compress": init_mlp(ks[7], [n_rxn, 512, 256, nf_embed]),
        "embed_rxn_map": init_mlp(ks[8], [nf_embed * 2, 128, 512, 1024, n_rxn]),
        "rxn_gene_map": init_linear(ks[9], n_rxn, n_gene),
    }


# ----------------------------------------------------------------------------
# lane-dense padded / packed parameter preparation (weights -> bf16)
# ----------------------------------------------------------------------------
def _pad2(a, rows, cols, fill=0.0):
    out = jnp.full((rows, cols), fill, dtype=a.dtype)
    return out.at[:a.shape[0], :a.shape[1]].set(a)


def _pack_aux(lyr, dout_p):
    bias = _pad2(lyr["b"], 1, dout_p)
    if "gn_w" in lyr:
        gw = _pad2(lyr["gn_w"], 1, dout_p, 1.0)
        gb = _pad2(lyr["gn_b"], 1, dout_p, 0.0)
        gm = _pad2(lyr["gn_m"], 1, dout_p, 1.0)
    else:
        gw = jnp.ones((1, dout_p), jnp.float32)
        gb = jnp.zeros((1, dout_p), jnp.float32)
        gm = jnp.ones((1, dout_p), jnp.float32)
    return jnp.concatenate([bias, gw, gb, gm], axis=0)       # (4, dout_p)


def _prep_mlp(layers, din_p, dout_p):
    flat = []
    n = len(layers)
    for i, lyr in enumerate(layers):
        w = lyr["w"]
        rin = din_p if i == 0 else w.shape[0]
        cout = dout_p if i == n - 1 else w.shape[1]
        flat.append(_pad2(w, rin, cout).astype(jnp.bfloat16))
        flat.append(_pack_aux(lyr, cout))
    return flat


def _prep_sgat(p, mp, heads):
    _, fin, cout = p["w"].shape
    w_all = jnp.zeros((mp, heads * mp), jnp.float32)
    attl = jnp.zeros((heads, heads * mp), jnp.float32)
    attr = jnp.zeros((heads, heads * mp), jnp.float32)
    for h in range(heads):
        w_all = w_all.at[:fin, h * mp:h * mp + cout].set(p["w"][h])
        attl = attl.at[h, h * mp:h * mp + cout].set(p["att_l"][h])
        attr = attr.at[h, h * mp:h * mp + cout].set(p["att_r"][h])
    return [w_all.astype(jnp.bfloat16), attl.astype(jnp.bfloat16),
            attr.astype(jnp.bfloat16), _pad2(p["bias"], 1, mp)]


def prepare_params(params, n_gene, n_rxn, nf_embed, nf_met, heads):
    GP, RP, EP, MP = _rup(n_gene), _rup(n_rxn), _rup(nf_embed), _rup(nf_met)
    pp = {"dims": (GP, RP, EP, MP)}
    pp["gn_in"] = jnp.concatenate([_pad2(params["gn_in"]["w"], 1, GP, 1.0),
                                   _pad2(params["gn_in"]["b"], 1, GP, 0.0),
                                   _pad2(params["gn_in"]["m"], 1, GP, 1.0)], axis=0)
    wid = _pad2(params["identity"]["w"], GP, EP)
    wgr = _pad2(params["gene_rxn_map"]["w"], GP, RP)
    pp["w_proj"] = jnp.concatenate([wid, wgr], axis=1).astype(jnp.bfloat16)
    pp["b_proj"] = jnp.concatenate([_pad2(params["identity"]["b"], 1, EP),
                                    _pad2(params["gene_rxn_map"]["b"], 1, RP)], axis=1)
    pp["gin0"] = _prep_mlp(params["gin0"], RP, EP)
    pp["gin1"] = _prep_mlp(params["gin1"], EP, EP)
    pp["sgat0"] = _prep_sgat(params["sgat0"], MP, heads)
    pp["sgat1"] = _prep_sgat(params["sgat1"], MP, heads)
    pp["aggr_t"] = jnp.concatenate(params["aggr_t"], axis=1)              # (1, 2)
    pp["met_compress"] = _prep_mlp(params["met_compress"], RP, EP)
    # embed_rxn_map: split layer-1 weight into the ST half and the met half;
    # last layer (1024 -> n_rxn) is kept separate for the column-streamed kernel.
    er = params["embed_rxn_map"]
    w1 = er[0]["w"]
    w1a = _pad2(w1[:nf_embed], EP, w1.shape[1]).astype(jnp.bfloat16)
    w1b = _pad2(w1[nf_embed:], EP, w1.shape[1]).astype(jnp.bfloat16)
    mid = _prep_mlp(er[1:-1], er[1]["w"].shape[0], er[-2]["w"].shape[1])
    pp["embed_rxn_head"] = [w1a, w1b, _pack_aux(er[0], w1.shape[1])] + mid
    pp["er_hidden"] = er[-1]["w"].shape[0]                                 # 1024
    pp["er_w4"] = _pad2(er[-1]["w"], er[-1]["w"].shape[0], RP).astype(jnp.bfloat16)
    pp["er_b4"] = _pad2(er[-1]["b"], 1, RP)
    pp["rg_w"] = _pad2(params["rxn_gene_map"]["w"], RP, GP).astype(jnp.bfloat16)
    pp["rg_b"] = _pad2(params["rxn_gene_map"]["b"], 1, GP)
    return pp


# ----------------------------------------------------------------------------
# forward
# ----------------------------------------------------------------------------
def amiya_forward(pp, x, edge_index, batch, batch_size, met_edge_index, *,
                  n_gene, n_rxn, nfeature_met, nhead_SGAT, gin_eps=0.0):
    N = x.shape[0]
    G = batch_size
    H = nhead_SGAT
    GP, RP, EP, MP = pp["dims"]

    x_p = _pad2(x, N, GP)
    P = jax.nn.one_hot(batch, G, dtype=jnp.float32)
    cnt = jnp.sum(P, axis=0).reshape(G, 1)
    inv = 1.0 / jnp.maximum(cnt, 1.0)                         # empty-graph guard
    P_b = P.astype(jnp.bfloat16)                              # exact 0/1 in bf16
    Pt_b = P.T.astype(jnp.bfloat16)
    adj_st = (jnp.zeros((N, N), jnp.float32)
              .at[edge_index[1], edge_index[0]].add(1.0)).astype(jnp.bfloat16)

    # ---- kernel 1: ST path -------------------------------------------------
    st_args = [x_p, P_b, Pt_b, inv, adj_st, pp["gn_in"], pp["w_proj"], pp["b_proj"]] \
        + pp["gin0"] + pp["gin1"]
    st_concat, x_rxn = _vmem_call(
        functools.partial(_st_kernel, ep=EP, rp=RP, gin_eps=gin_eps),
        (jax.ShapeDtypeStruct((G, EP), jnp.float32),
         jax.ShapeDtypeStruct((N, RP), jnp.float32)),
        *st_args)

    # ---- met node features: closure bug => one shared (RP, MP) block --------
    if N >= nfeature_met:
        x_pc = x_rxn[:nfeature_met]
    else:
        x_pc = jnp.concatenate(
            [x_rxn, jnp.zeros((nfeature_met - N, RP), jnp.float32)], axis=0)
    x_met_blk = jnp.pad(x_pc.T, ((0, 0), (0, MP - nfeature_met)))      # (RP, MP)

    # Per-graph block-diagonal met adjacency (PyG batching: edges never cross graphs)
    src, dst = met_edge_index[0], met_edge_index[1]
    g_d = dst // n_rxn
    same = ((src // n_rxn) == g_d).astype(jnp.float32)     # drop any stray cross edge
    adj_met = (jnp.zeros((G, RP, RP), jnp.float32)
               .at[g_d, dst % n_rxn, src % n_rxn].add(same)).astype(jnp.bfloat16)

    # ---- kernel 2: metabolic path, grid over graphs ("parallel") ------------
    w_spec = pl.BlockSpec((MP, H * MP), lambda g: (0, 0))
    a_spec = pl.BlockSpec((H, H * MP), lambda g: (0, 0))
    b_spec = pl.BlockSpec((1, MP), lambda g: (0, 0))
    met_concat = pl.pallas_call(
        functools.partial(_met_kernel, heads=H, mp=MP, rp=RP,
                          n_rxn_real=n_rxn, n_feat_real=nfeature_met,
                          neg_slope=NEG_SLOPE, row_strip=MET_ROW_STRIP),
        out_shape=jax.ShapeDtypeStruct((G, 1, RP), jnp.float32),
        grid_spec=pltpu.PrefetchScalarGridSpec(
            num_scalar_prefetch=0, grid=(G,),
            in_specs=[pl.BlockSpec((RP, MP), lambda g: (0, 0)),       # shared block
                      pl.BlockSpec((None, RP, RP), lambda g: (g, 0, 0)),
                      w_spec, a_spec, a_spec, b_spec,
                      w_spec, a_spec, a_spec, b_spec,
                      pl.BlockSpec((1, 2), lambda g: (0, 0))],
            out_specs=pl.BlockSpec((None, 1, RP), lambda g: (g, 0, 0))),
        compiler_params=pltpu.CompilerParams(
            dimension_semantics=("parallel",), vmem_limit_bytes=VMEM_LIMIT),
    )(x_met_blk, adj_met, *pp["sgat0"], *pp["sgat1"], pp["aggr_t"])
    met_concat = met_concat.reshape(G, RP)

    # ---- kernel 3a: head MLPs (small weights, whole-in-VMEM) ----------------
    head_args = [st_concat, met_concat] + pp["met_compress"] + pp["embed_rxn_head"]
    y3 = _vmem_call(_head_mlp_kernel,
                    jax.ShapeDtypeStruct((G, pp["er_hidden"]), jnp.float32),
                    *head_args)

    # ---- kernel 3b/3c: column-streamed big matmuls (parallel output tiles) ---
    out_rxn = _colstream_dense(y3, pp["er_w4"], pp["er_b4"], act="gelu")
    out_p = _colstream_dense(out_rxn, pp["rg_w"], pp["rg_b"], act="relu")
    return out_p[:, :n_gene]


# ----------------------------------------------------------------------------
if __name__ == "__main__":
    n_gene, n_rxn, nfeature_embed = 48, 32, 64
    nfeature_met, nhead = 13, 4
    batch_size = 2
    spots_per_graph = 6
    N = batch_size * spots_per_graph

    root = jax.random.PRNGKey(0)
    k_x, k_src, k_dst, k_ms, k_md, k_par = jax.random.split(root, 6)

    x = jax.random.normal(k_x, (N, n_gene), jnp.float32)
    batch = jnp.repeat(jnp.arange(batch_size, dtype=jnp.int32), spots_per_graph)

    E_st = 40
    edge_index = jnp.stack([
        jax.random.randint(k_src, (E_st,), 0, N),
        jax.random.randint(k_dst, (E_st,), 0, N),
    ]).astype(jnp.int32)

    # Metabolic graph: one edge set over n_rxn nodes replicated per sample with a
    # node offset (exactly what PyG DataLoader batching produces: block-diagonal).
    E_met_g = 96
    bsrc = jax.random.randint(k_ms, (E_met_g,), 0, n_rxn)
    bdst = jax.random.randint(k_md, (E_met_g,), 0, n_rxn)
    offs = (jnp.arange(batch_size, dtype=jnp.int32) * n_rxn)[:, None]
    met_edge_index = jnp.stack([(bsrc[None, :] + offs).reshape(-1),
                                (bdst[None, :] + offs).reshape(-1)]).astype(jnp.int32)
    # met_batch is only used by SuperGAT's training-time negative sampling -> unused.

    params = init_params(k_par, n_gene, n_rxn, nfeature_embed, nfeature_met, nhead)
    pp = prepare_params(params, n_gene, n_rxn, nfeature_embed, nfeature_met, nhead)

    out = amiya_forward(pp, x, edge_index, batch, batch_size, met_edge_index,
                        n_gene=n_gene, n_rxn=n_rxn, nfeature_met=nfeature_met,
                        nhead_SGAT=nhead)
    out = jax.block_until_ready(out)
    assert out.shape == (batch_size, n_gene)
    assert bool(jnp.all(jnp.isfinite(out)))
    print("KERNEL_OK")
</pallas_src>

<mosaic_0001>
module attributes {stable_mosaic.version = 11 : i64} {
  func.func @_st_kernel(%arg0: memref<12x128xf32, #tpu.memory_space<vmem>>, %arg1: memref<12x2xbf16, #tpu.memory_space<vmem>>, %arg2: memref<2x12xbf16, #tpu.memory_space<vmem>>, %arg3: memref<2x1xf32, #tpu.memory_space<vmem>>, %arg4: memref<12x12xbf16, #tpu.memory_space<vmem>>, %arg5: memref<3x128xf32, #tpu.memory_space<vmem>>, %arg6: memref<128x256xbf16, #tpu.memory_space<vmem>>, %arg7: memref<1x256xf32, #tpu.memory_space<vmem>>, %arg8: memref<128x1024xbf16, #tpu.memory_space<vmem>>, %arg9: memref<4x1024xf32, #tpu.memory_space<vmem>>, %arg10: memref<1024x512xbf16, #tpu.memory_space<vmem>>, %arg11: memref<4x512xf32, #tpu.memory_space<vmem>>, %arg12: memref<512x128xbf16, #tpu.memory_space<vmem>>, %arg13: memref<4x128xf32, #tpu.memory_space<vmem>>, %arg14: memref<128x128xbf16, #tpu.memory_space<vmem>>, %arg15: memref<4x128xf32, #tpu.memory_space<vmem>>, %arg16: memref<128x256xbf16, #tpu.memory_space<vmem>>, %arg17: memref<4x256xf32, #tpu.memory_space<vmem>>, %arg18: memref<256x128xbf16, #tpu.memory_space<vmem>>, %arg19: memref<4x128xf32, #tpu.memory_space<vmem>>, %arg20: memref<128x256xbf16, #tpu.memory_space<vmem>>, %arg21: memref<4x256xf32, #tpu.memory_space<vmem>>, %arg22: memref<256x128xbf16, #tpu.memory_space<vmem>>, %arg23: memref<4x128xf32, #tpu.memory_space<vmem>>, %arg24: memref<2x128xf32, #tpu.memory_space<vmem>>, %arg25: memref<12x128xf32, #tpu.memory_space<vmem>>) attributes {dimension_semantics = [], scalar_prefetch = 0 : i64, scratch_operands = 0 : i64, tpu.core_type = #tpu.core_type<tc>} {
    %c0 = arith.constant 0 : index
    %c0_0 = arith.constant 0 : index
    %0 = vector.load %arg0[%c0, %c0_0] : memref<12x128xf32, #tpu.memory_space<vmem>>, vector<12x128xf32>
    %c0_1 = arith.constant 0 : index
    %c0_2 = arith.constant 0 : index
    %1 = vector.load %arg1[%c0_1, %c0_2] : memref<12x2xbf16, #tpu.memory_space<vmem>>, vector<12x2xbf16>
    %c0_3 = arith.constant 0 : index
    %c0_4 = arith.constant 0 : index
    %2 = vector.load %arg2[%c0_3, %c0_4] : memref<2x12xbf16, #tpu.memory_space<vmem>>, vector<2x12xbf16>
    %c0_5 = arith.constant 0 : index
    %c0_6 = arith.constant 0 : index
    %3 = vector.load %arg3[%c0_5, %c0_6] : memref<2x1xf32, #tpu.memory_space<vmem>>, vector<2x1xf32>
    %c0_7 = arith.constant 0 : index
    %c0_8 = arith.constant 0 : index
    %4 = vector.load %arg5[%c0_7, %c0_8] : memref<3x128xf32, #tpu.memory_space<vmem>>, vector<3x128xf32>
    %5 = arith.truncf %0 : vector<12x128xf32> to vector<12x128xbf16>
    %cst = arith.constant dense<0.000000e+00> : vector<2x128xf32>
    %6 = tpu.matmul %2, %5, %cst {dimension_numbers = #tpu.dot_dimension_numbers<[1], [0], [0], [1], [0, 0, 1, 1], [], []>} : vector<2x12xbf16>, vector<12x128xbf16>, vector<2x128xf32> -> vector<2x128xf32>
    %7 = vector.broadcast %3 : vector<2x1xf32> to vector<2x128xf32>
    %8 = arith.mulf %6, %7 : vector<2x128xf32>
    %9 = arith.truncf %8 : vector<2x128xf32> to vector<2x128xbf16>
    %cst_9 = arith.constant dense<0.000000e+00> : vector<12x128xf32>
    %10 = tpu.matmul %1, %9, %cst_9 {dimension_numbers = #tpu.dot_dimension_numbers<[1], [0], [0], [1], [0, 0, 1, 1], [], []>} : vector<12x2xbf16>, vector<2x128xbf16>, vector<12x128xf32> -> vector<12x128xf32>
    %11 = vector.extract_strided_slice %4 {offsets = [2, 0], sizes = [1, 128], strides = [1, 1]} : vector<3x128xf32> to vector<1x128xf32>
    %12 = vector.broadcast %11 : vector<1x128xf32> to vector<12x128xf32>
    %13 = arith.mulf %10, %12 : vector<12x128xf32>
    %14 = arith.subf %0, %13 : vector<12x128xf32>
    %15 = arith.mulf %14, %14 : vector<12x128xf32>
    %16 = arith.truncf %15 : vector<12x128xf32> to vector<12x128xbf16>
    %cst_10 = arith.constant dense<0.000000e+00> : vector<2x128xf32>
    %17 = tpu.matmul %2, %16, %cst_10 {dimension_numbers = #tpu.dot_dimension_numbers<[1], [0], [0], [1], [0, 0, 1, 1], [], []>} : vector<2x12xbf16>, vector<12x128xbf16>, vector<2x128xf32> -> vector<2x128xf32>
    %18 = vector.broadcast %3 : vector<2x1xf32> to vector<2x128xf32>
    %19 = arith.mulf %17, %18 : vector<2x128xf32>
    %20 = vector.extract_strided_slice %4 {offsets = [0, 0], sizes = [1, 128], strides = [1, 1]} : vector<3x128xf32> to vector<1x128xf32>
    %21 = vector.broadcast %20 : vector<1x128xf32> to vector<12x128xf32>
    %22 = arith.mulf %21, %14 : vector<12x128xf32>
    %23 = arith.truncf %19 : vector<2x128xf32> to vector<2x128xbf16>
    %cst_11 = arith.constant dense<0.000000e+00> : vector<12x128xf32>
    %24 = tpu.matmul %1, %23, %cst_11 {dimension_numbers = #tpu.dot_dimension_numbers<[1], [0], [0], [1], [0, 0, 1, 1], [], []>} : vector<12x2xbf16>, vector<2x128xbf16>, vector<12x128xf32> -> vector<12x128xf32>
    %cst_12 = arith.constant 9.99999974E-6 : f32
    %25 = vector.broadcast %cst_12 : f32 to vector<12x128xf32>
    %26 = arith.addf %24, %25 : vector<12x128xf32>
    %27 = math.rsqrt %26 : vector<12x128xf32>
    %28 = arith.mulf %22, %27 : vector<12x128xf32>
    %29 = vector.extract_strided_slice %4 {offsets = [1, 0], sizes = [1, 128], strides = [1, 1]} : vector<3x128xf32> to vector<1x128xf32>
    %30 = vector.broadcast %29 : vector<1x128xf32> to vector<12x128xf32>
    %31 = arith.addf %28, %30 : vector<12x128xf32>
    %c0_13 = arith.constant 0 : index
    %c0_14 = arith.constant 0 : index
    %32 = vector.load %arg6[%c0_13, %c0_14] : memref<128x256xbf16, #tpu.memory_space<vmem>>, vector<128x256xbf16>
    %33 = arith.truncf %31 : vector<12x128xf32> to vector<12x128xbf16>
    %cst_15 = arith.constant dense<0.000000e+00> : vector<12x256xf32>
    %34 = tpu.matmul %33, %32, %cst_15 {dimension_numbers = #tpu.dot_dimension_numbers<[1], [0], [0], [1], [0, 0, 1, 1], [], []>} : vector<12x128xbf16>, vector<128x256xbf16>, vector<12x256xf32> -> vector<12x256xf32>
    %c0_16 = arith.constant 0 : index
    %c0_17 = arith.constant 0 : index
    %35 = vector.load %arg7[%c0_16, %c0_17] : memref<1x256xf32, #tpu.memory_space<vmem>>, vector<1x256xf32>
    %36 = vector.broadcast %35 : vector<1x256xf32> to vector<12x256xf32>
    %37 = arith.addf %34, %36 : vector<12x256xf32>
    %cst_18 = arith.constant 5.000000e-01 : f32
    %38 = vector.broadcast %cst_18 : f32 to vector<12x256xf32>
    %39 = arith.mulf %38, %37 : vector<12x256xf32>
    %cst_19 = arith.constant 4.471500e-02 : f32
    %40 = vector.broadcast %cst_19 : f32 to vector<12x256xf32>
    %41 = arith.mulf %40, %37 : vector<12x256xf32>
    %42 = arith.mulf %41, %37 : vector<12x256xf32>
    %43 = arith.mulf %42, %37 : vector<12x256xf32>
    %44 = arith.addf %37, %43 : vector<12x256xf32>
    %cst_20 = arith.constant 0.797884583 : f32
    %45 = vector.broadcast %cst_20 : f32 to vector<12x256xf32>
    %46 = arith.mulf %45, %44 : vector<12x256xf32>
    %47 = math.tanh %46 : vector<12x256xf32>
    %cst_21 = arith.constant 1.000000e+00 : f32
    %48 = vector.broadcast %cst_21 : f32 to vector<12x256xf32>
    %49 = arith.addf %48, %47 : vector<12x256xf32>
    %50 = arith.mulf %39, %49 : vector<12x256xf32>
    %51 = vector.extract_strided_slice %50 {offsets = [0, 0], sizes = [12, 128], strides = [1, 1]} : vector<12x256xf32> to vector<12x128xf32>
    %52 = vector.extract_strided_slice %50 {offsets = [0, 128], sizes = [12, 128], strides = [1, 1]} : vector<12x256xf32> to vector<12x128xf32>
    %c0_22 = arith.constant 0 : index
    %c0_23 = arith.constant 0 : index
    %53 = vector.load %arg25[%c0_22, %c0_23] : memref<12x128xf32, #tpu.memory_space<vmem>>, vector<12x128xf32>
    tpu.vector_store %arg25[%c0_22, %c0_23], %52 {strides = array<i32>} : memref<12x128xf32, #tpu.memory_space<vmem>>, vector<12x128xf32>,
    %c0_24 = arith.constant 0 : index
    %c0_25 = arith.constant 0 : index
    %54 = vector.load %arg4[%c0_24, %c0_25] : memref<12x12xbf16, #tpu.memory_space<vmem>>, vector<12x12xbf16>
    %55 = arith.truncf %52 : vector<12x128xf32> to vector<12x128xbf16>
    %cst_26 = arith.constant dense<0.000000e+00> : vector<12x128xf32>
    %56 = tpu.matmul %54, %55, %cst_26 {dimension_numbers = #tpu.dot_dimension_numbers<[1], [0], [0], [1], [0, 0, 1, 1], [], []>} : vector<12x12xbf16>, vector<12x128xbf16>, vector<12x128xf32> -> vector<12x128xf32>
    %cst_27 = arith.constant 1.000000e+00 : f32
    %57 = vector.broadcast %cst_27 : f32 to vector<12x128xf32>
    %58 = arith.mulf %57, %52 : vector<12x128xf32>
    %59 = arith.addf %56, %58 : vector<12x128xf32>
    %c0_28 = arith.constant 0 : index
    %c0_29 = arith.constant 0 : index
    %60 = vector.load %arg8[%c0_28, %c0_29] : memref<128x1024xbf16, #tpu.memory_space<vmem>>, vector<128x1024xbf16>
    %c0_30 = arith.constant 0 : index
    %c0_31 = arith.constant 0 : index
    %61 = vector.load %arg9[%c0_30, %c0_31] : memref<4x1024xf32, #tpu.memory_space<vmem>>, vector<4x1024xf32>
    %62 = arith.truncf %59 : vector<12x128xf32> to vector<12x128xbf16>
    %cst_32 = arith.constant dense<0.000000e+00> : vector<12x1024xf32>
    %63 = tpu.matmul %62, %60, %cst_32 {dimension_numbers = #tpu.dot_dimension_numbers<[1], [0], [0], [1], [0, 0, 1, 1], [], []>} : vector<12x128xbf16>, vector<128x1024xbf16>, vector<12x1024xf32> -> vector<12x1024xf32>
    %64 = vector.extract_strided_slice %61 {offsets = [0, 0], sizes = [1, 1024], strides = [1, 1]} : vector<4x1024xf32> to vector<1x1024xf32>
    %65 = vector.broadcast %64 : vector<1x1024xf32> to vector<12x1024xf32>
    %66 = arith.addf %63, %65 : vector<12x1024xf32>
    %67 = vector.extract_strided_slice %61 {offsets = [1, 0], sizes = [1, 1024], strides = [1, 1]} : vector<4x1024xf32> to vector<1x1024xf32>
    %68 = vector.extract_strided_slice %61 {offsets = [2, 0], sizes = [1, 1024], strides = [1, 1]} : vector<4x1024xf32> to vector<1x1024xf32>
    %69 = vector.extract_strided_slice %61 {offsets = [3, 0], sizes = [1, 1024], strides = [1, 1]} : vector<4x1024xf32> to vector<1x1024xf32>
    %cst_33 = arith.constant dense<0.000000e+00> : vector<1024xf32>
    %70 = vector.multi_reduction <add>, %66, %cst_33 [0] : vector<12x1024xf32> to vector<1024xf32>
    %71 = vector.shape_cast %70 : vector<1024xf32> to vector<1x1024xf32>
    %cst_34 = arith.constant 1.200000e+01 : f32
    %72 = vector.broadcast %cst_34 : f32 to vector<1x1024xf32>
    %73 = arith.divf %71, %72 : vector<1x1024xf32>
    %74 = arith.mulf %73, %69 : vector<1x1024xf32>
    %75 = vector.broadcast %74 : vector<1x1024xf32> to vector<12x1024xf32>
    %76 = arith.subf %66, %75 : vector<12x1024xf32>
    %77 = arith.mulf %76, %76 : vector<12x1024xf32>
    %cst_35 = arith.constant dense<0.000000e+00> : vector<1024xf32>
    %78 = vector.multi_reduction <add>, %77, %cst_35 [0] : vector<12x1024xf32> to vector<1024xf32>
    %79 = vector.shape_cast %78 : vector<1024xf32> to vector<1x1024xf32>
    %cst_36 = arith.constant 1.200000e+01 : f32
    %80 = vector.broadcast %cst_36 : f32 to vector<1x1024xf32>
    %81 = arith.divf %79, %80 : vector<1x1024xf32>
    %82 = vector.broadcast %67 : vector<1x1024xf32> to vector<12x1024xf32>
    %83 = arith.mulf %82, %76 : vector<12x1024xf32>
    %cst_37 = arith.constant 9.99999974E-6 : f32
    %84 = vector.broadcast %cst_37 : f32 to vector<1x1024xf32>
    %85 = arith.addf %81, %84 : vector<1x1024xf32>
    %86 = math.rsqrt %85 : vector<1x1024xf32>
    %87 = vector.broadcast %86 : vector<1x1024xf32> to vector<12x1024xf32>
    %88 = arith.mulf %83, %87 : vector<12x1024xf32>
    %89 = vector.broadcast %68 : vector<1x1024xf32> to vector<12x1024xf32>
    %90 = arith.addf %88, %89 : vector<12x1024xf32>
    %cst_38 = arith.constant 5.000000e-01 : f32
    %91 = vector.broadcast %cst_38 : f32 to vector<12x1024xf32>
    %92 = arith.mulf %91, %90 : vector<12x1024xf32>
    %cst_39 = arith.constant 4.471500e-02 : f32
    %93 = vector.broadcast %cst_39 : f32 to vector<12x1024xf32>
    %94 = arith.mulf %93, %90 : vector<12x1024xf32>
    %95 = arith.mulf %94, %90 : vector<12x1024xf32>
    %96 = arith.mulf %95, %90 : vector<12x1024xf32>
    %97 = arith.addf %90, %96 : vector<12x1024xf32>
    %cst_40 = arith.constant 0.797884583 : f32
    %98 = vector.broadcast %cst_40 : f32 to vector<12x1024xf32>
    %99 = arith.mulf %98, %97 : vector<12x1024xf32>
    %100 = math.tanh %99 : vector<12x1024xf32>
    %cst_41 = arith.constant 1.000000e+00 : f32
    %101 = vector.broadcast %cst_41 : f32 to vector<12x1024xf32>
    %102 = arith.addf %101, %100 : vector<12x1024xf32>
    %103 = arith.mulf %92, %102 : vector<12x1024xf32>
    %c0_42 = arith.constant 0 : index
    %c0_43 = arith.constant 0 : index
    %104 = vector.load %arg10[%c0_42, %c0_43] : memref<1024x512xbf16, #tpu.memory_space<vmem>>, vector<1024x512xbf16>
    %c0_44 = arith.constant 0 : index
    %c0_45 = arith.constant 0 : index
    %105 = vector.load %arg11[%c0_44, %c0_45] : memref<4x512xf32, #tpu.memory_space<vmem>>, vector<4x512xf32>
    %106 = arith.truncf %103 : vector<12x1024xf32> to vector<12x1024xbf16>
    %cst_46 = arith.constant dense<0.000000e+00> : vector<12x512xf32>
    %107 = tpu.matmul %106, %104, %cst_46 {dimension_numbers = #tpu.dot_dimension_numbers<[1], [0], [0], [1], [0, 0, 1, 1], [], []>} : vector<12x1024xbf16>, vector<1024x512xbf16>, vector<12x512xf32> -> vector<12x512xf32>
    %108 = vector.extract_strided_slice %105 {offsets = [0, 0], sizes = [1, 512], strides = [1, 1]} : vector<4x512xf32> to vector<1x512xf32>
    %109 = vector.broadcast %108 : vector<1x512xf32> to vector<12x512xf32>
    %110 = arith.addf %107, %109 : vector<12x512xf32>
    %111 = vector.extract_strided_slice %105 {offsets = [1, 0], sizes = [1, 512], strides = [1, 1]} : vector<4x512xf32> to vector<1x512xf32>
    %112 = vector.extract_strided_slice %105 {offsets = [2, 0], sizes = [1, 512], strides = [1, 1]} : vector<4x512xf32> to vector<1x512xf32>
    %113 = vector.extract_strided_slice %105 {offsets = [3, 0], sizes = [1, 512], strides = [1, 1]} : vector<4x512xf32> to vector<1x512xf32>
    %cst_47 = arith.constant dense<0.000000e+00> : vector<512xf32>
    %114 = vector.multi_reduction <add>, %110, %cst_47 [0] : vector<12x512xf32> to vector<512xf32>
    %115 = vector.shape_cast %114 : vector<512xf32> to vector<1x512xf32>
    %cst_48 = arith.constant 1.200000e+01 : f32
    %116 = vector.broadcast %cst_48 : f32 to vector<1x512xf32>
    %117 = arith.divf %115, %116 : vector<1x512xf32>
    %118 = arith.mulf %117, %113 : vector<1x512xf32>
    %119 = vector.broadcast %118 : vector<1x512xf32> to vector<12x512xf32>
    %120 = arith.subf %110, %119 : vector<12x512xf32>
    %121 = arith.mulf %120, %120 : vector<12x512xf32>
    %cst_49 = arith.constant dense<0.000000e+00> : vector<512xf32>
    %122 = vector.multi_reduction <add>, %121, %cst_49 [0] : vector<12x512xf32> to vector<512xf32>
    %123 = vector.shape_cast %122 : vector<512xf32> to vector<1x512xf32>
    %cst_50 = arith.constant 1.200000e+01 : f32
    %124 = vector.broadcast %cst_50 : f32 to vector<1x512xf32>
    %125 = arith.divf %123, %124 : vector<1x512xf32>
    %126 = vector.broadcast %111 : vector<1x512xf32> to vector<12x512xf32>
    %127 = arith.mulf %126, %120 : vector<12x512xf32>
    %cst_51 = arith.constant 9.99999974E-6 : f32
    %128 = vector.broadcast %cst_51 : f32 to vector<1x512xf32>
    %129 = arith.addf %125, %128 : vector<1x512xf32>
    %130 = math.rsqrt %129 : vector<1x512xf32>
    %131 = vector.broadcast %130 : vector<1x512xf32> to vector<12x512xf32>
    %132 = arith.mulf %127, %131 : vector<12x512xf32>
    %133 = vector.broadcast %112 : vector<1x512xf32> to vector<12x512xf32>
    %134 = arith.addf %132, %133 : vector<12x512xf32>
    %cst_52 = arith.constant 5.000000e-01 : f32
    %135 = vector.broadcast %cst_52 : f32 to vector<12x512xf32>
    %136 = arith.mulf %135, %134 : vector<12x512xf32>
    %cst_53 = arith.constant 4.471500e-02 : f32
    %137 = vector.broadcast %cst_53 : f32 to vector<12x512xf32>
    %138 = arith.mulf %137, %134 : vector<12x512xf32>
    %139 = arith.mulf %138, %134 : vector<12x512xf32>
    %140 = arith.mulf %139, %134 : vector<12x512xf32>
    %141 = arith.addf %134, %140 : vector<12x512xf32>
    %cst_54 = arith.constant 0.797884583 : f32
    %142 = vector.broadcast %cst_54 : f32 to vector<12x512xf32>
    %143 = arith.mulf %142, %141 : vector<12x512xf32>
    %144 = math.tanh %143 : vector<12x512xf32>
    %cst_55 = arith.constant 1.000000e+00 : f32
    %145 = vector.broadcast %cst_55 : f32 to vector<12x512xf32>
    %146 = arith.addf %145, %144 : vector<12x512xf32>
    %147 = arith.mulf %136, %146 : vector<12x512xf32>
    %c0_56 = arith.constant 0 : index
    %c0_57 = arith.constant 0 : index
    %148 = vector.load %arg12[%c0_56, %c0_57] : memref<512x128xbf16, #tpu.memory_space<vmem>>, vector<512x128xbf16>
    %c0_58 = arith.constant 0 : index
    %c0_59 = arith.constant 0 : index
    %149 = vector.load %arg13[%c0_58, %c0_59] : memref<4x128xf32, #tpu.memory_space<vmem>>, vector<4x128xf32>
    %150 = arith.truncf %147 : vector<12x512xf32> to vector<12x512xbf16>
    %cst_60 = arith.constant dense<0.000000e+00> : vector<12x128xf32>
    %151 = tpu.matmul %150, %148, %cst_60 {dimension_numbers = #tpu.dot_dimension_numbers<[1], [0], [0], [1], [0, 0, 1, 1], [], []>} : vector<12x512xbf16>, vector<512x128xbf16>, vector<12x128xf32> -> vector<12x128xf32>
    %152 = vector.extract_strided_slice %149 {offsets = [0, 0], sizes = [1, 128], strides = [1, 1]} : vector<4x128xf32> to vector<1x128xf32>
    %153 = vector.broadcast %152 : vector<1x128xf32> to vector<12x128xf32>
    %154 = arith.addf %151, %153 : vector<12x128xf32>
    %155 = vector.extract_strided_slice %149 {offsets = [1, 0], sizes = [1, 128], strides = [1, 1]} : vector<4x128xf32> to vector<1x128xf32>
    %156 = vector.extract_strided_slice %149 {offsets = [2, 0], sizes = [1, 128], strides = [1, 1]} : vector<4x128xf32> to vector<1x128xf32>
    %157 = vector.extract_strided_slice %149 {offsets = [3, 0], sizes = [1, 128], strides = [1, 1]} : vector<4x128xf32> to vector<1x128xf32>
    %cst_61 = arith.constant dense<0.000000e+00> : vector<128xf32>
    %158 = vector.multi_reduction <add>, %154, %cst_61 [0] : vector<12x128xf32> to vector<128xf32>
    %159 = vector.shape_cast %158 : vector<128xf32> to vector<1x128xf32>
    %cst_62 = arith.constant 1.200000e+01 : f32
    %160 = vector.broadcast %cst_62 : f32 to vector<1x128xf32>
    %161 = arith.divf %159, %160 : vector<1x128xf32>
    %162 = arith.mulf %161, %157 : vector<1x128xf32>
    %163 = vector.broadcast %162 : vector<1x128xf32> to vector<12x128xf32>
    %164 = arith.subf %154, %163 : vector<12x128xf32>
    %165 = arith.mulf %164, %164 : vector<12x128xf32>
    %cst_63 = arith.constant dense<0.000000e+00> : vector<128xf32>
    %166 = vector.multi_reduction <add>, %165, %cst_63 [0] : vector<12x128xf32> to vector<128xf32>
    %167 = vector.shape_cast %166 : vector<128xf32> to vector<1x128xf32>
    %cst_64 = arith.constant 1.200000e+01 : f32
    %168 = vector.broadcast %cst_64 : f32 to vector<1x128xf32>
    %169 = arith.divf %167, %168 : vector<1x128xf32>
    %170 = vector.broadcast %155 : vector<1x128xf32> to vector<12x128xf32>
    %171 = arith.mulf %170, %164 : vector<12x128xf32>
    %cst_65 = arith.constant 9.99999974E-6 : f32
    %172 = vector.broadcast %cst_65 : f32 to vector<1x128xf32>
    %173 = arith.addf %169, %172 : vector<1x128xf32>
    %174 = math.rsqrt %173 : vector<1x128xf32>
    %175 = vector.broadcast %174 : vector<1x128xf32> to vector<12x128xf32>
    %176 = arith.mulf %171, %175 : vector<12x128xf32>
    %177 = vector.broadcast %156 : vector<1x128xf32> to vector<12x128xf32>
    %178 = arith.addf %176, %177 : vector<12x128xf32>
    %cst_66 = arith.constant 5.000000e-01 : f32
    %179 = vector.broadcast %cst_66 : f32 to vector<12x128xf32>
    %180 = arith.mulf %179, %178 : vector<12x128xf32>
    %cst_67 = arith.constant 4.471500e-02 : f32
    %181 = vector.broadcast %cst_67 : f32 to vector<12x128xf32>
    %182 = arith.mulf %181, %178 : vector<12x128xf32>
    %183 = arith.mulf %182, %178 : vector<12x128xf32>
    %184 = arith.mulf %183, %178 : vector<12x128xf32>
    %185 = arith.addf %178, %184 : vector<12x128xf32>
    %cst_68 = arith.constant 0.797884583 : f32
    %186 = vector.broadcast %cst_68 : f32 to vector<12x128xf32>
    %187 = arith.mulf %186, %185 : vector<12x128xf32>
    %188 = math.tanh %187 : vector<12x128xf32>
    %cst_69 = arith.constant 1.000000e+00 : f32
    %189 = vector.broadcast %cst_69 : f32 to vector<12x128xf32>
    %190 = arith.addf %189, %188 : vector<12x128xf32>
    %191 = arith.mulf %180, %190 : vector<12x128xf32>
    %c0_70 = arith.constant 0 : index
    %c0_71 = arith.constant 0 : index
    %192 = vector.load %arg14[%c0_70, %c0_71] : memref<128x128xbf16, #tpu.memory_space<vmem>>, vector<128x128xbf16>
    %c0_72 = arith.constant 0 : index
    %c0_73 = arith.constant 0 : index
    %193 = vector.load %arg15[%c0_72, %c0_73] : memref<4x128xf32, #tpu.memory_space<vmem>>, vector<4x128xf32>
    %194 = arith.truncf %191 : vector<12x128xf32> to vector<12x128xbf16>
    %cst_74 = arith.constant dense<0.000000e+00> : vector<12x128xf32>
    %195 = tpu.matmul %194, %192, %cst_74 {dimension_numbers = #tpu.dot_dimension_numbers<[1], [0], [0], [1], [0, 0, 1, 1], [], []>} : vector<12x128xbf16>, vector<128x128xbf16>, vector<12x128xf32> -> vector<12x128xf32>
    %196 = vector.extract_strided_slice %193 {offsets = [0, 0], sizes = [1, 128], strides = [1, 1]} : vector<4x128xf32> to vector<1x128xf32>
    %197 = vector.broadcast %196 : vector<1x128xf32> to vector<12x128xf32>
    %198 = arith.addf %195, %197 : vector<12x128xf32>
    %cst_75 = arith.constant 5.000000e-01 : f32
    %199 = vector.broadcast %cst_75 : f32 to vector<12x128xf32>
    %200 = arith.mulf %199, %198 : vector<12x128xf32>
    %cst_76 = arith.constant 4.471500e-02 : f32
    %201 = vector.broadcast %cst_76 : f32 to vector<12x128xf32>
    %202 = arith.mulf %201, %198 : vector<12x128xf32>
    %203 = arith.mulf %202, %198 : vector<12x128xf32>
    %204 = arith.mulf %203, %198 : vector<12x128xf32>
    %205 = arith.addf %198, %204 : vector<12x128xf32>
    %cst_77 = arith.constant 0.797884583 : f32
    %206 = vector.broadcast %cst_77 : f32 to vector<12x128xf32>
    %207 = arith.mulf %206, %205 : vector<12x128xf32>
    %208 = math.tanh %207 : vector<12x128xf32>
    %cst_78 = arith.constant 1.000000e+00 : f32
    %209 = vector.broadcast %cst_78 : f32 to vector<12x128xf32>
    %210 = arith.addf %209, %208 : vector<12x128xf32>
    %211 = arith.mulf %200, %210 : vector<12x128xf32>
    %212 = arith.addf %211, %51 : vector<12x128xf32>
    %213 = arith.truncf %212 : vector<12x128xf32> to vector<12x128xbf16>
    %cst_79 = arith.constant dense<0.000000e+00> : vector<2x128xf32>
    %214 = tpu.matmul %2, %213, %cst_79 {dimension_numbers = #tpu.dot_dimension_numbers<[1], [0], [0], [1], [0, 0, 1, 1], [], []>} : vector<2x12xbf16>, vector<12x128xbf16>, vector<2x128xf32> -> vector<2x128xf32>
    %cst_80 = arith.constant 5.000000e-01 : f32
    %215 = vector.broadcast %cst_80 : f32 to vector<2x128xf32>
    %216 = arith.mulf %215, %214 : vector<2x128xf32>
    %cst_81 = arith.constant 4.471500e-02 : f32
    %217 = vector.broadcast %cst_81 : f32 to vector<2x128xf32>
    %218 = arith.mulf %217, %214 : vector<2x128xf32>
    %219 = arith.mulf %218, %214 : vector<2x128xf32>
    %220 = arith.mulf %219, %214 : vector<2x128xf32>
    %221 = arith.addf %214, %220 : vector<2x128xf32>
    %cst_82 = arith.constant 0.797884583 : f32
    %222 = vector.broadcast %cst_82 : f32 to vector<2x128xf32>
    %223 = arith.mulf %222, %221 : vector<2x128xf32>
    %224 = math.tanh %223 : vector<2x128xf32>
    %cst_83 = arith.constant 1.000000e+00 : f32
    %225 = vector.broadcast %cst_83 : f32 to vector<2x128xf32>
    %226 = arith.addf %225, %224 : vector<2x128xf32>
    %227 = arith.mulf %216, %226 : vector<2x128xf32>
    %228 = arith.truncf %212 : vector<12x128xf32> to vector<12x128xbf16>
    %cst_84 = arith.constant dense<0.000000e+00> : vector<12x128xf32>
    %229 = tpu.matmul %54, %228, %cst_84 {dimension_numbers = #tpu.dot_dimension_numbers<[1], [0], [0], [1], [0, 0, 1, 1], [], []>} : vector<12x12xbf16>, vector<12x128xbf16>, vector<12x128xf32> -> vector<12x128xf32>
    %cst_85 = arith.constant 1.000000e+00 : f32
    %230 = vector.broadcast %cst_85 : f32 to vector<12x128xf32>
    %231 = arith.mulf %230, %212 : vector<12x128xf32>
    %232 = arith.addf %229, %231 : vector<12x128xf32>
    %c0_86 = arith.constant 0 : index
    %c0_87 = arith.constant 0 : index
    %233 = vector.load %arg16[%c0_86, %c0_87] : memref<128x256xbf16, #tpu.memory_space<vmem>>, vector<128x256xbf16>
    %c0_88 = arith.constant 0 : index
    %c0_89 = arith.constant 0 : index
    %234 = vector.load %arg17[%c0_88, %c0_89] : memref<4x256xf32, #tpu.memory_space<vmem>>, vector<4x256xf32>
    %235 = arith.truncf %232 : vector<12x128xf32> to vector<12x128xbf16>
    %cst_90 = arith.constant dense<0.000000e+00> : vector<12x256xf32>
    %236 = tpu.matmul %235, %233, %cst_90 {dimension_numbers = #tpu.dot_dimension_numbers<[1], [0], [0], [1], [0, 0, 1, 1], [], []>} : vector<12x128xbf16>, vector<128x256xbf16>, vector<12x256xf32> -> vector<12x256xf32>
    %237 = vector.extract_strided_slice %234 {offsets = [0, 0], sizes = [1, 256], strides = [1, 1]} : vector<4x256xf32> to vector<1x256xf32>
    %238 = vector.broadcast %237 : vector<1x256xf32> to vector<12x256xf32>
    %239 = arith.addf %236, %238 : vector<12x256xf32>
    %240 = vector.extract_strided_slice %234 {offsets = [1, 0], sizes = [1, 256], strides = [1, 1]} : vector<4x256xf32> to vector<1x256xf32>
    %241 = vector.extract_strided_slice %234 {offsets = [2, 0], sizes = [1, 256], strides = [1, 1]} : vector<4x256xf32> to vector<1x256xf32>
    %242 = vector.extract_strided_slice %234 {offsets = [3, 0], sizes = [1, 256], strides = [1, 1]} : vector<4x256xf32> to vector<1x256xf32>
    %cst_91 = arith.constant dense<0.000000e+00> : vector<256xf32>
    %243 = vector.multi_reduction <add>, %239, %cst_91 [0] : vector<12x256xf32> to vector<256xf32>
    %244 = vector.shape_cast %243 : vector<256xf32> to vector<1x256xf32>
    %cst_92 = arith.constant 1.200000e+01 : f32
    %245 = vector.broadcast %cst_92 : f32 to vector<1x256xf32>
    %246 = arith.divf %244, %245 : vector<1x256xf32>
    %247 = arith.mulf %246, %242 : vector<1x256xf32>
    %248 = vector.broadcast %247 : vector<1x256xf32> to vector<12x256xf32>
    %249 = arith.subf %239, %248 : vector<12x256xf32>
    %250 = arith.mulf %249, %249 : vector<12x256xf32>
    %cst_93 = arith.constant dense<0.000000e+00> : vector<256xf32>
    %251 = vector.multi_reduction <add>, %250, %cst_93 [0] : vector<12x256xf32> to vector<256xf32>
    %252 = vector.shape_cast %251 : vector<256xf32> to vector<1x256xf32>
    %cst_94 = arith.constant 1.200000e+01 : f32
    %253 = vector.broadcast %cst_94 : f32 to vector<1x256xf32>
    %254 = arith.divf %252, %253 : vector<1x256xf32>
    %255 = vector.broadcast %240 : vector<1x256xf32> to vector<12x256xf32>
    %256 = arith.mulf %255, %249 : vector<12x256xf32>
    %cst_95 = arith.constant 9.99999974E-6 : f32
    %257 = vector.broadcast %cst_95 : f32 to vector<1x256xf32>
    %258 = arith.addf %254, %257 : vector<1x256xf32>
    %259 = math.rsqrt %258 : vector<1x256xf32>
    %260 = vector.broadcast %259 : vector<1x256xf32> to vector<12x256xf32>
    %261 = arith.mulf %256, %260 : vector<12x256xf32>
    %262 = vector.broadcast %241 : vector<1x256xf32> to vector<12x256xf32>
    %263 = arith.addf %261, %262 : vector<12x256xf32>
    %cst_96 = arith.constant 5.000000e-01 : f32
    %264 = vector.broadcast %cst_96 : f32 to vector<12x256xf32>
    %265 = arith.mulf %264, %263 : vector<12x256xf32>
    %cst_97 = arith.constant 4.471500e-02 : f32
    %266 = vector.broadcast %cst_97 : f32 to vector<12x256xf32>
    %267 = arith.mulf %266, %263 : vector<12x256xf32>
    %268 = arith.mulf %267, %263 : vector<12x256xf32>
    %269 = arith.mulf %268, %263 : vector<12x256xf32>
    %270 = arith.addf %263, %269 : vector<12x256xf32>
    %cst_98 = arith.constant 0.797884583 : f32
    %271 = vector.broadcast %cst_98 : f32 to vector<12x256xf32>
    %272 = arith.mulf %271, %270 : vector<12x256xf32>
    %273 = math.tanh %272 : vector<12x256xf32>
    %cst_99 = arith.constant 1.000000e+00 : f32
    %274 = vector.broadcast %cst_99 : f32 to vector<12x256xf32>
    %275 = arith.addf %274, %273 : vector<12x256xf32>
    %276 = arith.mulf %265, %275 : vector<12x256xf32>
    %c0_100 = arith.constant 0 : index
    %c0_101 = arith.constant 0 : index
    %277 = vector.load %arg18[%c0_100, %c0_101] : memref<256x128xbf16, #tpu.memory_space<vmem>>, vector<256x128xbf16>
    %c0_102 = arith.constant 0 : index
    %c0_103 = arith.constant 0 : index
    %278 = vector.load %arg19[%c0_102, %c0_103] : memref<4x128xf32, #tpu.memory_space<vmem>>, vector<4x128xf32>
    %279 = arith.truncf %276 : vector<12x256xf32> to vector<12x256xbf16>
    %cst_104 = arith.constant dense<0.000000e+00> : vector<12x128xf32>
    %280 = tpu.matmul %279, %277, %cst_104 {dimension_numbers = #tpu.dot_dimension_numbers<[1], [0], [0], [1], [0, 0, 1, 1], [], []>} : vector<12x256xbf16>, vector<256x128xbf16>, vector<12x128xf32> -> vector<12x128xf32>
    %281 = vector.extract_strided_slice %278 {offsets = [0, 0], sizes = [1, 128], strides = [1, 1]} : vector<4x128xf32> to vector<1x128xf32>
    %282 = vector.broadcast %281 : vector<1x128xf32> to vector<12x128xf32>
    %283 = arith.addf %280, %282 : vector<12x128xf32>
    %284 = vector.extract_strided_slice %278 {offsets = [1, 0], sizes = [1, 128], strides = [1, 1]} : vector<4x128xf32> to vector<1x128xf32>
    %285 = vector.extract_strided_slice %278 {offsets = [2, 0], sizes = [1, 128], strides = [1, 1]} : vector<4x128xf32> to vector<1x128xf32>
    %286 = vector.extract_strided_slice %278 {offsets = [3, 0], sizes = [1, 128], strides = [1, 1]} : vector<4x128xf32> to vector<1x128xf32>
    %cst_105 = arith.constant dense<0.000000e+00> : vector<128xf32>
    %287 = vector.multi_reduction <add>, %283, %cst_105 [0] : vector<12x128xf32> to vector<128xf32>
    %288 = vector.shape_cast %287 : vector<128xf32> to vector<1x128xf32>
    %cst_106 = arith.constant 1.200000e+01 : f32
    %289 = vector.broadcast %cst_106 : f32 to vector<1x128xf32>
    %290 = arith.divf %288, %289 : vector<1x128xf32>
    %291 = arith.mulf %290, %286 : vector<1x128xf32>
    %292 = vector.broadcast %291 : vector<1x128xf32> to vector<12x128xf32>
    %293 = arith.subf %283, %292 : vector<12x128xf32>
    %294 = arith.mulf %293, %293 : vector<12x128xf32>
    %cst_107 = arith.constant dense<0.000000e+00> : vector<128xf32>
    %295 = vector.multi_reduction <add>, %294, %cst_107 [0] : vector<12x128xf32> to vector<128xf32>
    %296 = vector.shape_cast %295 : vector<128xf32> to vector<1x128xf32>
    %cst_108 = arith.constant 1.200000e+01 : f32
    %297 = vector.broadcast %cst_108 : f32 to vector<1x128xf32>
    %298 = arith.divf %296, %297 : vector<1x128xf32>
    %299 = vector.broadcast %284 : vector<1x128xf32> to vector<12x128xf32>
    %300 = arith.mulf %299, %293 : vector<12x128xf32>
    %cst_109 = arith.constant 9.99999974E-6 : f32
    %301 = vector.broadcast %cst_109 : f32 to vector<1x128xf32>
    %302 = arith.addf %298, %301 : vector<1x128xf32>
    %303 = math.rsqrt %302 : vector<1x128xf32>
    %304 = vector.broadcast %303 : vector<1x128xf32> to vector<12x128xf32>
    %305 = arith.mulf %300, %304 : vector<12x128xf32>
    %306 = vector.broadcast %285 : vector<1x128xf32> to vector<12x128xf32>
    %307 = arith.addf %305, %306 : vector<12x128xf32>
    %cst_110 = arith.constant 5.000000e-01 : f32
    %308 = vector.broadcast %cst_110 : f32 to vector<12x128xf32>
    %309 = arith.mulf %308, %307 : vector<12x128xf32>
    %cst_111 = arith.constant 4.471500e-02 : f32
    %310 = vector.broadcast %cst_111 : f32 to vector<12x128xf32>
    %311 = arith.mulf %310, %307 : vector<12x128xf32>
    %312 = arith.mulf %311, %307 : vector<12x128xf32>
    %313 = arith.mulf %312, %307 : vector<12x128xf32>
    %314 = arith.addf %307, %313 : vector<12x128xf32>
    %cst_112 = arith.constant 0.797884583 : f32
    %315 = vector.broadcast %cst_112 : f32 to vector<12x128xf32>
    %316 = arith.mulf %315, %314 : vector<12x128xf32>
    %317 = math.tanh %316 : vector<12x128xf32>
    %cst_113 = arith.constant 1.000000e+00 : f32
    %318 = vector.broadcast %cst_113 : f32 to vector<12x128xf32>
    %319 = arith.addf %318, %317 : vector<12x128xf32>
    %320 = arith.mulf %309, %319 : vector<12x128xf32>
    %c0_114 = arith.constant 0 : index
    %c0_115 = arith.constant 0 : index
    %321 = vector.load %arg20[%c0_114, %c0_115] : memref<128x256xbf16, #tpu.memory_space<vmem>>, vector<128x256xbf16>
    %c0_116 = arith.constant 0 : index
    %c0_117 = arith.constant 0 : index
    %322 = vector.load %arg21[%c0_116, %c0_117] : memref<4x256xf32, #tpu.memory_space<vmem>>, vector<4x256xf32>
    %323 = arith.truncf %320 : vector<12x128xf32> to vector<12x128xbf16>
    %cst_118 = arith.constant dense<0.000000e+00> : vector<12x256xf32>
    %324 = tpu.matmul %323, %321, %cst_118 {dimension_numbers = #tpu.dot_dimension_numbers<[1], [0], [0], [1], [0, 0, 1, 1], [], []>} : vector<12x128xbf16>, vector<128x256xbf16>, vector<12x256xf32> -> vector<12x256xf32>
    %325 = vector.extract_strided_slice %322 {offsets = [0, 0], sizes = [1, 256], strides = [1, 1]} : vector<4x256xf32> to vector<1x256xf32>
    %326 = vector.broadcast %325 : vector<1x256xf32> to vector<12x256xf32>
    %327 = arith.addf %324, %326 : vector<12x256xf32>
    %328 = vector.extract_strided_slice %322 {offsets = [1, 0], sizes = [1, 256], strides = [1, 1]} : vector<4x256xf32> to vector<1x256xf32>
    %329 = vector.extract_strided_slice %322 {offsets = [2, 0], sizes = [1, 256], strides = [1, 1]} : vector<4x256xf32> to vector<1x256xf32>
    %330 = vector.extract_strided_slice %322 {offsets = [3, 0], sizes = [1, 256], strides = [1, 1]} : vector<4x256xf32> to vector<1x256xf32>
    %cst_119 = arith.constant dense<0.000000e+00> : vector<256xf32>
    %331 = vector.multi_reduction <add>, %327, %cst_119 [0] : vector<12x256xf32> to vector<256xf32>
    %332 = vector.shape_cast %331 : vector<256xf32> to vector<1x256xf32>
    %cst_120 = arith.constant 1.200000e+01 : f32
    %333 = vector.broadcast %cst_120 : f32 to vector<1x256xf32>
    %334 = arith.divf %332, %333 : vector<1x256xf32>
    %335 = arith.mulf %334, %330 : vector<1x256xf32>
    %336 = vector.broadcast %335 : vector<1x256xf32> to vector<12x256xf32>
    %337 = arith.subf %327, %336 : vector<12x256xf32>
    %338 = arith.mulf %337, %337 : vector<12x256xf32>
    %cst_121 = arith.constant dense<0.000000e+00> : vector<256xf32>
    %339 = vector.multi_reduction <add>, %338, %cst_121 [0] : vector<12x256xf32> to vector<256xf32>
    %340 = vector.shape_cast %339 : vector<256xf32> to vector<1x256xf32>
    %cst_122 = arith.constant 1.200000e+01 : f32
    %341 = vector.broadcast %cst_122 : f32 to vector<1x256xf32>
    %342 = arith.divf %340, %341 : vector<1x256xf32>
    %343 = vector.broadcast %328 : vector<1x256xf32> to vector<12x256xf32>
    %344 = arith.mulf %343, %337 : vector<12x256xf32>
    %cst_123 = arith.constant 9.99999974E-6 : f32
    %345 = vector.broadcast %cst_123 : f32 to vector<1x256xf32>
    %346 = arith.addf %342, %345 : vector<1x256xf32>
    %347 = math.rsqrt %346 : vector<1x256xf32>
    %348 = vector.broadcast %347 : vector<1x256xf32> to vector<12x256xf32>
    %349 = arith.mulf %344, %348 : vector<12x256xf32>
    %350 = vector.broadcast %329 : vector<1x256xf32> to vector<12x256xf32>
    %351 = arith.addf %349, %350 : vector<12x256xf32>
    %cst_124 = arith.constant 5.000000e-01 : f32
    %352 = vector.broadcast %cst_124 : f32 to vector<12x256xf32>
    %353 = arith.mulf %352, %351 : vector<12x256xf32>
    %cst_125 = arith.constant 4.471500e-02 : f32
    %354 = vector.broadcast %cst_125 : f32 to vector<12x256xf32>
    %355 = arith.mulf %354, %351 : vector<12x256xf32>
    %356 = arith.mulf %355, %351 : vector<12x256xf32>
    %357 = arith.mulf %356, %351 : vector<12x256xf32>
    %358 = arith.addf %351, %357 : vector<12x256xf32>
    %cst_126 = arith.constant 0.797884583 : f32
    %359 = vector.broadcast %cst_126 : f32 to vector<12x256xf32>
    %360 = arith.mulf %359, %358 : vector<12x256xf32>
    %361 = math.tanh %360 : vector<12x256xf32>
    %cst_127 = arith.constant 1.000000e+00 : f32
    %362 = vector.broadcast %cst_127 : f32 to vector<12x256xf32>
    %363 = arith.addf %362, %361 : vector<12x256xf32>
    %364 = arith.mulf %353, %363 : vector<12x256xf32>
    %c0_128 = arith.constant 0 : index
    %c0_129 = arith.constant 0 : index
    %365 = vector.load %arg22[%c0_128, %c0_129] : memref<256x128xbf16, #tpu.memory_space<vmem>>, vector<256x128xbf16>
    %c0_130 = arith.constant 0 : index
    %c0_131 = arith.constant 0 : index
    %366 = vector.load %arg23[%c0_130, %c0_131] : memref<4x128xf32, #tpu.memory_space<vmem>>, vector<4x128xf32>
    %367 = arith.truncf %364 : vector<12x256xf32> to vector<12x256xbf16>
    %cst_132 = arith.constant dense<0.000000e+00> : vector<12x128xf32>
    %368 = tpu.matmul %367, %365, %cst_132 {dimension_numbers = #tpu.dot_dimension_numbers<[1], [0], [0], [1], [0, 0, 1, 1], [], []>} : vector<12x256xbf16>, vector<256x128xbf16>, vector<12x128xf32> -> vector<12x128xf32>
    %369 = vector.extract_strided_slice %366 {offsets = [0, 0], sizes = [1, 128], strides = [1, 1]} : vector<4x128xf32> to vector<1x128xf32>
    %370 = vector.broadcast %369 : vector<1x128xf32> to vector<12x128xf32>
    %371 = arith.addf %368, %370 : vector<12x128xf32>
    %cst_133 = arith.constant 5.000000e-01 : f32
    %372 = vector.broadcast %cst_133 : f32 to vector<12x128xf32>
    %373 = arith.mulf %372, %371 : vector<12x128xf32>
    %cst_134 = arith.constant 4.471500e-02 : f32
    %374 = vector.broadcast %cst_134 : f32 to vector<12x128xf32>
    %375 = arith.mulf %374, %371 : vector<12x128xf32>
    %376 = arith.mulf %375, %371 : vector<12x128xf32>
    %377 = arith.mulf %376, %371 : vector<12x128xf32>
    %378 = arith.addf %371, %377 : vector<12x128xf32>
    %cst_135 = arith.constant 0.797884583 : f32
    %379 = vector.broadcast %cst_135 : f32 to vector<12x128xf32>
    %380 = arith.mulf %379, %378 : vector<12x128xf32>
    %381 = math.tanh %380 : vector<12x128xf32>
    %cst_136 = arith.constant 1.000000e+00 : f32
    %382 = vector.broadcast %cst_136 : f32 to vector<12x128xf32>
    %383 = arith.addf %382, %381 : vector<12x128xf32>
    %384 = arith.mulf %373, %383 : vector<12x128xf32>
    %385 = arith.truncf %384 : vector<12x128xf32> to vector<12x128xbf16>
    %cst_137 = arith.constant dense<0.000000e+00> : vector<2x128xf32>
    %386 = tpu.matmul %2, %385, %cst_137 {dimension_numbers = #tpu.dot_dimension_numbers<[1], [0], [0], [1], [0, 0, 1, 1], [], []>} : vector<2x12xbf16>, vector<12x128xbf16>, vector<2x128xf32> -> vector<2x128xf32>
    %cst_138 = arith.constant 5.000000e-01 : f32
    %387 = vector.broadcast %cst_138 : f32 to vector<2x128xf32>
    %388 = arith.mulf %387, %386 : vector<2x128xf32>
    %cst_139 = arith.constant 4.471500e-02 : f32
    %389 = vector.broadcast %cst_139 : f32 to vector<2x128xf32>
    %390 = arith.mulf %389, %386 : vector<2x128xf32>
    %391 = arith.mulf %390, %386 : vector<2x128xf32>
    %392 = arith.mulf %391, %386 : vector<2x128xf32>
    %393 = arith.addf %386, %392 : vector<2x128xf32>
    %cst_140 = arith.constant 0.797884583 : f32
    %394 = vector.broadcast %cst_140 : f32 to vector<2x128xf32>
    %395 = arith.mulf %394, %393 : vector<2x128xf32>
    %396 = math.tanh %395 : vector<2x128xf32>
    %cst_141 = arith.constant 1.000000e+00 : f32
    %397 = vector.broadcast %cst_141 : f32 to vector<2x128xf32>
    %398 = arith.addf %397, %396 : vector<2x128xf32>
    %399 = arith.mulf %388, %398 : vector<2x128xf32>
    %400 = arith.addf %227, %399 : vector<2x128xf32>
    %c0_142 = arith.constant 0 : index
    %c0_143 = arith.constant 0 : index
    %401 = vector.load %arg24[%c0_142, %c0_143] : memref<2x128xf32, #tpu.memory_space<vmem>>, vector<2x128xf32>
    tpu.vector_store %arg24[%c0_142, %c0_143], %400 {strides = array<i32>} : memref<2x128xf32, #tpu.memory_space<vmem>>, vector<2x128xf32>,
    return
  }
}

</mosaic_0001>

<llo_original>
// kernel: tpu_custom_call.1
$region0: #{tpu_custom_call.1}
  #allocation0 [shape = 'u32[]', space=smem, size = 0x4, offset = 0x4, fixed_abs, tag = 'smem constant byte address 0x4 - core index']
  #allocation1 [shape = 'u32[72,128]{1,0:T(1,128)}', space=vmem, size = 0x9000, scoped, tag = 'internal scratch']
  %s0 = inlined_call_operand.hbm [shape: f32[12,128], index: 0, kind: input, shape index: {}]
  %s1 = inlined_call_operand.vmem [shape: bf16[12,2], index: 1, kind: input, shape index: {}]
  %s2 = inlined_call_operand.vmem [shape: bf16[2,12], index: 2, kind: input, shape index: {}]
  %s3 = inlined_call_operand.vmem [shape: f32[2,1], index: 3, kind: input, shape index: {}]
  %s4 = inlined_call_operand.vmem [shape: bf16[12,12], index: 4, kind: input, shape index: {}]
  %s5 = inlined_call_operand.hbm [shape: f32[3,128], index: 5, kind: input, shape index: {}]
  %s6 = inlined_call_operand.hbm [shape: bf16[128,256], index: 6, kind: input, shape index: {}]
  %s7 = inlined_call_operand.vmem [shape: f32[1,256], index: 7, kind: input, shape index: {}]
  %s8 = inlined_call_operand.hbm [shape: bf16[128,1024], index: 8, kind: input, shape index: {}]
  %s9 = inlined_call_operand.hbm [shape: f32[4,1024], index: 9, kind: input, shape index: {}]
  %s10 = inlined_call_operand.hbm [shape: bf16[1024,512], index: 10, kind: input, shape index: {}]
  %s11 = inlined_call_operand.hbm [shape: f32[4,512], index: 11, kind: input, shape index: {}]
  %s12 = inlined_call_operand.hbm [shape: bf16[512,128], index: 12, kind: input, shape index: {}]
  %s13 = inlined_call_operand.hbm [shape: f32[4,128], index: 13, kind: input, shape index: {}]
  %s14 = inlined_call_operand.hbm [shape: bf16[128,128], index: 14, kind: input, shape index: {}]
  %s15 = inlined_call_operand.hbm [shape: f32[4,128], index: 15, kind: input, shape index: {}]
  %s16 = inlined_call_operand.hbm [shape: bf16[128,256], index: 16, kind: input, shape index: {}]
  %s17 = inlined_call_operand.vmem [shape: f32[4,256], index: 17, kind: input, shape index: {}]
  %s18 = inlined_call_operand.hbm [shape: bf16[256,128], index: 18, kind: input, shape index: {}]
  %s19 = inlined_call_operand.hbm [shape: f32[4,128], index: 19, kind: input, shape index: {}]
  %s20 = inlined_call_operand.hbm [shape: bf16[128,256], index: 20, kind: input, shape index: {}]
  %s21 = inlined_call_operand.vmem [shape: f32[4,256], index: 21, kind: input, shape index: {}]
  %s22 = inlined_call_operand.hbm [shape: bf16[256,128], index: 22, kind: input, shape index: {}]
  %s23 = inlined_call_operand.vmem [shape: f32[4,128], index: 23, kind: input, shape index: {}]
  %s24 = inlined_call_operand.hbm [shape: f32[2,128], index: 24, kind: output, shape index: {0}]
  %s25 = inlined_call_operand.hbm [shape: f32[12,128], index: 25, kind: output, shape index: {1}]
  %26 = xla_tuple %s24, %s25
  %s27 = sld [smem:[#allocation0]]
  $region178: #{tpu_custom_call.1} parent=0
    _
  %s29 = ssub.s32 1, %s27
  %s30 = scalar_select 0, %s29, %s27
  $region1: #{tpu_custom_call.1} parent=0
    #allocation2 [shape = 'u8[8192]{0}', space=vmem, size = 0x2000, scoped, tag = 'input window, operand 0, single buffered']
    #allocation3 [shape = 's32[1]{0}', space=sflag, size = 0x4, scoped, tag = 'scoped memory for tpu_custom_call.1']
    #allocation4 [shape = 's32[1]{0}', space=sflag, size = 0x4, scoped, tag = 'scoped memory for tpu_custom_call.1']
    #allocation5 [shape = 'u8[2048]{0}', space=vmem, size = 0x800, scoped, tag = 'input window, operand 5, single buffered']
    #allocation6 [shape = 's32[1]{0}', space=sflag, size = 0x4, scoped, tag = 'scoped memory for tpu_custom_call.1']
    #allocation7 [shape = 'u8[65536]{0}', space=vmem, size = 0x10000, scoped, tag = 'input window, operand 6, single buffered']
    #allocation8 [shape = 'u8[262144]{0}', space=vmem, size = 0x40000, scoped, tag = 'input window, operand 8, single buffered']
    #allocation9 [shape = 's32[1]{0}', space=sflag, size = 0x4, scoped, tag = 'scoped memory for tpu_custom_call.1']
    #allocation10 [shape = 'u8[16384]{0}', space=vmem, size = 0x4000, scoped, tag = 'input window, operand 9, single buffered']
    #allocation11 [shape = 'u8[1048576]{0}', space=vmem, size = 0x100000, scoped, tag = 'input window, operand 10, single buffered']
    #allocation12 [shape = 's32[1]{0}', space=sflag, size = 0x4, scoped, tag = 'scoped memory for tpu_custom_call.1']
    #allocation13 [shape = 'u8[8192]{0}', space=vmem, size = 0x2000, scoped, tag = 'input window, operand 11, single buffered']
    #allocation14 [shape = 'u8[131072]{0}', space=vmem, size = 0x20000, scoped, tag = 'input window, operand 12, single buffered']
    #allocation15 [shape = 's32[1]{0}', space=sflag, size = 0x4, scoped, tag = 'scoped memory for tpu_custom_call.1']
    #allocation16 [shape = 'u8[2048]{0}', space=vmem, size = 0x800, scoped, tag = 'input window, operand 13, single buffered']
    #allocation17 [shape = 'u8[32768]{0}', space=vmem, size = 0x8000, scoped, tag = 'input window, operand 14, single buffered']
    #allocation18 [shape = 's32[1]{0}', space=sflag, size = 0x4, scoped, tag = 'scoped memory for tpu_custom_call.1']
    #allocation19 [shape = 'u8[2048]{0}', space=vmem, size = 0x800, scoped, tag = 'input window, operand 15, single buffered']
    #allocation20 [shape = 'u8[65536]{0}', space=vmem, size = 0x10000, scoped, tag = 'input window, operand 16, single buffered']
    #allocation21 [shape = 's32[1]{0}', space=sflag, size = 0x4, scoped, tag = 'scoped memory for tpu_custom_call.1']
    #allocation22 [shape = 'u8[65536]{0}', space=vmem, size = 0x10000, scoped, tag = 'input window, operand 18, single buffered']
    #allocation23 [shape = 'u8[2048]{0}', space=vmem, size = 0x800, scoped, tag = 'input window, operand 19, single buffered']
    #allocation24 [shape = 's32[1]{0}', space=sflag, size = 0x4, scoped, tag = 'scoped memory for tpu_custom_call.1']
    #allocation25 [shape = 'u8[65536]{0}', space=vmem, size = 0x10000, scoped, tag = 'input window, operand 20, single buffered']
    #allocation26 [shape = 'u8[65536]{0}', space=vmem, size = 0x10000, scoped, tag = 'input window, operand 22, single buffered']
    #allocation27 [shape = 's32[1]{0}', space=sflag, size = 0x4, scoped, tag = 'scoped memory for tpu_custom_call.1']
    #allocation28 [shape = 'u8[1024]{0}', space=vmem, size = 0x400, scoped, tag = 'output window, operand 0, single buffered']
    #allocation29 [shape = 'u8[8192]{0}', space=vmem, size = 0x2000, scoped, tag = 'output window, operand 1, single buffered']
    #allocation30 [shape = 's32[1]{0}', space=sflag, size = 0x4, scoped, tag = 'scoped memory for tpu_custom_call.1']
    %31 = vsyncpa [#allocation3], 0
    %32 = vsyncpa [#allocation6], 0
    %33 = vsyncpa [#allocation9], 0
    %34 = vsyncpa [#allocation12], 0
    %35 = vsyncpa [#allocation15], 0
    %36 = vsyncpa [#allocation18], 0
    %37 = vsyncpa [#allocation21], 0
    %38 = vsyncpa [#allocation24], 0
    %39 = vsyncpa [#allocation27], 0
    %40 = vsyncpa [#allocation4], 0
    %41 = vsyncpa [#allocation30], 0
    // Predicated region
    $region2: #{tpu_custom_call.1} parent=1 // pred_check
      _
    $region3: #{tpu_custom_call.1} parent=1 // pred_check_branch
      %43 = sbr.rel (0) target = $region5
    $region4: #{tpu_custom_call.1} parent=1 // pred_region
      %45 = vsyncadd [#allocation3], 0
      %s46 = sshll.u32 %s0, 4
      %s47 = int_to_ptr.hbm [resolvable:$true] %s46
      %s48 = sshll.u32 [#allocation2], 4
      %s49 = int_to_ptr.vmem [resolvable:$true] %s48
      %54 = dma.hbm_to_vmem [thread:$0]  %s47, 256, %s49, [#allocation3], 128, 128, 8
    $region5: #{tpu_custom_call.1} parent=1 // pred_fallthru
      _
    // Predicated region
    $region6: #{tpu_custom_call.1} parent=1 // pred_check
      _
    $region7: #{tpu_custom_call.1} parent=1 // pred_check_branch
      %56 = sbr.rel (0) target = $region9
    $region8: #{tpu_custom_call.1} parent=1 // pred_region
      _
    $region9: #{tpu_custom_call.1} parent=1 // pred_fallthru
      _
    // Predicated region
    $region10: #{tpu_custom_call.1} parent=1 // pred_check
      _
    $region11: #{tpu_custom_call.1} parent=1 // pred_check_branch
      %58 = sbr.rel (0) target = $region13
    $region12: #{tpu_custom_call.1} parent=1 // pred_region
      _
    $region13: #{tpu_custom_call.1} parent=1 // pred_fallthru
      _
    // Predicated region
    $region14: #{tpu_custom_call.1} parent=1 // pred_check
      _
    $region15: #{tpu_custom_call.1} parent=1 // pred_check_branch
      %60 = sbr.rel (0) target = $region17
    $region16: #{tpu_custom_call.1} parent=1 // pred_region
      _
    $region17: #{tpu_custom_call.1} parent=1 // pred_fallthru
      _
    // Predicated region
    $region18: #{tpu_custom_call.1} parent=1 // pred_check
      _
    $region19: #{tpu_custom_call.1} parent=1 // pred_check_branch
      %62 = sbr.rel (0) target = $region21
    $region20: #{tpu_custom_call.1} parent=1 // pred_region
      _
    $region21: #{tpu_custom_call.1} parent=1 // pred_fallthru
      _
    // Predicated region
    $region22: #{tpu_custom_call.1} parent=1 // pred_check
      _
    $region23: #{tpu_custom_call.1} parent=1 // pred_check_branch
      %64 = sbr.rel (0) target = $region25
    $region24: #{tpu_custom_call.1} parent=1 // pred_region
      %66 = vsyncadd [#allocation6], 0
      %s68 = sshll.u32 %s5, 4
      %s69 = int_to_ptr.hbm [resolvable:$true] %s68
      %s70 = sshll.u32 [#allocation5], 4
      %s71 = int_to_ptr.vmem [resolvable:$true] %s70
      %73 = dma.hbm_to_vmem [thread:$0]  %s69, 64, %s71, [#allocation6]
    $region25: #{tpu_custom_call.1} parent=1 // pred_fallthru
      _
    // Predicated region
    $region26: #{tpu_custom_call.1} parent=1 // pred_check
      _
    $region27: #{tpu_custom_call.1} parent=1 // pred_check_branch
      %75 = sbr.rel (0) target = $region29
    $region28: #{tpu_custom_call.1} parent=1 // pred_region
      %77 = vsyncadd [#allocation6], 0
      %s78 = sshll.u32 %s6, 4
      %s79 = int_to_ptr.hbm [resolvable:$true] %s78
      %s80 = sshll.u32 [#allocation7], 4
      %s81 = int_to_ptr.vmem [resolvable:$true] %s80
      %86 = dma.hbm_to_vmem [thread:$0]  %s79, 2048, %s81, [#allocation6], 128, 128, 8
    $region29: #{tpu_custom_call.1} parent=1 // pred_fallthru
      _
    // Predicated region
    $region30: #{tpu_custom_call.1} parent=1 // pred_check
      _
    $region31: #{tpu_custom_call.1} parent=1 // pred_check_branch
      %88 = sbr.rel (0) target = $region33
    $region32: #{tpu_custom_call.1} parent=1 // pred_region
      _
    $region33: #{tpu_custom_call.1} parent=1 // pred_fallthru
      _
    // Predicated region
    $region34: #{tpu_custom_call.1} parent=1 // pred_check
      _
    $region35: #{tpu_custom_call.1} parent=1 // pred_check_branch
      %90 = sbr.rel (0) target = $region37
    $region36: #{tpu_custom_call.1} parent=1 // pred_region
      %92 = vsyncadd [#allocation9], 0
      %s93 = sshll.u32 %s8, 4
      %s94 = int_to_ptr.hbm [resolvable:$true] %s93
      %s95 = sshll.u32 [#allocation8], 4
      %s96 = int_to_ptr.vmem [resolvable:$true] %s95
      %101 = dma.hbm_to_vmem [thread:$0]  %s94, 8192, %s96, [#allocation9], 512, 512, 32
    $region37: #{tpu_custom_call.1} parent=1 // pred_fallthru
      _
    // Predicated region
    $region38: #{tpu_custom_call.1} parent=1 // pred_check
      _
    $region39: #{tpu_custom_call.1} parent=1 // pred_check_branch
      %103 = sbr.rel (0) target = $region41
    $region40: #{tpu_custom_call.1} parent=1 // pred_region
      %105 = vsyncadd [#allocation9], 0
      %s107 = sshll.u32 %s9, 4
      %s108 = int_to_ptr.hbm [resolvable:$true] %s107
      %s109 = sshll.u32 [#allocation10], 4
      %s110 = int_to_ptr.vmem [resolvable:$true] %s109
      %112 = dma.hbm_to_vmem [thread:$0]  %s108, 512, %s110, [#allocation9]
    $region41: #{tpu_custom_call.1} parent=1 // pred_fallthru
      _
    // Predicated region
    $region42: #{tpu_custom_call.1} parent=1 // pred_check
      _
    $region43: #{tpu_custom_call.1} parent=1 // pred_check_branch
      %114 = sbr.rel (0) target = $region45
    $region44: #{tpu_custom_call.1} parent=1 // pred_region
      %116 = vsyncadd [#allocation12], 0
      %s117 = sshll.u32 %s10, 4
      %s118 = int_to_ptr.hbm [resolvable:$true] %s117
      %s119 = sshll.u32 [#allocation11], 4
      %s120 = int_to_ptr.vmem [resolvable:$true] %s119
      %125 = dma.hbm_to_vmem [thread:$0]  %s118, 32768, %s120, [#allocation12], 256, 256, 16
    $region45: #{tpu_custom_call.1} parent=1 // pred_fallthru
      _
    // Predicated region
    $region46: #{tpu_custom_call.1} parent=1 // pred_check
      _
    $region47: #{tpu_custom_call.1} parent=1 // pred_check_branch
      %127 = sbr.rel (0) target = $region49
    $region48: #{tpu_custom_call.1} parent=1 // pred_region
      %129 = vsyncadd [#allocation12], 0
      %s131 = sshll.u32 %s11, 4
      %s132 = int_to_ptr.hbm [resolvable:$true] %s131
      %s133 = sshll.u32 [#allocation13], 4
      %s134 = int_to_ptr.vmem [resolvable:$true] %s133
      %136 = dma.hbm_to_vmem [thread:$0]  %s132, 256, %s134, [#allocation12]
    $region49: #{tpu_custom_call.1} parent=1 // pred_fallthru
      _
    // Predicated region
    $region50: #{tpu_custom_call.1} parent=1 // pred_check
      _
    $region51: #{tpu_custom_call.1} parent=1 // pred_check_branch
      %138 = sbr.rel (0) target = $region53
    $region52: #{tpu_custom_call.1} parent=1 // pred_region
      %140 = vsyncadd [#allocation15], 0
      %s141 = sshll.u32 %s12, 4
      %s142 = int_to_ptr.hbm [resolvable:$true] %s141
      %s143 = sshll.u32 [#allocation14], 4
      %s144 = int_to_ptr.vmem [resolvable:$true] %s143
      %149 = dma.hbm_to_vmem [thread:$0]  %s142, 4096, %s144, [#allocation15], 64, 64, 4
    $region53: #{tpu_custom_call.1} parent=1 // pred_fallthru
      _
    // Predicated region
    $region54: #{tpu_custom_call.1} parent=1 // pred_check
      _
    $region55: #{tpu_custom_call.1} parent=1 // pred_check_branch
      %151 = sbr.rel (0) target = $region57
    $region56: #{tpu_custom_call.1} parent=1 // pred_region
      %153 = vsyncadd [#allocation15], 0
      %s155 = sshll.u32 %s13, 4
      %s156 = int_to_ptr.hbm [resolvable:$true] %s155
      %s157 = sshll.u32 [#allocation16], 4
      %s158 = int_to_ptr.vmem [resolvable:$true] %s157
      %160 = dma.hbm_to_vmem [thread:$0]  %s156, 64, %s158, [#allocation15]
    $region57: #{tpu_custom_call.1} parent=1 // pred_fallthru
      _
    // Predicated region
    $region58: #{tpu_custom_call.1} parent=1 // pred_check
      _
    $region59: #{tpu_custom_call.1} parent=1 // pred_check_branch
      %162 = sbr.rel (0) target = $region61
    $region60: #{tpu_custom_call.1} parent=1 // pred_region
      %164 = vsyncadd [#allocation18], 0
      %s165 = sshll.u32 %s14, 4
      %s166 = int_to_ptr.hbm [resolvable:$true] %s165
      %s167 = sshll.u32 [#allocation17], 4
      %s168 = int_to_ptr.vmem [resolvable:$true] %s167
      %173 = dma.hbm_to_vmem [thread:$0]  %s166, 1024, %s168, [#allocation18], 64, 64, 4
    $region61: #{tpu_custom_call.1} parent=1 // pred_fallthru
      _
    // Predicated region
    $region62: #{tpu_custom_call.1} parent=1 // pred_check
      _
    $region63: #{tpu_custom_call.1} parent=1 // pred_check_branch
      %175 = sbr.rel (0) target = $region65
    $region64: #{tpu_custom_call.1} parent=1 // pred_region
      %177 = vsyncadd [#allocation18], 0
      %s179 = sshll.u32 %s15, 4
      %s180 = int_to_ptr.hbm [resolvable:$true] %s179
      %s181 = sshll.u32 [#allocation19], 4
      %s182 = int_to_ptr.vmem [resolvable:$true] %s181
      %184 = dma.hbm_to_vmem [thread:$0]  %s180, 64, %s182, [#allocation18]
    $region65: #{tpu_custom_call.1} parent=1 // pred_fallthru
      _
    // Predicated region
    $region66: #{tpu_custom_call.1} parent=1 // pred_check
      _
    $region67: #{tpu_custom_call.1} parent=1 // pred_check_branch
      %186 = sbr.rel (0) target = $region69
    $region68: #{tpu_custom_call.1} parent=1 // pred_region
      %188 = vsyncadd [#allocation21], 0
      %s189 = sshll.u32 %s16, 4
      %s190 = int_to_ptr.hbm [resolvable:$true] %s189
      %s191 = sshll.u32 [#allocation20], 4
      %s192 = int_to_ptr.vmem [resolvable:$true] %s191
      %197 = dma.hbm_to_vmem [thread:$0]  %s190, 2048, %s192, [#allocation21], 128, 128, 8
    $region69: #{tpu_custom_call.1} parent=1 // pred_fallthru
      _
    // Predicated region
    $region70: #{tpu_custom_call.1} parent=1 // pred_check
      _
    $region71: #{tpu_custom_call.1} parent=1 // pred_check_branch
      %199 = sbr.rel (0) target = $region73
    $region72: #{tpu_custom_call.1} parent=1 // pred_region
      _
    $region73: #{tpu_custom_call.1} parent=1 // pred_fallthru
      _
    // Predicated region
    $region74: #{tpu_custom_call.1} parent=1 // pred_check
      _
    $region75: #{tpu_custom_call.1} parent=1 // pred_check_branch
      %201 = sbr.rel (0) target = $region77
    $region76: #{tpu_custom_call.1} parent=1 // pred_region
      %203 = vsyncadd [#allocation21], 0
      %s204 = sshll.u32 %s18, 4
      %s205 = int_to_ptr.hbm [resolvable:$true] %s204
      %s206 = sshll.u32 [#allocation22], 4
      %s207 = int_to_ptr.vmem [resolvable:$true] %s206
      %212 = dma.hbm_to_vmem [thread:$0]  %s205, 2048, %s207, [#allocation21], 64, 64, 4
    $region77: #{tpu_custom_call.1} parent=1 // pred_fallthru
      _
    // Predicated region
    $region78: #{tpu_custom_call.1} parent=1 // pred_check
      _
    $region79: #{tpu_custom_call.1} parent=1 // pred_check_branch
      %214 = sbr.rel (0) target = $region81
    $region80: #{tpu_custom_call.1} parent=1 // pred_region
      %216 = vsyncadd [#allocation24], 0
      %s218 = sshll.u32 %s19, 4
      %s219 = int_to_ptr.hbm [resolvable:$true] %s218
      %s220 = sshll.u32 [#allocation23], 4
      %s221 = int_to_ptr.vmem [resolvable:$true] %s220
      %223 = dma.hbm_to_vmem [thread:$0]  %s219, 64, %s221, [#allocation24]
    $region81: #{tpu_custom_call.1} parent=1 // pred_fallthru
      _
    // Predicated region
    $region82: #{tpu_custom_call.1} parent=1 // pred_check
      _
    $region83: #{tpu_custom_call.1} parent=1 // pred_check_branch
      %225 = sbr.rel (0) target = $region85
    $region84: #{tpu_custom_call.1} parent=1 // pred_region
      %227 = vsyncadd [#allocation24], 0
      %s228 = sshll.u32 %s20, 4
      %s229 = int_to_ptr.hbm [resolvable:$true] %s228
      %s230 = sshll.u32 [#allocation25], 4
      %s231 = int_to_ptr.vmem [resolvable:$true] %s230
      %236 = dma.hbm_to_vmem [thread:$0]  %s229, 2048, %s231, [#allocation24], 128, 128, 8
    $region85: #{tpu_custom_call.1} parent=1 // pred_fallthru
      _
    // Predicated region
    $region86: #{tpu_custom_call.1} parent=1 // pred_check
      _
    $region87: #{tpu_custom_call.1} parent=1 // pred_check_branch
      %238 = sbr.rel (0) target = $region89
    $region88: #{tpu_custom_call.1} parent=1 // pred_region
      _
    $region89: #{tpu_custom_call.1} parent=1 // pred_fallthru
      _
    // Predicated region
    $region90: #{tpu_custom_call.1} parent=1 // pred_check
      _
    $region91: #{tpu_custom_call.1} parent=1 // pred_check_branch
      %240 = sbr.rel (0) target = $region93
    $region92: #{tpu_custom_call.1} parent=1 // pred_region
      %242 = vsyncadd [#allocation27], 0
      %s243 = sshll.u32 %s22, 4
      %s244 = int_to_ptr.hbm [resolvable:$true] %s243
      %s245 = sshll.u32 [#allocation26], 4
      %s246 = int_to_ptr.vmem [resolvable:$true] %s245
      %251 = dma.hbm_to_vmem [thread:$0]  %s244, 2048, %s246, [#allocation27], 64, 64, 4
    $region93: #{tpu_custom_call.1} parent=1 // pred_fallthru
      _
    // Predicated region
    $region94: #{tpu_custom_call.1} parent=1 // pred_check
      _
    $region95: #{tpu_custom_call.1} parent=1 // pred_check_branch
      %253 = sbr.rel (0) target = $region97
    $region96: #{tpu_custom_call.1} parent=1 // pred_region
      _
    $region97: #{tpu_custom_call.1} parent=1 // pred_fallthru
      _
    // Predicated region
    $region98: #{tpu_custom_call.1} parent=1 // pred_check
      _
    $region99: #{tpu_custom_call.1} parent=1 // pred_check_branch
      %255 = sbr.rel (0) target = $region101
    $region100: #{tpu_custom_call.1} parent=1 // pred_region
      %257 = dma.done [#allocation3], 256
    $region101: #{tpu_custom_call.1} parent=1 // pred_fallthru
      _
    // Predicated region
    $region102: #{tpu_custom_call.1} parent=1 // pred_check
      _
    $region103: #{tpu_custom_call.1} parent=1 // pred_check_branch
      %259 = sbr.rel (0) target = $region105
    $region104: #{tpu_custom_call.1} parent=1 // pred_region
      %261 = dma.done [#allocation6], 64
    $region105: #{tpu_custom_call.1} parent=1 // pred_fallthru
      _
    // Predicated region
    $region106: #{tpu_custom_call.1} parent=1 // pred_check
      _
    $region107: #{tpu_custom_call.1} parent=1 // pred_check_branch
      %263 = sbr.rel (0) target = $region109
    $region108: #{tpu_custom_call.1} parent=1 // pred_region
      %265 = dma.done [#allocation6], 2048
    $region109: #{tpu_custom_call.1} parent=1 // pred_fallthru
      _
    // Predicated region
    $region110: #{tpu_custom_call.1} parent=1 // pred_check
      _
    $region111: #{tpu_custom_call.1} parent=1 // pred_check_branch
      %267 = sbr.rel (0) target = $region113
    $region112: #{tpu_custom_call.1} parent=1 // pred_region
      %269 = dma.done [#allocation9], 8192
    $region113: #{tpu_custom_call.1} parent=1 // pred_fallthru
      _
    // Predicated region
    $region114: #{tpu_custom_call.1} parent=1 // pred_check
      _
    $region115: #{tpu_custom_call.1} parent=1 // pred_check_branch
      %271 = sbr.rel (0) target = $region117
    $region116: #{tpu_custom_call.1} parent=1 // pred_region
      %273 = dma.done [#allocation9], 512
    $region117: #{tpu_custom_call.1} parent=1 // pred_fallthru
      _
    // Predicated region
    $region118: #{tpu_custom_call.1} parent=1 // pred_check
      _
    $region119: #{tpu_custom_call.1} parent=1 // pred_check_branch
      %275 = sbr.rel (0) target = $region121
    $region120: #{tpu_custom_call.1} parent=1 // pred_region
      %277 = dma.done [#allocation12], 32768
    $region121: #{tpu_custom_call.1} parent=1 // pred_fallthru
      _
    // Predicated region
    $region122: #{tpu_custom_call.1} parent=1 // pred_check
      _
    $region123: #{tpu_custom_call.1} parent=1 // pred_check_branch
      %279 = sbr.rel (0) target = $region125
    $region124: #{tpu_custom_call.1} parent=1 // pred_region
      %281 = dma.done [#allocation12], 256
    $region125: #{tpu_custom_call.1} parent=1 // pred_fallthru
      _
    // Predicated region
    $region126: #{tpu_custom_call.1} parent=1 // pred_check
      _
    $region127: #{tpu_custom_call.1} parent=1 // pred_check_branch
      %283 = sbr.rel (0) target = $region129
    $region128: #{tpu_custom_call.1} parent=1 // pred_region
      %285 = dma.done [#allocation15], 4096
    $region129: #{tpu_custom_call.1} parent=1 // pred_fallthru
      _
    // Predicated region
    $region130: #{tpu_custom_call.1} parent=1 // pred_check
      _
    $region131: #{tpu_custom_call.1} parent=1 // pred_check_branch
      %287 = sbr.rel (0) target = $region133
    $region132: #{tpu_custom_call.1} parent=1 // pred_region
      %289 = dma.done [#allocation15], 64
    $region133: #{tpu_custom_call.1} parent=1 // pred_fallthru
      _
    // Predicated region
    $region134: #{tpu_custom_call.1} parent=1 // pred_check
      _
    $region135: #{tpu_custom_call.1} parent=1 // pred_check_branch
      %291 = sbr.rel (0) target = $region137
    $region136: #{tpu_custom_call.1} parent=1 // pred_region
      %293 = dma.done [#allocation18], 1024
    $region137: #{tpu_custom_call.1} parent=1 // pred_fallthru
      _
    // Predicated region
    $region138: #{tpu_custom_call.1} parent=1 // pred_check
      _
    $region139: #{tpu_custom_call.1} parent=1 // pred_check_branch
      %295 = sbr.rel (0) target = $region141
    $region140: #{tpu_custom_call.1} parent=1 // pred_region
      %297 = dma.done [#allocation18], 64
    $region141: #{tpu_custom_call.1} parent=1 // pred_fallthru
      _
    // Predicated region
    $region142: #{tpu_custom_call.1} parent=1 // pred_check
      _
    $region143: #{tpu_custom_call.1} parent=1 // pred_check_branch
      %299 = sbr.rel (0) target = $region145
    $region144: #{tpu_custom_call.1} parent=1 // pred_region
      %301 = dma.done [#allocation21], 2048
    $region145: #{tpu_custom_call.1} parent=1 // pred_fallthru
      _
    // Predicated region
    $region146: #{tpu_custom_call.1} parent=1 // pred_check
      _
    $region147: #{tpu_custom_call.1} parent=1 // pred_check_branch
      %303 = sbr.rel (0) target = $region149
    $region148: #{tpu_custom_call.1} parent=1 // pred_region
      %305 = dma.done [#allocation21], 2048
    $region149: #{tpu_custom_call.1} parent=1 // pred_fallthru
      _
    // Predicated region
    $region150: #{tpu_custom_call.1} parent=1 // pred_check
      _
    $region151: #{tpu_custom_call.1} parent=1 // pred_check_branch
      %307 = sbr.rel (0) target = $region153
    $region152: #{tpu_custom_call.1} parent=1 // pred_region
      %309 = dma.done [#allocation24], 64
    $region153: #{tpu_custom_call.1} parent=1 // pred_fallthru
      _
    // Predicated region
    $region154: #{tpu_custom_call.1} parent=1 // pred_check
      _
    $region155: #{tpu_custom_call.1} parent=1 // pred_check_branch
      %311 = sbr.rel (0) target = $region157
    $region156: #{tpu_custom_call.1} parent=1 // pred_region
      %313 = dma.done [#allocation24], 2048
    $region157: #{tpu_custom_call.1} parent=1 // pred_fallthru
      _
    // Predicated region
    $region158: #{tpu_custom_call.1} parent=1 // pred_check
      _
    $region159: #{tpu_custom_call.1} parent=1 // pred_check_branch
      %315 = sbr.rel (0) target = $region161
    $region160: #{tpu_custom_call.1} parent=1 // pred_region
      %317 = dma.done [#allocation27], 2048
    $region161: #{tpu_custom_call.1} parent=1 // pred_fallthru
      _
    %v319 = vld [vmem:[#allocation2] sm:$0xff]
    %v320 = vld [vmem:[#allocation2 + $0x8] sm:$0xf]
    %v321 = vld [vmem:[%s1] sm:$0xf]
    %v322 = vld [vmem:[%s1 + $0x4] sm:$0x3]
    %v323 = vld [vmem:[%s2] sm:$0x1]
    %v324 = vld [vmem:[%s3] sm:$0x3]
    %v325 = vld [vmem:[#allocation5] sm:$0x7]
    %v326 = vpack.c.bf16 %v320, %v319
    %vm327 = vcmask 97280
    %v329 = vsel %vm327, %v323, 0
    %vm331 = vcmask 1045504
    %v333 = vsel %vm331, %v326, 0
    %335 = vmatpush.bf16.msra.mxu0 0
    %336 = vmatpush.bf16.msra.mxu0 0
    %337 = vmatpush.bf16.msra.mxu0 0
    %338 = vmatpush.bf16.msra.mxu0 0
    %339 = vmatpush.bf16.msra.mxu0 0
    %340 = vmatpush.bf16.msra.mxu0 0
    %341 = vmatpush.bf16.msra.mxu0 0
    %342 = vmatpush.bf16.msra.mxu0 %v333
    %343 = vmatmul.bf16.gmra.mxu0 %v329
    %v344 = vpop.f32.mrf.mxu0
    %v345 = vadd.f32 0.0, %v344
    %v346 = vpop.f32.mrf.mxu0
    %347 = vdwg.mxu0
    %349 = vset.pattern.permute.xlu0 0
    %350 = vperm.xlu0 %349, %v324
    %v351 = vpop.permute.xlu0 %350
    %v353 = vmul.f32 %v345, %v351
    %v354 = vpack.c.bf16 %v353, %v353
    %v357 = vunpack.c.l.b16 %v321
    %v358 = vunpack.c.l.b16 %v322
    %v359 = vpack.c.b16 %v358, %v357
    %vm360 = vcmask 15360
    %v362 = vsel %vm360, %v359, 0
    %vm364 = vcmask 1040384
    %v366 = vsel %vm364, %v354, 0
    %368 = vmatpush.bf16.msra.mxu0 0
    %369 = vmatpush.bf16.msra.mxu0 0
    %370 = vmatpush.bf16.msra.mxu0 0
    %371 = vmatpush.bf16.msra.mxu0 0
    %372 = vmatpush.bf16.msra.mxu0 0
    %373 = vmatpush.bf16.msra.mxu0 0
    %374 = vmatpush.bf16.msra.mxu0 0
    %375 = vmatpush.bf16.msra.mxu0 %v366
    %376 = vmatmul.bf16.gmra.mxu0 %v362
    %v377 = vpop.f32.mrf.mxu0
    %v378 = vadd.f32 0.0, %v377
    %v379 = vpop.f32.mrf.mxu0
    %v380 = vadd.f32 0.0, %v379
    %381 = vdwg.mxu0
    %v382 = vperm.slane %v325, 2
    %v383 = vmul.f32 %v378, %v382
    %v384 = vmul.f32 %v380, %v382
    %v385 = vsub.f32 %v319, %v383
    %v386 = vsub.f32 %v320, %v384
    %v387 = vmul.f32 %v385, %v385
    %v388 = vmul.f32 %v386, %v386
    %v389 = vpack.c.bf16 %v388, %v387
    %v391 = vsel %vm331, %v389, 0
    %393 = vmatpush.bf16.msra.mxu0 0
    %394 = vmatpush.bf16.msra.mxu0 0
    %395 = vmatpush.bf16.msra.mxu0 0
    %396 = vmatpush.bf16.msra.mxu0 0
    %397 = vmatpush.bf16.msra.mxu0 0
    %398 = vmatpush.bf16.msra.mxu0 0
    %399 = vmatpush.bf16.msra.mxu0 0
    %400 = vmatpush.bf16.msra.mxu0 %v391
    %401 = vmatmul.bf16.gmra.mxu0 %v329
    %v402 = vpop.f32.mrf.mxu0
    %v403 = vadd.f32 0.0, %v402
    %v404 = vpop.f32.mrf.mxu0
    %405 = vdwg.mxu0
    %v406 = vmul.f32 %v403, %v351
    %v407 = vperm.slane %v325, 0
    %v408 = vmul.f32 %v407, %v385
    %v409 = vmul.f32 %v407, %v386
    %v410 = vpack.c.bf16 %v406, %v406
    %v412 = vsel %vm364, %v410, 0
    %414 = vmatpush.bf16.msra.mxu0 0
    %415 = vmatpush.bf16.msra.mxu0 0
    %416 = vmatpush.bf16.msra.mxu0 0
    %417 = vmatpush.bf16.msra.mxu0 0
    %418 = vmatpush.bf16.msra.mxu0 0
    %419 = vmatpush.bf16.msra.mxu0 0
    %420 = vmatpush.bf16.msra.mxu0 0
    %421 = vmatpush.bf16.msra.mxu0 %v412
    %422 = vmatmul.bf16.gmra.mxu0 %v362
    %v423 = vpop.f32.mrf.mxu0
    %v424 = vadd.f32 1e-05, %v423
    %v425 = vpop.f32.mrf.mxu0
    %v426 = vadd.f32 1e-05, %v425
    %427 = vdwg.mxu0
    %v428 = vrsqrt.pop %v424
    %v429 = vmul.f32 %v428, %v424
    %v430 = vmul.f32 %v429, %v428
    %v431 = vmul.f32 0.5, %v430
    %v432 = vsub.f32 1.5, %v431
    %v433 = vmul.f32 %v428, %v432
    %vm434 = vweird.f32 %v424
    %vm435 = vweird.f32 %v428
    %vm436 = vmor %vm434, %vm435
    %v437 = vsel %vm436, %v428, %v433
    %v438 = vrsqrt.pop %v426
    %v439 = vmul.f32 %v438, %v426
    %v440 = vmul.f32 %v439, %v438
    %v441 = vmul.f32 0.5, %v440
    %v442 = vsub.f32 1.5, %v441
    %v443 = vmul.f32 %v438, %v442
    %vm444 = vweird.f32 %v426
    %vm445 = vweird.f32 %v438
    %vm446 = vmor %vm444, %vm445
    %v447 = vsel %vm446, %v438, %v443
    %v448 = vmul.f32 %v408, %v437
    %v449 = vmul.f32 %v409, %v447
    %v450 = vperm.slane %v325, 1
    %v451 = vadd.f32 %v448, %v450
    %v452 = vadd.f32 %v449, %v450
    %v453 = vld [vmem:[#allocation7] sm:$0xff]
    %v454 = vld [vmem:[#allocation7 + $0x8] sm:$0xff]
    %v455 = vld [vmem:[#allocation7 + $0x10] sm:$0xff]
    %v456 = vld [vmem:[#allocation7 + $0x18] sm:$0xff]
    %v457 = vld [vmem:[#allocation7 + $0x20] sm:$0xff]
    %v458 = vld [vmem:[#allocation7 + $0x28] sm:$0xff]
    %v459 = vld [vmem:[#allocation7 + $0x30] sm:$0xff]
    %v460 = vld [vmem:[#allocation7 + $0x38] sm:$0xff]
    %v461 = vld [vmem:[#allocation7 + $0x40] sm:$0xff]
    %v462 = vld [vmem:[#allocation7 + $0x48] sm:$0xff]
    %v463 = vld [vmem:[#allocation7 + $0x50] sm:$0xff]
    %v464 = vld [vmem:[#allocation7 + $0x58] sm:$0xff]
    %v465 = vld [vmem:[#allocation7 + $0x60] sm:$0xff]
    %v466 = vld [vmem:[#allocation7 + $0x68] sm:$0xff]
    %v467 = vld [vmem:[#allocation7 + $0x70] sm:$0xff]
    %v468 = vld [vmem:[#allocation7 + $0x78] sm:$0xff]
    %v469 = vpack.c.bf16 %v452, %v451
    %v470 = vld [vmem:[%s7] sm:$0x3]
    %v472 = vperm.slane %v470, 0
    %v473 = vperm.slane %v470, 1
    %v492 = vunpack.c.l.b16 %v453
    %v493 = vunpack.c.h.b16 %v453
    %v494 = vunpack.c.l.b16 %v454
    %v495 = vunpack.c.h.b16 %v454
    %v496 = vunpack.c.l.b16 %v455
    %v497 = vunpack.c.h.b16 %v455
    %v498 = vunpack.c.l.b16 %v456
    %v499 = vunpack.c.h.b16 %v456
    %v500 = vunpack.c.l.b16 %v457
    %v501 = vunpack.c.h.b16 %v457
    %v502 = vunpack.c.l.b16 %v458
    %v503 = vunpack.c.h.b16 %v458
    %v504 = vunpack.c.l.b16 %v459
    %v505 = vunpack.c.h.b16 %v459
    %v506 = vunpack.c.l.b16 %v460
    %v507 = vunpack.c.h.b16 %v460
    %v508 = vunpack.c.l.b16 %v461
    %v509 = vunpack.c.h.b16 %v461
    %v510 = vunpack.c.l.b16 %v462
    %v511 = vunpack.c.h.b16 %v462
    %v512 = vunpack.c.l.b16 %v463
    %v513 = vunpack.c.h.b16 %v463
    %v514 = vunpack.c.l.b16 %v464
    %v515 = vunpack.c.h.b16 %v464
    %v516 = vunpack.c.l.b16 %v465
    %v517 = vunpack.c.h.b16 %v465
    %v518 = vunpack.c.l.b16 %v466
    %v519 = vunpack.c.h.b16 %v466
    %v520 = vunpack.c.l.b16 %v467
    %v521 = vunpack.c.h.b16 %v467
    %v522 = vunpack.c.l.b16 %v468
    %v523 = vunpack.c.h.b16 %v468
    %v524 = vpack.c.b16 %v494, %v492
    %v525 = vpack.c.b16 %v495, %v493
    %v526 = vpack.c.b16 %v498, %v496
    %v527 = vpack.c.b16 %v499, %v497
    %v528 = vpack.c.b16 %v502, %v500
    %v529 = vpack.c.b16 %v503, %v501
    %v530 = vpack.c.b16 %v506, %v504
    %v531 = vpack.c.b16 %v507, %v505
    %v532 = vpack.c.b16 %v510, %v508
    %v533 = vpack.c.b16 %v511, %v509
    %v534 = vpack.c.b16 %v514, %v512
    %v535 = vpack.c.b16 %v515, %v513
    %v536 = vpack.c.b16 %v518, %v516
    %v537 = vpack.c.b16 %v519, %v517
    %v538 = vpack.c.b16 %v522, %v520
    %v539 = vpack.c.b16 %v523, %v521
    %556 = vmatpush.bf16.msra.mxu0 %v538
    %557 = vmatpush.bf16.msra.mxu0 %v536
    %558 = vmatpush.bf16.msra.mxu0 %v534
    %559 = vmatpush.bf16.msra.mxu0 %v532
    %560 = vmatpush.bf16.msra.mxu0 %v530
    %561 = vmatpush.bf16.msra.mxu0 %v528
    %562 = vmatpush.bf16.msra.mxu0 %v526
    %563 = vmatpush.bf16.msra.mxu0 %v524
    %564 = vmatmul.bf16.gmra.mxu0 %v469
    %v565 = vpop.f32.mrf.mxu0
    %v566 = vadd.f32 %v472, %v565
    %v567 = vpop.f32.mrf.mxu0
    %v568 = vadd.f32 %v472, %v567
    %569 = vdwg.mxu0
    %570 = vmatpush.bf16.msra.mxu0 %v539
    %571 = vmatpush.bf16.msra.mxu0 %v537
    %572 = vmatpush.bf16.msra.mxu0 %v535
    %573 = vmatpush.bf16.msra.mxu0 %v533
    %574 = vmatpush.bf16.msra.mxu0 %v531
    %575 = vmatpush.bf16.msra.mxu0 %v529
    %576 = vmatpush.bf16.msra.mxu0 %v527
    %577 = vmatpush.bf16.msra.mxu0 %v525
    %578 = vmatmul.bf16.gmra.mxu0 %v469
    %v579 = vpop.f32.mrf.mxu0
    %v580 = vadd.f32 %v473, %v579
    %v581 = vpop.f32.mrf.mxu0
    %v582 = vadd.f32 %v473, %v581
    %583 = vdwg.mxu0
    %v584 = vmul.f32 %v566, 0.5
    %v585 = vmul.f32 %v580, 0.5
    %v586 = vmul.f32 %v568, 0.5
    %v587 = vmul.f32 %v582, 0.5
    %v588 = vmul.f32 %v566, 0.044715
    %v589 = vmul.f32 %v580, 0.044715
    %v590 = vmul.f32 %v568, 0.044715
    %v591 = vmul.f32 %v582, 0.044715
    %v592 = vmul.f32 %v588, %v566
    %v593 = vmul.f32 %v589, %v580
    %v594 = vmul.f32 %v590, %v568
    %v595 = vmul.f32 %v591, %v582
    %v596 = vmul.f32 %v592, %v566
    %v597 = vmul.f32 %v593, %v580
    %v598 = vmul.f32 %v594, %v568
    %v599 = vmul.f32 %v595, %v582
    %v600 = vadd.f32 %v566, %v596
    %v601 = vadd.f32 %v580, %v597
    %v602 = vadd.f32 %v568, %v598
    %v603 = vadd.f32 %v582, %v599
    %v604 = vmul.f32 %v600, 0.7978846
    %v605 = vmul.f32 %v601, 0.7978846
    %v606 = vmul.f32 %v602, 0.7978846
    %v607 = vmul.f32 %v603, 0.7978846
    %v608 = vtanh.pop %v604
    %v609 = vtanh.pop %v605
    %v610 = vtanh.pop %v606
    %v611 = vtanh.pop %v607
    %v612 = vadd.f32 %v608, 1.0
    %v613 = vadd.f32 %v609, 1.0
    %v614 = vadd.f32 %v610, 1.0
    %v615 = vadd.f32 %v611, 1.0
    %v616 = vmul.f32 %v584, %v612
    %v617 = vmul.f32 %v585, %v613
    %v618 = vmul.f32 %v586, %v614
    %v619 = vmul.f32 %v587, %v615
    %620 = vst [vmem:[#allocation29] sm:$0xff] %v617
    %621 = vst [vmem:[#allocation29 + $0x8] sm:$0xf] %v619
    %v622 = vld [vmem:[%s4] sm:$0xf]
    %v623 = vld [vmem:[%s4 + $0x4] sm:$0x3]
    %v624 = vpack.c.bf16 %v619, %v617
    %v627 = vunpack.c.l.b16 %v622
    %v628 = vunpack.c.l.b16 %v623
    %v629 = vpack.c.b16 %v628, %v627
    %v631 = vsel %vm327, %v629, 0
    %v634 = vsel %vm331, %v624, 0
    %636 = vmatpush.bf16.msra.mxu0 0
    %637 = vmatpush.bf16.msra.mxu0 0
    %638 = vmatpush.bf16.msra.mxu0 0
    %639 = vmatpush.bf16.msra.mxu0 0
    %640 = vmatpush.bf16.msra.mxu0 0
    %641 = vmatpush.bf16.msra.mxu0 0
    %642 = vmatpush.bf16.msra.mxu0 0
    %643 = vmatpush.bf16.msra.mxu0 %v634
    %644 = vmatmul.bf16.gmra.mxu0 %v631
    %v645 = vpop.f32.mrf.mxu0
    %v646 = vadd.f32 %v617, %v645
    %v647 = vpop.f32.mrf.mxu0
    %v648 = vadd.f32 %v619, %v647
    %649 = vdwg.mxu0
    %v650 = vld [vmem:[#allocation8] sm:$0xff]
    %v651 = vld [vmem:[#allocation8 + $0x8] sm:$0xff]
    %v652 = vld [vmem:[#allocation8 + $0x10] sm:$0xff]
    %v653 = vld [vmem:[#allocation8 + $0x18] sm:$0xff]
    %v654 = vld [vmem:[#allocation8 + $0x20] sm:$0xff]
    %v655 = vld [vmem:[#allocation8 + $0x28] sm:$0xff]
    %v656 = vld [vmem:[#allocation8 + $0x30] sm:$0xff]
    %v657 = vld [vmem:[#allocation8 + $0x38] sm:$0xff]
    %v658 = vld [vmem:[#allocation8 + $0x40] sm:$0xff]
    %v659 = vld [vmem:[#allocation8 + $0x48] sm:$0xff]
    %v660 = vld [vmem:[#allocation8 + $0x50] sm:$0xff]
    %v661 = vld [vmem:[#allocation8 + $0x58] sm:$0xff]
    %v662 = vld [vmem:[#allocation8 + $0x60] sm:$0xff]
    %v663 = vld [vmem:[#allocation8 + $0x68] sm:$0xff]
    %v664 = vld [vmem:[#allocation8 + $0x70] sm:$0xff]
    %v665 = vld [vmem:[#allocation8 + $0x78] sm:$0xff]
    %v666 = vld [vmem:[#allocation8 + $0x80] sm:$0xff]
    %v667 = vld [vmem:[#allocation8 + $0x88] sm:$0xff]
    %v668 = vld [vmem:[#allocation8 + $0x90] sm:$0xff]
    %v669 = vld [vmem:[#allocation8 + $0x98] sm:$0xff]
    %v670 = vld [vmem:[#allocation8 + $0xa0] sm:$0xff]
    %v671 = vld [vmem:[#allocation8 + $0xa8] sm:$0xff]
    %v672 = vld [vmem:[#allocation8 + $0xb0] sm:$0xff]
    %v673 = vld [vmem:[#allocation8 + $0xb8] sm:$0xff]
    %v674 = vld [vmem:[#allocation8 + $0xc0] sm:$0xff]
    %v675 = vld [vmem:[#allocation8 + $0xc8] sm:$0xff]
    %v676 = vld [vmem:[#allocation8 + $0xd0] sm:$0xff]
    %v677 = vld [vmem:[#allocation8 + $0xd8] sm:$0xff]
    %v678 = vld [vmem:[#allocation8 + $0xe0] sm:$0xff]
    %v679 = vld [vmem:[#allocation8 + $0xe8] sm:$0xff]
    %v680 = vld [vmem:[#allocation8 + $0xf0] sm:$0xff]
    %v681 = vld [vmem:[#allocation8 + $0xf8] sm:$0xff]
    %v682 = vld [vmem:[#allocation8 + $0x100] sm:$0xff]
    %v683 = vld [vmem:[#allocation8 + $0x108] sm:$0xff]
    %v684 = vld [vmem:[#allocation8 + $0x110] sm:$0xff]
    %v685 = vld [vmem:[#allocation8 + $0x118] sm:$0xff]
    %v686 = vld [vmem:[#allocation8 + $0x120] sm:$0xff]
    %v687 = vld [vmem:[#allocation8 + $0x128] sm:$0xff]
    %v688 = vld [vmem:[#allocation8 + $0x130] sm:$0xff]
    %v689 = vld [vmem:[#allocation8 + $0x138] sm:$0xff]
    %v690 = vld [vmem:[#allocation8 + $0x140] sm:$0xff]
    %v691 = vld [vmem:[#allocation8 + $0x148] sm:$0xff]
    %v692 = vld [vmem:[#allocation8 + $0x150] sm:$0xff]
    %v693 = vld [vmem:[#allocation8 + $0x158] sm:$0xff]
    %v694 = vld [vmem:[#allocation8 + $0x160] sm:$0xff]
    %v695 = vld [vmem:[#allocation8 + $0x168] sm:$0xff]
    %v696 = vld [vmem:[#allocation8 + $0x170] sm:$0xff]
    %v697 = vld [vmem:[#allocation8 + $0x178] sm:$0xff]
    %v698 = vld [vmem:[#allocation8 + $0x180] sm:$0xff]
    %v699 = vld [vmem:[#allocation8 + $0x188] sm:$0xff]
    %v700 = vld [vmem:[#allocation8 + $0x190] sm:$0xff]
    %v701 = vld [vmem:[#allocation8 + $0x198] sm:$0xff]
    %v702 = vld [vmem:[#allocation8 + $0x1a0] sm:$0xff]
    %v703 = vld [vmem:[#allocation8 + $0x1a8] sm:$0xff]
    %v704 = vld [vmem:[#allocation8 + $0x1b0] sm:$0xff]
    %v705 = vld [vmem:[#allocation8 + $0x1b8] sm:$0xff]
    %v706 = vld [vmem:[#allocation8 + $0x1c0] sm:$0xff]
    %v707 = vld [vmem:[#allocation8 + $0x1c8] sm:$0xff]
    %v708 = vld [vmem:[#allocation8 + $0x1d0] sm:$0xff]
    %v709 = vld [vmem:[#allocation8 + $0x1d8] sm:$0xff]
    %v710 = vld [vmem:[#allocation8 + $0x1e0] sm:$0xff]
    %v711 = vld [vmem:[#allocation8 + $0x1e8] sm:$0xff]
    %v712 = vld [vmem:[#allocation8 + $0x1f0] sm:$0xff]
    %v713 = vld [vmem:[#allocation8 + $0x1f8] sm:$0xff]
    %v714 = vld [vmem:[#allocation10] sm:$0xff]
    %v715 = vld [vmem:[#allocation10 + $0x8] sm:$0xff]
    %v716 = vld [vmem:[#allocation10 + $0x10] sm:$0xff]
    %v717 = vld [vmem:[#allocation10 + $0x18] sm:$0xff]
    %v718 = vpack.c.bf16 %v648, %v646
    %v723 = vperm.slane %v714, 0
    %v724 = vperm.slane %v714, 4
    %v725 = vperm.slane %v715, 0
    %v726 = vperm.slane %v715, 4
    %v727 = vperm.slane %v716, 0
    %v728 = vperm.slane %v716, 4
    %v729 = vperm.slane %v717, 0
    %v730 = vperm.slane %v717, 4
    %v739 = vperm.slane %v723, 0
    %v740 = vperm.slane %v724, 0
    %v741 = vperm.slane %v725, 0
    %v742 = vperm.slane %v726, 0
    %v743 = vperm.slane %v727, 0
    %v744 = vperm.slane %v728, 0
    %v745 = vperm.slane %v729, 0
    %v746 = vperm.slane %v730, 0
    %v811 = vunpack.c.l.b16 %v650
    %v812 = vunpack.c.h.b16 %v650
    %v813 = vunpack.c.l.b16 %v651
    %v814 = vunpack.c.h.b16 %v651
    %v815 = vunpack.c.l.b16 %v652
    %v816 = vunpack.c.h.b16 %v652
    %v817 = vunpack.c.l.b16 %v653
    %v818 = vunpack.c.h.b16 %v653
    %v819 = vunpack.c.l.b16 %v654
    %v820 = vunpack.c.h.b16 %v654
    %v821 = vunpack.c.l.b16 %v655
    %v822 = vunpack.c.h.b16 %v655
    %v823 = vunpack.c.l.b16 %v656
    %v824 = vunpack.c.h.b16 %v656
    %v825 = vunpack.c.l.b16 %v657
    %v826 = vunpack.c.h.b16 %v657
    %v827 = vunpack.c.l.b16 %v658
    %v828 = vunpack.c.h.b16 %v658
    %v829 = vunpack.c.l.b16 %v659
    %v830 = vunpack.c.h.b16 %v659
    %v831 = vunpack.c.l.b16 %v660
    %v832 = vunpack.c.h.b16 %v660
    %v833 = vunpack.c.l.b16 %v661
    %v834 = vunpack.c.h.b16 %v661
    %v835 = vunpack.c.l.b16 %v662
    %v836 = vunpack.c.h.b16 %v662
    %v837 = vunpack.c.l.b16 %v663
    %v838 = vunpack.c.h.b16 %v663
    %v839 = vunpack.c.l.b16 %v664
    %v840 = vunpack.c.h.b16 %v664
    %v841 = vunpack.c.l.b16 %v665
    %v842 = vunpack.c.h.b16 %v665
    %v843 = vunpack.c.l.b16 %v666
    %v844 = vunpack.c.h.b16 %v666
    %v845 = vunpack.c.l.b16 %v667
    %v846 = vunpack.c.h.b16 %v667
    %v847 = vunpack.c.l.b16 %v668
    %v848 = vunpack.c.h.b16 %v668
    %v849 = vunpack.c.l.b16 %v669
    %v850 = vunpack.c.h.b16 %v669
    %v851 = vunpack.c.l.b16 %v670
    %v852 = vunpack.c.h.b16 %v670
    %v853 = vunpack.c.l.b16 %v671
    %v854 = vunpack.c.h.b16 %v671
    %v855 = vunpack.c.l.b16 %v672
    %v856 = vunpack.c.h.b16 %v672
    %v857 = vunpack.c.l.b16 %v673
    %v858 = vunpack.c.h.b16 %v673
    %v859 = vunpack.c.l.b16 %v674
    %v860 = vunpack.c.h.b16 %v674
    %v861 = vunpack.c.l.b16 %v675
    %v862 = vunpack.c.h.b16 %v675
    %v863 = vunpack.c.l.b16 %v676
    %v864 = vunpack.c.h.b16 %v676
    %v865 = vunpack.c.l.b16 %v677
    %v866 = vunpack.c.h.b16 %v677
    %v867 = vunpack.c.l.b16 %v678
    %v868 = vunpack.c.h.b16 %v678
    %v869 = vunpack.c.l.b16 %v679
    %v870 = vunpack.c.h.b16 %v679
    %v871 = vunpack.c.l.b16 %v680
    %v872 = vunpack.c.h.b16 %v680
    %v873 = vunpack.c.l.b16 %v681
    %v874 = vunpack.c.h.b16 %v681
    %v875 = vunpack.c.l.b16 %v682
    %v876 = vunpack.c.h.b16 %v682
    %v877 = vunpack.c.l.b16 %v683
    %v878 = vunpack.c.h.b16 %v683
    %v879 = vunpack.c.l.b16 %v684
    %v880 = vunpack.c.h.b16 %v684
    %v881 = vunpack.c.l.b16 %v685
    %v882 = vunpack.c.h.b16 %v685
    %v883 = vunpack.c.l.b16 %v686
    %v884 = vunpack.c.h.b16 %v686
    %v885 = vunpack.c.l.b16 %v687
    %v886 = vunpack.c.h.b16 %v687
    %v887 = vunpack.c.l.b16 %v688
    %v888 = vunpack.c.h.b16 %v688
    %v889 = vunpack.c.l.b16 %v689
    %v890 = vunpack.c.h.b16 %v689
    %v891 = vunpack.c.l.b16 %v690
    %v892 = vunpack.c.h.b16 %v690
    %v893 = vunpack.c.l.b16 %v691
    %v894 = vunpack.c.h.b16 %v691
    %v895 = vunpack.c.l.b16 %v692
    %v896 = vunpack.c.h.b16 %v692
    %v897 = vunpack.c.l.b16 %v693
    %v898 = vunpack.c.h.b16 %v693
    %v899 = vunpack.c.l.b16 %v694
    %v900 = vunpack.c.h.b16 %v694
    %v901 = vunpack.c.l.b16 %v695
    %v902 = vunpack.c.h.b16 %v695
    %v903 = vunpack.c.l.b16 %v696
    %v904 = vunpack.c.h.b16 %v696
    %v905 = vunpack.c.l.b16 %v697
    %v906 = vunpack.c.h.b16 %v697
    %v907 = vunpack.c.l.b16 %v698
    %v908 = vunpack.c.h.b16 %v698
    %v909 = vunpack.c.l.b16 %v699
    %v910 = vunpack.c.h.b16 %v699
    %v911 = vunpack.c.l.b16 %v700
    %v912 = vunpack.c.h.b16 %v700
    %v913 = vunpack.c.l.b16 %v701
    %v914 = vunpack.c.h.b16 %v701
    %v915 = vunpack.c.l.b16 %v702
    %v916 = vunpack.c.h.b16 %v702
    %v917 = vunpack.c.l.b16 %v703
    %v918 = vunpack.c.h.b16 %v703
    %v919 = vunpack.c.l.b16 %v704
    %v920 = vunpack.c.h.b16 %v704
    %v921 = vunpack.c.l.b16 %v705
    %v922 = vunpack.c.h.b16 %v705
    %v923 = vunpack.c.l.b16 %v706
    %v924 = vunpack.c.h.b16 %v706
    %v925 = vunpack.c.l.b16 %v707
    %v926 = vunpack.c.h.b16 %v707
    %v927 = vunpack.c.l.b16 %v708
    %v928 = vunpack.c.h.b16 %v708
    %v929 = vunpack.c.l.b16 %v709
    %v930 = vunpack.c.h.b16 %v709
    %v931 = vunpack.c.l.b16 %v710
    %v932 = vunpack.c.h.b16 %v710
    %v933 = vunpack.c.l.b16 %v711
    %v934 = vunpack.c.h.b16 %v711
    %v935 = vunpack.c.l.b16 %v712
    %v936 = vunpack.c.h.b16 %v712
    %v937 = vunpack.c.l.b16 %v713
    %v938 = vunpack.c.h.b16 %v713
    %v939 = vpack.c.b16 %v819, %v811
    %v940 = vpack.c.b16 %v820, %v812
    %v941 = vpack.c.b16 %v821, %v813
    %v942 = vpack.c.b16 %v822, %v814
    %v943 = vpack.c.b16 %v823, %v815
    %v944 = vpack.c.b16 %v824, %v816
    %v945 = vpack.c.b16 %v825, %v817
    %v946 = vpack.c.b16 %v826, %v818
    %v947 = vpack.c.b16 %v835, %v827
    %v948 = vpack.c.b16 %v836, %v828
    %v949 = vpack.c.b16 %v837, %v829
    %v950 = vpack.c.b16 %v838, %v830
    %v951 = vpack.c.b16 %v839, %v831
    %v952 = vpack.c.b16 %v840, %v832
    %v953 = vpack.c.b16 %v841, %v833
    %v954 = vpack.c.b16 %v842, %v834
    %v955 = vpack.c.b16 %v851, %v843
    %v956 = vpack.c.b16 %v852, %v844
    %v957 = vpack.c.b16 %v853, %v845
    %v958 = vpack.c.b16 %v854, %v846
    %v959 = vpack.c.b16 %v855, %v847
    %v960 = vpack.c.b16 %v856, %v848
    %v961 = vpack.c.b16 %v857, %v849
    %v962 = vpack.c.b16 %v858, %v850
    %v963 = vpack.c.b16 %v867, %v859
    %v964 = vpack.c.b16 %v868, %v860
    %v965 = vpack.c.b16 %v869, %v861
    %v966 = vpack.c.b16 %v870, %v862
    %v967 = vpack.c.b16 %v871, %v863
    %v968 = vpack.c.b16 %v872, %v864
    %v969 = vpack.c.b16 %v873, %v865
    %v970 = vpack.c.b16 %v874, %v866
    %v971 = vpack.c.b16 %v883, %v875
    %v972 = vpack.c.b16 %v884, %v876
    %v973 = vpack.c.b16 %v885, %v877
    %v974 = vpack.c.b16 %v886, %v878
    %v975 = vpack.c.b16 %v887, %v879
    %v976 = vpack.c.b16 %v888, %v880
    %v977 = vpack.c.b16 %v889, %v881
    %v978 = vpack.c.b16 %v890, %v882
    %v979 = vpack.c.b16 %v899, %v891
    %v980 = vpack.c.b16 %v900, %v892
    %v981 = vpack.c.b16 %v901, %v893
    %v982 = vpack.c.b16 %v902, %v894
    %v983 = vpack.c.b16 %v903, %v895
    %v984 = vpack.c.b16 %v904, %v896
    %v985 = vpack.c.b16 %v905, %v897
    %v986 = vpack.c.b16 %v906, %v898
    %v987 = vpack.c.b16 %v915, %v907
    %v988 = vpack.c.b16 %v916, %v908
    %v989 = vpack.c.b16 %v917, %v909
    %v990 = vpack.c.b16 %v918, %v910
    %v991 = vpack.c.b16 %v919, %v911
    %v992 = vpack.c.b16 %v920, %v912
    %v993 = vpack.c.b16 %v921, %v913
    %v994 = vpack.c.b16 %v922, %v914
    %v995 = vpack.c.b16 %v931, %v923
    %v996 = vpack.c.b16 %v932, %v924
    %v997 = vpack.c.b16 %v933, %v925
    %v998 = vpack.c.b16 %v934, %v926
    %v999 = vpack.c.b16 %v935, %v927
    %v1000 = vpack.c.b16 %v936, %v928
    %v1001 = vpack.c.b16 %v937, %v929
    %v1002 = vpack.c.b16 %v938, %v930
    %1067 = vmatpush.bf16.msra.mxu0 %v995
    %1068 = vmatpush.bf16.msra.mxu0 %v987
    %1069 = vmatpush.bf16.msra.mxu0 %v979
    %1070 = vmatpush.bf16.msra.mxu0 %v971
    %1071 = vmatpush.bf16.msra.mxu0 %v963
    %1072 = vmatpush.bf16.msra.mxu0 %v955
    %1073 = vmatpush.bf16.msra.mxu0 %v947
    %1074 = vmatpush.bf16.msra.mxu0 %v939
    %1075 = vmatmul.bf16.gmra.mxu0 %v718
    %v1076 = vpop.f32.mrf.mxu0
    %v1077 = vadd.f32 %v739, %v1076
    %v1078 = vpop.f32.mrf.mxu0
    %v1079 = vadd.f32 %v739, %v1078
    %1080 = vdwg.mxu0
    %1081 = vmatpush.bf16.msra.mxu0 %v996
    %1082 = vmatpush.bf16.msra.mxu0 %v988
    %1083 = vmatpush.bf16.msra.mxu0 %v980
    %1084 = vmatpush.bf16.msra.mxu0 %v972
    %1085 = vmatpush.bf16.msra.mxu0 %v964
    %1086 = vmatpush.bf16.msra.mxu0 %v956
    %1087 = vmatpush.bf16.msra.mxu0 %v948
    %1088 = vmatpush.bf16.msra.mxu0 %v940
    %1089 = vmatmul.bf16.gmra.mxu0 %v718
    %v1090 = vpop.f32.mrf.mxu0
    %v1091 = vadd.f32 %v740, %v1090
    %v1092 = vpop.f32.mrf.mxu0
    %v1093 = vadd.f32 %v740, %v1092
    %1094 = vdwg.mxu0
    %1095 = vmatpush.bf16.msra.mxu0 %v997
    %1096 = vmatpush.bf16.msra.mxu0 %v989
    %1097 = vmatpush.bf16.msra.mxu0 %v981
    %1098 = vmatpush.bf16.msra.mxu0 %v973
    %1099 = vmatpush.bf16.msra.mxu0 %v965
    %1100 = vmatpush.bf16.msra.mxu0 %v957
    %1101 = vmatpush.bf16.msra.mxu0 %v949
    %1102 = vmatpush.bf16.msra.mxu0 %v941
    %1103 = vmatmul.bf16.gmra.mxu0 %v718
    %v1104 = vpop.f32.mrf.mxu0
    %v1105 = vadd.f32 %v741, %v1104
    %v1106 = vpop.f32.mrf.mxu0
    %v1107 = vadd.f32 %v741, %v1106
    %1108 = vdwg.mxu0
    %1109 = vmatpush.bf16.msra.mxu0 %v998
    %1110 = vmatpush.bf16.msra.mxu0 %v990
    %1111 = vmatpush.bf16.msra.mxu0 %v982
    %1112 = vmatpush.bf16.msra.mxu0 %v974
    %1113 = vmatpush.bf16.msra.mxu0 %v966
    %1114 = vmatpush.bf16.msra.mxu0 %v958
    %1115 = vmatpush.bf16.msra.mxu0 %v950
    %1116 = vmatpush.bf16.msra.mxu0 %v942
    %1117 = vmatmul.bf16.gmra.mxu0 %v718
    %v1118 = vpop.f32.mrf.mxu0
    %v1119 = vadd.f32 %v742, %v1118
    %v1120 = vpop.f32.mrf.mxu0
    %v1121 = vadd.f32 %v742, %v1120
    %1122 = vdwg.mxu0
    %1123 = vmatpush.bf16.msra.mxu0 %v999
    %1124 = vmatpush.bf16.msra.mxu0 %v991
    %1125 = vmatpush.bf16.msra.mxu0 %v983
    %1126 = vmatpush.bf16.msra.mxu0 %v975
    %1127 = vmatpush.bf16.msra.mxu0 %v967
    %1128 = vmatpush.bf16.msra.mxu0 %v959
    %1129 = vmatpush.bf16.msra.mxu0 %v951
    %1130 = vmatpush.bf16.msra.mxu0 %v943
    %1131 = vmatmul.bf16.gmra.mxu0 %v718
    %v1132 = vpop.f32.mrf.mxu0
    %v1133 = vadd.f32 %v743, %v1132
    %v1134 = vpop.f32.mrf.mxu0
    %v1135 = vadd.f32 %v743, %v1134
    %1136 = vdwg.mxu0
    %1137 = vmatpush.bf16.msra.mxu0 %v1000
    %1138 = vmatpush.bf16.msra.mxu0 %v992
    %1139 = vmatpush.bf16.msra.mxu0 %v984
    %1140 = vmatpush.bf16.msra.mxu0 %v976
    %1141 = vmatpush.bf16.msra.mxu0 %v968
    %1142 = vmatpush.bf16.msra.mxu0 %v960
    %1143 = vmatpush.bf16.msra.mxu0 %v952
    %1144 = vmatpush.bf16.msra.mxu0 %v944
    %1145 = vmatmul.bf16.gmra.mxu0 %v718
    %v1146 = vpop.f32.mrf.mxu0
    %v1147 = vadd.f32 %v744, %v1146
    %v1148 = vpop.f32.mrf.mxu0
    %v1149 = vadd.f32 %v744, %v1148
    %1150 = vdwg.mxu0
    %1151 = vmatpush.bf16.msra.mxu0 %v1001
    %1152 = vmatpush.bf16.msra.mxu0 %v993
    %1153 = vmatpush.bf16.msra.mxu0 %v985
    %1154 = vmatpush.bf16.msra.mxu0 %v977
    %1155 = vmatpush.bf16.msra.mxu0 %v969
    %1156 = vmatpush.bf16.msra.mxu0 %v961
    %1157 = vmatpush.bf16.msra.mxu0 %v953
    %1158 = vmatpush.bf16.msra.mxu0 %v945
    %1159 = vmatmul.bf16.gmra.mxu0 %v718
    %v1160 = vpop.f32.mrf.mxu0
    %v1161 = vadd.f32 %v745, %v1160
    %v1162 = vpop.f32.mrf.mxu0
    %v1163 = vadd.f32 %v745, %v1162
    %1164 = vdwg.mxu0
    %1165 = vmatpush.bf16.msra.mxu0 %v1002
    %1166 = vmatpush.bf16.msra.mxu0 %v994
    %1167 = vmatpush.bf16.msra.mxu0 %v986
    %1168 = vmatpush.bf16.msra.mxu0 %v978
    %1169 = vmatpush.bf16.msra.mxu0 %v970
    %1170 = vmatpush.bf16.msra.mxu0 %v962
    %1171 = vmatpush.bf16.msra.mxu0 %v954
    %1172 = vmatpush.bf16.msra.mxu0 %v946
    %1173 = vmatmul.bf16.gmra.mxu0 %v718
    %v1174 = vpop.f32.mrf.mxu0
    %v1175 = vadd.f32 %v746, %v1174
    %v1176 = vpop.f32.mrf.mxu0
    %v1177 = vadd.f32 %v746, %v1176
    %1178 = vdwg.mxu0
    %vm1179 = vcmask 1043456
    %v1180 = vsel %vm1179, %v1079, 0.0
    %v1181 = vadd.f32 %v1077, %v1180
    %v1182 = vrot.slane %v1181, 4
    %v1183 = vadd.f32 %v1181, %v1182
    %v1184 = vrot.slane %v1183, 2
    %v1185 = vadd.f32 %v1183, %v1184
    %v1186 = vrot.slane %v1185, 1
    %v1187 = vadd.f32 %v1185, %v1186
    %v1188 = vsel %vm1179, %v1093, 0.0
    %v1189 = vadd.f32 %v1091, %v1188
    %v1190 = vrot.slane %v1189, 4
    %v1191 = vadd.f32 %v1189, %v1190
    %v1192 = vrot.slane %v1191, 2
    %v1193 = vadd.f32 %v1191, %v1192
    %v1194 = vrot.slane %v1193, 1
    %v1195 = vadd.f32 %v1193, %v1194
    %v1196 = vsel %vm1179, %v1107, 0.0
    %v1197 = vadd.f32 %v1105, %v1196
    %v1198 = vrot.slane %v1197, 4
    %v1199 = vadd.f32 %v1197, %v1198
    %v1200 = vrot.slane %v1199, 2
    %v1201 = vadd.f32 %v1199, %v1200
    %v1202 = vrot.slane %v1201, 1
    %v1203 = vadd.f32 %v1201, %v1202
    %v1204 = vsel %vm1179, %v1121, 0.0
    %v1205 = vadd.f32 %v1119, %v1204
    %v1206 = vrot.slane %v1205, 4
    %v1207 = vadd.f32 %v1205, %v1206
    %v1208 = vrot.slane %v1207, 2
    %v1209 = vadd.f32 %v1207, %v1208
    %v1210 = vrot.slane %v1209, 1
    %v1211 = vadd.f32 %v1209, %v1210
    %v1212 = vsel %vm1179, %v1135, 0.0
    %v1213 = vadd.f32 %v1133, %v1212
    %v1214 = vrot.slane %v1213, 4
    %v1215 = vadd.f32 %v1213, %v1214
    %v1216 = vrot.slane %v1215, 2
    %v1217 = vadd.f32 %v1215, %v1216
    %v1218 = vrot.slane %v1217, 1
    %v1219 = vadd.f32 %v1217, %v1218
    %v1220 = vsel %vm1179, %v1149, 0.0
    %v1221 = vadd.f32 %v1147, %v1220
    %v1222 = vrot.slane %v1221, 4
    %v1223 = vadd.f32 %v1221, %v1222
    %v1224 = vrot.slane %v1223, 2
    %v1225 = vadd.f32 %v1223, %v1224
    %v1226 = vrot.slane %v1225, 1
    %v1227 = vadd.f32 %v1225, %v1226
    %v1228 = vsel %vm1179, %v1163, 0.0
    %v1229 = vadd.f32 %v1161, %v1228
    %v1230 = vrot.slane %v1229, 4
    %v1231 = vadd.f32 %v1229, %v1230
    %v1232 = vrot.slane %v1231, 2
    %v1233 = vadd.f32 %v1231, %v1232
    %v1234 = vrot.slane %v1233, 1
    %v1235 = vadd.f32 %v1233, %v1234
    %v1236 = vsel %vm1179, %v1177, 0.0
    %v1237 = vadd.f32 %v1175, %v1236
    %v1238 = vrot.slane %v1237, 4
    %v1239 = vadd.f32 %v1237, %v1238
    %v1240 = vrot.slane %v1239, 2
    %v1241 = vadd.f32 %v1239, %v1240
    %v1242 = vrot.slane %v1241, 1
    %v1243 = vadd.f32 %v1241, %v1242
    %v1244 = vrcp.pop 12.0
    %v1245 = vmul.f32 12.0, %v1244
    %v1246 = vsub.f32 1.0, %v1245
    %v1247 = vmul.f32 %v1244, %v1246
    %v1248 = vadd.f32 %v1244, %v1247
    %vm1249 = vweird.f32 %v1244
    %v1250 = vsel %vm1249, %v1244, %v1248
    %v1251 = vmul.f32 %v1187, %v1250
    %v1252 = vmul.f32 %v1195, %v1250
    %v1253 = vmul.f32 %v1203, %v1250
    %v1254 = vmul.f32 %v1211, %v1250
    %v1255 = vmul.f32 %v1219, %v1250
    %v1256 = vmul.f32 %v1227, %v1250
    %v1257 = vmul.f32 %v1235, %v1250
    %v1258 = vmul.f32 %v1243, %v1250
    %v1259 = vperm.slane %v714, 3
    %v1260 = vperm.slane %v714, 7
    %v1261 = vperm.slane %v715, 3
    %v1262 = vperm.slane %v715, 7
    %v1263 = vperm.slane %v716, 3
    %v1264 = vperm.slane %v716, 7
    %v1265 = vperm.slane %v717, 3
    %v1266 = vperm.slane %v717, 7
    %v1275 = vmul.f32 %v1251, %v1259
    %v1276 = vmul.f32 %v1252, %v1260
    %v1277 = vmul.f32 %v1253, %v1261
    %v1278 = vmul.f32 %v1254, %v1262
    %v1279 = vmul.f32 %v1255, %v1263
    %v1280 = vmul.f32 %v1256, %v1264
    %v1281 = vmul.f32 %v1257, %v1265
    %v1282 = vmul.f32 %v1258, %v1266
    %v1283 = vperm.slane %v1275, 0
    %v1284 = vperm.slane %v1276, 0
    %v1285 = vperm.slane %v1277, 0
    %v1286 = vperm.slane %v1278, 0
    %v1287 = vperm.slane %v1279, 0
    %v1288 = vperm.slane %v1280, 0
    %v1289 = vperm.slane %v1281, 0
    %v1290 = vperm.slane %v1282, 0
    %v1291 = vsub.f32 %v1077, %v1283
    %v1292 = vsub.f32 %v1091, %v1284
    %v1293 = vsub.f32 %v1105, %v1285
    %v1294 = vsub.f32 %v1119, %v1286
    %v1295 = vsub.f32 %v1133, %v1287
    %v1296 = vsub.f32 %v1147, %v1288
    %v1297 = vsub.f32 %v1161, %v1289
    %v1298 = vsub.f32 %v1175, %v1290
    %v1299 = vsub.f32 %v1079, %v1283
    %v1300 = vsub.f32 %v1093, %v1284
    %v1301 = vsub.f32 %v1107, %v1285
    %v1302 = vsub.f32 %v1121, %v1286
    %v1303 = vsub.f32 %v1135, %v1287
    %v1304 = vsub.f32 %v1149, %v1288
    %v1305 = vsub.f32 %v1163, %v1289
    %v1306 = vsub.f32 %v1177, %v1290
    %v1307 = vmul.f32 %v1291, %v1291
    %v1308 = vmul.f32 %v1292, %v1292
    %v1309 = vmul.f32 %v1293, %v1293
    %v1310 = vmul.f32 %v1294, %v1294
    %v1311 = vmul.f32 %v1295, %v1295
    %v1312 = vmul.f32 %v1296, %v1296
    %v1313 = vmul.f32 %v1297, %v1297
    %v1314 = vmul.f32 %v1298, %v1298
    %v1315 = vmul.f32 %v1299, %v1299
    %v1316 = vmul.f32 %v1300, %v1300
    %v1317 = vmul.f32 %v1301, %v1301
    %v1318 = vmul.f32 %v1302, %v1302
    %v1319 = vmul.f32 %v1303, %v1303
    %v1320 = vmul.f32 %v1304, %v1304
    %v1321 = vmul.f32 %v1305, %v1305
    %v1322 = vmul.f32 %v1306, %v1306
    %v1323 = vsel %vm1179, %v1315, 0.0
    %v1324 = vadd.f32 %v1307, %v1323
    %v1325 = vrot.slane %v1324, 4
    %v1326 = vadd.f32 %v1324, %v1325
    %v1327 = vrot.slane %v1326, 2
    %v1328 = vadd.f32 %v1326, %v1327
    %v1329 = vrot.slane %v1328, 1
    %v1330 = vadd.f32 %v1328, %v1329
    %v1331 = vsel %vm1179, %v1316, 0.0
    %v1332 = vadd.f32 %v1308, %v1331
    %v1333 = vrot.slane %v1332, 4
    %v1334 = vadd.f32 %v1332, %v1333
    %v1335 = vrot.slane %v1334, 2
    %v1336 = vadd.f32 %v1334, %v1335
    %v1337 = vrot.slane %v1336, 1
    %v1338 = vadd.f32 %v1336, %v1337
    %v1339 = vsel %vm1179, %v1317, 0.0
    %v1340 = vadd.f32 %v1309, %v1339
    %v1341 = vrot.slane %v1340, 4
    %v1342 = vadd.f32 %v1340, %v1341
    %v1343 = vrot.slane %v1342, 2
    %v1344 = vadd.f32 %v1342, %v1343
    %v1345 = vrot.slane %v1344, 1
    %v1346 = vadd.f32 %v1344, %v1345
    %v1347 = vsel %vm1179, %v1318, 0.0
    %v1348 = vadd.f32 %v1310, %v1347
    %v1349 = vrot.slane %v1348, 4
    %v1350 = vadd.f32 %v1348, %v1349
    %v1351 = vrot.slane %v1350, 2
    %v1352 = vadd.f32 %v1350, %v1351
    %v1353 = vrot.slane %v1352, 1
    %v1354 = vadd.f32 %v1352, %v1353
    %v1355 = vsel %vm1179, %v1319, 0.0
    %v1356 = vadd.f32 %v1311, %v1355
    %v1357 = vrot.slane %v1356, 4
    %v1358 = vadd.f32 %v1356, %v1357
    %v1359 = vrot.slane %v1358, 2
    %v1360 = vadd.f32 %v1358, %v1359
    %v1361 = vrot.slane %v1360, 1
    %v1362 = vadd.f32 %v1360, %v1361
    %v1363 = vsel %vm1179, %v1320, 0.0
    %v1364 = vadd.f32 %v1312, %v1363
    %v1365 = vrot.slane %v1364, 4
    %v1366 = vadd.f32 %v1364, %v1365
    %v1367 = vrot.slane %v1366, 2
    %v1368 = vadd.f32 %v1366, %v1367
    %v1369 = vrot.slane %v1368, 1
    %v1370 = vadd.f32 %v1368, %v1369
    %v1371 = vsel %vm1179, %v1321, 0.0
    %v1372 = vadd.f32 %v1313, %v1371
    %v1373 = vrot.slane %v1372, 4
    %v1374 = vadd.f32 %v1372, %v1373
    %v1375 = vrot.slane %v1374, 2
    %v1376 = vadd.f32 %v1374, %v1375
    %v1377 = vrot.slane %v1376, 1
    %v1378 = vadd.f32 %v1376, %v1377
    %v1379 = vsel %vm1179, %v1322, 0.0
    %v1380 = vadd.f32 %v1314, %v1379
    %v1381 = vrot.slane %v1380, 4
    %v1382 = vadd.f32 %v1380, %v1381
    %v1383 = vrot.slane %v1382, 2
    %v1384 = vadd.f32 %v1382, %v1383
    %v1385 = vrot.slane %v1384, 1
    %v1386 = vadd.f32 %v1384, %v1385
    %v1387 = vmul.f32 %v1330, %v1250
    %v1388 = vmul.f32 %v1338, %v1250
    %v1389 = vmul.f32 %v1346, %v1250
    %v1390 = vmul.f32 %v1354, %v1250
    %v1391 = vmul.f32 %v1362, %v1250
    %v1392 = vmul.f32 %v1370, %v1250
    %v1393 = vmul.f32 %v1378, %v1250
    %v1394 = vmul.f32 %v1386, %v1250
    %v1395 = vperm.slane %v714, 1
    %v1396 = vperm.slane %v714, 5
    %v1397 = vperm.slane %v715, 1
    %v1398 = vperm.slane %v715, 5
    %v1399 = vperm.slane %v716, 1
    %v1400 = vperm.slane %v716, 5
    %v1401 = vperm.slane %v717, 1
    %v1402 = vperm.slane %v717, 5
    %v1411 = vperm.slane %v1395, 1
    %v1412 = vperm.slane %v1396, 1
    %v1413 = vperm.slane %v1397, 1
    %v1414 = vperm.slane %v1398, 1
    %v1415 = vperm.slane %v1399, 1
    %v1416 = vperm.slane %v1400, 1
    %v1417 = vperm.slane %v1401, 1
    %v1418 = vperm.slane %v1402, 1
    %v1419 = vmul.f32 %v1411, %v1291
    %v1420 = vmul.f32 %v1412, %v1292
    %v1421 = vmul.f32 %v1413, %v1293
    %v1422 = vmul.f32 %v1414, %v1294
    %v1423 = vmul.f32 %v1415, %v1295
    %v1424 = vmul.f32 %v1416, %v1296
    %v1425 = vmul.f32 %v1417, %v1297
    %v1426 = vmul.f32 %v1418, %v1298
    %v1427 = vmul.f32 %v1411, %v1299
    %v1428 = vmul.f32 %v1412, %v1300
    %v1429 = vmul.f32 %v1413, %v1301
    %v1430 = vmul.f32 %v1414, %v1302
    %v1431 = vmul.f32 %v1415, %v1303
    %v1432 = vmul.f32 %v1416, %v1304
    %v1433 = vmul.f32 %v1417, %v1305
    %v1434 = vmul.f32 %v1418, %v1306
    %v1435 = vadd.f32 %v1387, 1e-05
    %v1436 = vadd.f32 %v1388, 1e-05
    %v1437 = vadd.f32 %v1389, 1e-05
    %v1438 = vadd.f32 %v1390, 1e-05
    %v1439 = vadd.f32 %v1391, 1e-05
    %v1440 = vadd.f32 %v1392, 1e-05
    %v1441 = vadd.f32 %v1393, 1e-05
    %v1442 = vadd.f32 %v1394, 1e-05
    %v1443 = vrsqrt.pop %v1435
    %v1444 = vmul.f32 %v1443, %v1435
    %v1445 = vmul.f32 %v1444, %v1443
    %v1446 = vmul.f32 0.5, %v1445
    %v1447 = vsub.f32 1.5, %v1446
    %v1448 = vmul.f32 %v1443, %v1447
    %vm1449 = vweird.f32 %v1435
    %vm1450 = vweird.f32 %v1443
    %vm1451 = vmor %vm1449, %vm1450
    %v1452 = vsel %vm1451, %v1443, %v1448
    %v1453 = vrsqrt.pop %v1436
    %v1454 = vmul.f32 %v1453, %v1436
    %v1455 = vmul.f32 %v1454, %v1453
    %v1456 = vmul.f32 0.5, %v1455
    %v1457 = vsub.f32 1.5, %v1456
    %v1458 = vmul.f32 %v1453, %v1457
    %vm1459 = vweird.f32 %v1436
    %vm1460 = vweird.f32 %v1453
    %vm1461 = vmor %vm1459, %vm1460
    %v1462 = vsel %vm1461, %v1453, %v1458
    %v1463 = vrsqrt.pop %v1437
    %v1464 = vmul.f32 %v1463, %v1437
    %v1465 = vmul.f32 %v1464, %v1463
    %v1466 = vmul.f32 0.5, %v1465
    %v1467 = vsub.f32 1.5, %v1466
    %v1468 = vmul.f32 %v1463, %v1467
    %vm1469 = vweird.f32 %v1437
    %vm1470 = vweird.f32 %v1463
    %vm1471 = vmor %vm1469, %vm1470
    %v1472 = vsel %vm1471, %v1463, %v1468
    %v1473 = vrsqrt.pop %v1438
    %v1474 = vmul.f32 %v1473, %v1438
    %v1475 = vmul.f32 %v1474, %v1473
    %v1476 = vmul.f32 0.5, %v1475
    %v1477 = vsub.f32 1.5, %v1476
    %v1478 = vmul.f32 %v1473, %v1477
    %vm1479 = vweird.f32 %v1438
    %vm1480 = vweird.f32 %v1473
    %vm1481 = vmor %vm1479, %vm1480
    %v1482 = vsel %vm1481, %v1473, %v1478
    %v1483 = vrsqrt.pop %v1439
    %v1484 = vmul.f32 %v1483, %v1439
    %v1485 = vmul.f32 %v1484, %v1483
    %v1486 = vmul.f32 0.5, %v1485
    %v1487 = vsub.f32 1.5, %v1486
    %v1488 = vmul.f32 %v1483, %v1487
    %vm1489 = vweird.f32 %v1439
    %vm1490 = vweird.f32 %v1483
    %vm1491 = vmor %vm1489, %vm1490
    %v1492 = vsel %vm1491, %v1483, %v1488
    %v1493 = vrsqrt.pop %v1440
    %v1494 = vmul.f32 %v1493, %v1440
    %v1495 = vmul.f32 %v1494, %v1493
    %v1496 = vmul.f32 0.5, %v1495
    %v1497 = vsub.f32 1.5, %v1496
    %v1498 = vmul.f32 %v1493, %v1497
    %vm1499 = vweird.f32 %v1440
    %vm1500 = vweird.f32 %v1493
    %vm1501 = vmor %vm1499, %vm1500
    %v1502 = vsel %vm1501, %v1493, %v1498
    %v1503 = vrsqrt.pop %v1441
    %v1504 = vmul.f32 %v1503, %v1441
    %v1505 = vmul.f32 %v1504, %v1503
    %v1506 = vmul.f32 0.5, %v1505
    %v1507 = vsub.f32 1.5, %v1506
    %v1508 = vmul.f32 %v1503, %v1507
    %vm1509 = vweird.f32 %v1441
    %vm1510 = vweird.f32 %v1503
    %vm1511 = vmor %vm1509, %vm1510
    %v1512 = vsel %vm1511, %v1503, %v1508
    %v1513 = vrsqrt.pop %v1442
    %v1514 = vmul.f32 %v1513, %v1442
    %v1515 = vmul.f32 %v1514, %v1513
    %v1516 = vmul.f32 0.5, %v1515
    %v1517 = vsub.f32 1.5, %v1516
    %v1518 = vmul.f32 %v1513, %v1517
    %vm1519 = vweird.f32 %v1442
    %vm1520 = vweird.f32 %v1513
    %vm1521 = vmor %vm1519, %vm1520
    %v1522 = vsel %vm1521, %v1513, %v1518
    %v1523 = vmul.f32 %v1419, %v1452
    %v1524 = vmul.f32 %v1420, %v1462
    %v1525 = vmul.f32 %v1421, %v1472
    %v1526 = vmul.f32 %v1422, %v1482
    %v1527 = vmul.f32 %v1423, %v1492
    %v1528 = vmul.f32 %v1424, %v1502
    %v1529 = vmul.f32 %v1425, %v1512
    %v1530 = vmul.f32 %v1426, %v1522
    %v1531 = vmul.f32 %v1427, %v1452
    %v1532 = vmul.f32 %v1428, %v1462
    %v1533 = vmul.f32 %v1429, %v1472
    %v1534 = vmul.f32 %v1430, %v1482
    %v1535 = vmul.f32 %v1431, %v1492
    %v1536 = vmul.f32 %v1432, %v1502
    %v1537 = vmul.f32 %v1433, %v1512
    %v1538 = vmul.f32 %v1434, %v1522
    %v1539 = vperm.slane %v714, 2
    %v1540 = vperm.slane %v714, 6
    %v1541 = vperm.slane %v715, 2
    %v1542 = vperm.slane %v715, 6
    %v1543 = vperm.slane %v716, 2
    %v1544 = vperm.slane %v716, 6
    %v1545 = vperm.slane %v717, 2
    %v1546 = vperm.slane %v717, 6
    %v1555 = vperm.slane %v1539, 2
    %v1556 = vperm.slane %v1540, 2
    %v1557 = vperm.slane %v1541, 2
    %v1558 = vperm.slane %v1542, 2
    %v1559 = vperm.slane %v1543, 2
    %v1560 = vperm.slane %v1544, 2
    %v1561 = vperm.slane %v1545, 2
    %v1562 = vperm.slane %v1546, 2
    %v1563 = vadd.f32 %v1523, %v1555
    %v1564 = vadd.f32 %v1524, %v1556
    %v1565 = vadd.f32 %v1525, %v1557
    %v1566 = vadd.f32 %v1526, %v1558
    %v1567 = vadd.f32 %v1527, %v1559
    %v1568 = vadd.f32 %v1528, %v1560
    %v1569 = vadd.f32 %v1529, %v1561
    %v1570 = vadd.f32 %v1530, %v1562
    %v1571 = vadd.f32 %v1531, %v1555
    %v1572 = vadd.f32 %v1532, %v1556
    %v1573 = vadd.f32 %v1533, %v1557
    %v1574 = vadd.f32 %v1534, %v1558
    %v1575 = vadd.f32 %v1535, %v1559
    %v1576 = vadd.f32 %v1536, %v1560
    %v1577 = vadd.f32 %v1537, %v1561
    %v1578 = vadd.f32 %v1538, %v1562
    %v1579 = vmul.f32 %v1563, 0.5
    %v1580 = vmul.f32 %v1564, 0.5
    %v1581 = vmul.f32 %v1565, 0.5
    %v1582 = vmul.f32 %v1566, 0.5
    %v1583 = vmul.f32 %v1567, 0.5
    %v1584 = vmul.f32 %v1568, 0.5
    %v1585 = vmul.f32 %v1569, 0.5
    %v1586 = vmul.f32 %v1570, 0.5
    %v1587 = vmul.f32 %v1571, 0.5
    %v1588 = vmul.f32 %v1572, 0.5
    %v1589 = vmul.f32 %v1573, 0.5
    %v1590 = vmul.f32 %v1574, 0.5
    %v1591 = vmul.f32 %v1575, 0.5
    %v1592 = vmul.f32 %v1576, 0.5
    %v1593 = vmul.f32 %v1577, 0.5
    %v1594 = vmul.f32 %v1578, 0.5
    %v1595 = vmul.f32 %v1563, 0.044715
    %v1596 = vmul.f32 %v1564, 0.044715
    %v1597 = vmul.f32 %v1565, 0.044715
    %v1598 = vmul.f32 %v1566, 0.044715
    %v1599 = vmul.f32 %v1567, 0.044715
    %v1600 = vmul.f32 %v1568, 0.044715
    %v1601 = vmul.f32 %v1569, 0.044715
    %v1602 = vmul.f32 %v1570, 0.044715
    %v1603 = vmul.f32 %v1571, 0.044715
    %v1604 = vmul.f32 %v1572, 0.044715
    %v1605 = vmul.f32 %v1573, 0.044715
    %v1606 = vmul.f32 %v1574, 0.044715
    %v1607 = vmul.f32 %v1575, 0.044715
    %v1608 = vmul.f32 %v1576, 0.044715
    %v1609 = vmul.f32 %v1577, 0.044715
    %v1610 = vmul.f32 %v1578, 0.044715
    %v1611 = vmul.f32 %v1595, %v1563
    %v1612 = vmul.f32 %v1596, %v1564
    %v1613 = vmul.f32 %v1597, %v1565
    %v1614 = vmul.f32 %v1598, %v1566
    %v1615 = vmul.f32 %v1599, %v1567
    %v1616 = vmul.f32 %v1600, %v1568
    %v1617 = vmul.f32 %v1601, %v1569
    %v1618 = vmul.f32 %v1602, %v1570
    %v1619 = vmul.f32 %v1603, %v1571
    %v1620 = vmul.f32 %v1604, %v1572
    %v1621 = vmul.f32 %v1605, %v1573
    %v1622 = vmul.f32 %v1606, %v1574
    %v1623 = vmul.f32 %v1607, %v1575
    %v1624 = vmul.f32 %v1608, %v1576
    %v1625 = vmul.f32 %v1609, %v1577
    %v1626 = vmul.f32 %v1610, %v1578
    %v1627 = vmul.f32 %v1611, %v1563
    %v1628 = vmul.f32 %v1612, %v1564
    %v1629 = vmul.f32 %v1613, %v1565
    %v1630 = vmul.f32 %v1614, %v1566
    %v1631 = vmul.f32 %v1615, %v1567
    %v1632 = vmul.f32 %v1616, %v1568
    %v1633 = vmul.f32 %v1617, %v1569
    %v1634 = vmul.f32 %v1618, %v1570
    %v1635 = vmul.f32 %v1619, %v1571
    %v1636 = vmul.f32 %v1620, %v1572
    %v1637 = vmul.f32 %v1621, %v1573
    %v1638 = vmul.f32 %v1622, %v1574
    %v1639 = vmul.f32 %v1623, %v1575
    %v1640 = vmul.f32 %v1624, %v1576
    %v1641 = vmul.f32 %v1625, %v1577
    %v1642 = vmul.f32 %v1626, %v1578
    %v1643 = vadd.f32 %v1563, %v1627
    %v1644 = vadd.f32 %v1564, %v1628
    %v1645 = vadd.f32 %v1565, %v1629
    %v1646 = vadd.f32 %v1566, %v1630
    %v1647 = vadd.f32 %v1567, %v1631
    %v1648 = vadd.f32 %v1568, %v1632
    %v1649 = vadd.f32 %v1569, %v1633
    %v1650 = vadd.f32 %v1570, %v1634
    %v1651 = vadd.f32 %v1571, %v1635
    %v1652 = vadd.f32 %v1572, %v1636
    %v1653 = vadd.f32 %v1573, %v1637
    %v1654 = vadd.f32 %v1574, %v1638
    %v1655 = vadd.f32 %v1575, %v1639
    %v1656 = vadd.f32 %v1576, %v1640
    %v1657 = vadd.f32 %v1577, %v1641
    %v1658 = vadd.f32 %v1578, %v1642
    %v1659 = vmul.f32 %v1643, 0.7978846
    %v1660 = vmul.f32 %v1644, 0.7978846
    %v1661 = vmul.f32 %v1645, 0.7978846
    %v1662 = vmul.f32 %v1646, 0.7978846
    %v1663 = vmul.f32 %v1647, 0.7978846
    %v1664 = vmul.f32 %v1648, 0.7978846
    %v1665 = vmul.f32 %v1649, 0.7978846
    %v1666 = vmul.f32 %v1650, 0.7978846
    %v1667 = vmul.f32 %v1651, 0.7978846
    %v1668 = vmul.f32 %v1652, 0.7978846
    %v1669 = vmul.f32 %v1653, 0.7978846
    %v1670 = vmul.f32 %v1654, 0.7978846
    %v1671 = vmul.f32 %v1655, 0.7978846
    %v1672 = vmul.f32 %v1656, 0.7978846
    %v1673 = vmul.f32 %v1657, 0.7978846
    %v1674 = vmul.f32 %v1658, 0.7978846
    %v1675 = vtanh.pop %v1659
    %v1676 = vtanh.pop %v1660
    %v1677 = vtanh.pop %v1661
    %v1678 = vtanh.pop %v1662
    %v1679 = vtanh.pop %v1663
    %v1680 = vtanh.pop %v1664
    %v1681 = vtanh.pop %v1665
    %v1682 = vtanh.pop %v1666
    %v1683 = vtanh.pop %v1667
    %v1684 = vtanh.pop %v1668
    %v1685 = vtanh.pop %v1669
    %v1686 = vtanh.pop %v1670
    %v1687 = vtanh.pop %v1671
    %v1688 = vtanh.pop %v1672
    %v1689 = vtanh.pop %v1673
    %v1690 = vtanh.pop %v1674
    %v1691 = vadd.f32 %v1675, 1.0
    %v1692 = vadd.f32 %v1676, 1.0
    %v1693 = vadd.f32 %v1677, 1.0
    %v1694 = vadd.f32 %v1678, 1.0
    %v1695 = vadd.f32 %v1679, 1.0
    %v1696 = vadd.f32 %v1680, 1.0
    %v1697 = vadd.f32 %v1681, 1.0
    %v1698 = vadd.f32 %v1682, 1.0
    %v1699 = vadd.f32 %v1683, 1.0
    %v1700 = vadd.f32 %v1684, 1.0
    %v1701 = vadd.f32 %v1685, 1.0
    %v1702 = vadd.f32 %v1686, 1.0
    %v1703 = vadd.f32 %v1687, 1.0
    %v1704 = vadd.f32 %v1688, 1.0
    %v1705 = vadd.f32 %v1689, 1.0
    %v1706 = vadd.f32 %v1690, 1.0
    %v1707 = vmul.f32 %v1579, %v1691
    %v1708 = vmul.f32 %v1580, %v1692
    %v1709 = vmul.f32 %v1581, %v1693
    %v1710 = vmul.f32 %v1582, %v1694
    %v1711 = vmul.f32 %v1583, %v1695
    %v1712 = vmul.f32 %v1584, %v1696
    %v1713 = vmul.f32 %v1585, %v1697
    %v1714 = vmul.f32 %v1586, %v1698
    %v1715 = vmul.f32 %v1587, %v1699
    %v1716 = vmul.f32 %v1588, %v1700
    %v1717 = vmul.f32 %v1589, %v1701
    %v1718 = vmul.f32 %v1590, %v1702
    %v1719 = vmul.f32 %v1591, %v1703
    %v1720 = vmul.f32 %v1592, %v1704
    %v1721 = vmul.f32 %v1593, %v1705
    %v1722 = vmul.f32 %v1594, %v1706
    %v1723 = vld [vmem:[#allocation11] sm:$0xff]
    %v1724 = vld [vmem:[#allocation11 + $0x8] sm:$0xff]
    %v1725 = vld [vmem:[#allocation11 + $0x10] sm:$0xff]
    %v1726 = vld [vmem:[#allocation11 + $0x18] sm:$0xff]
    %v1727 = vld [vmem:[#allocation11 + $0x20] sm:$0xff]
    %v1728 = vld [vmem:[#allocation11 + $0x28] sm:$0xff]
    %v1729 = vld [vmem:[#allocation11 + $0x30] sm:$0xff]
    %v1730 = vld [vmem:[#allocation11 + $0x38] sm:$0xff]
    %v1731 = vld [vmem:[#allocation11 + $0x40] sm:$0xff]
    %v1732 = vld [vmem:[#allocation11 + $0x48] sm:$0xff]
    %v1733 = vld [vmem:[#allocation11 + $0x50] sm:$0xff]
    %v1734 = vld [vmem:[#allocation11 + $0x58] sm:$0xff]
    %v1735 = vld [vmem:[#allocation11 + $0x60] sm:$0xff]
    %v1736 = vld [vmem:[#allocation11 + $0x68] sm:$0xff]
    %v1737 = vld [vmem:[#allocation11 + $0x70] sm:$0xff]
    %v1738 = vld [vmem:[#allocation11 + $0x78] sm:$0xff]
    %v1739 = vld [vmem:[#allocation11 + $0x80] sm:$0xff]
    %v1740 = vld [vmem:[#allocation11 + $0x88] sm:$0xff]
    %v1741 = vld [vmem:[#allocation11 + $0x90] sm:$0xff]
    %v1742 = vld [vmem:[#allocation11 + $0x98] sm:$0xff]
    %v1743 = vld [vmem:[#allocation11 + $0xa0] sm:$0xff]
    %v1744 = vld [vmem:[#allocation11 + $0xa8] sm:$0xff]
    %v1745 = vld [vmem:[#allocation11 + $0xb0] sm:$0xff]
    %v1746 = vld [vmem:[#allocation11 + $0xb8] sm:$0xff]
    %v1747 = vld [vmem:[#allocation11 + $0xc0] sm:$0xff]
    %v1748 = vld [vmem:[#allocation11 + $0xc8] sm:$0xff]
    %v1749 = vld [vmem:[#allocation11 + $0xd0] sm:$0xff]
    %v1750 = vld [vmem:[#allocation11 + $0xd8] sm:$0xff]
    %v1751 = vld [vmem:[#allocation11 + $0xe0] sm:$0xff]
    %v1752 = vld [vmem:[#allocation11 + $0xe8] sm:$0xff]
    %v1753 = vld [vmem:[#allocation11 + $0xf0] sm:$0xff]
    %v1754 = vld [vmem:[#allocation11 + $0xf8] sm:$0xff]
    %v1755 = vld [vmem:[#allocation11 + $0x100] sm:$0xff]
    %v1756 = vld [vmem:[#allocation11 + $0x108] sm:$0xff]
    %v1757 = vld [vmem:[#allocation11 + $0x110] sm:$0xff]
    %v1758 = vld [vmem:[#allocation11 + $0x118] sm:$0xff]
    %v1759 = vld [vmem:[#allocation11 + $0x120] sm:$0xff]
    %v1760 = vld [vmem:[#allocation11 + $0x128] sm:$0xff]
    %v1761 = vld [vmem:[#allocation11 + $0x130] sm:$0xff]
    %v1762 = vld [vmem:[#allocation11 + $0x138] sm:$0xff]
    %v1763 = vld [vmem:[#allocation11 + $0x140] sm:$0xff]
    %v1764 = vld [vmem:[#allocation11 + $0x148] sm:$0xff]
    %v1765 = vld [vmem:[#allocation11 + $0x150] sm:$0xff]
    %v1766 = vld [vmem:[#allocation11 + $0x158] sm:$0xff]
    %v1767 = vld [vmem:[#allocation11 + $0x160] sm:$0xff]
    %v1768 = vld [vmem:[#allocation11 + $0x168] sm:$0xff]
    %v1769 = vld [vmem:[#allocation11 + $0x170] sm:$0xff]
    %v1770 = vld [vmem:[#allocation11 + $0x178] sm:$0xff]
    %v1771 = vld [vmem:[#allocation11 + $0x180] sm:$0xff]
    %v1772 = vld [vmem:[#allocation11 + $0x188] sm:$0xff]
    %v1773 = vld [vmem:[#allocation11 + $0x190] sm:$0xff]
    %v1774 = vld [vmem:[#allocation11 + $0x198] sm:$0xff]
    %v1775 = vld [vmem:[#allocation11 + $0x1a0] sm:$0xff]
    %v1776 = vld [vmem:[#allocation11 + $0x1a8] sm:$0xff]
    %v1777 = vld [vmem:[#allocation11 + $0x1b0] sm:$0xff]
    %v1778 = vld [vmem:[#allocation11 + $0x1b8] sm:$0xff]
    %v1779 = vld [vmem:[#allocation11 + $0x1c0] sm:$0xff]
    %v1780 = vld [vmem:[#allocation11 + $0x1c8] sm:$0xff]
    %v1781 = vld [vmem:[#allocation11 + $0x1d0] sm:$0xff]
    %v1782 = vld [vmem:[#allocation11 + $0x1d8] sm:$0xff]
    %v1783 = vld [vmem:[#allocation11 + $0x1e0] sm:$0xff]
    %v1784 = vld [vmem:[#allocation11 + $0x1e8] sm:$0xff]
    %v1785 = vld [vmem:[#allocation11 + $0x1f0] sm:$0xff]
    %v1786 = vld [vmem:[#allocation11 + $0x1f8] sm:$0xff]
    %v1787 = vld [vmem:[#allocation11 + $0x200] sm:$0xff]
    %v1788 = vld [vmem:[#allocation11 + $0x208] sm:$0xff]
    %v1789 = vld [vmem:[#allocation11 + $0x210] sm:$0xff]
    %v1790 = vld [vmem:[#allocation11 + $0x218] sm:$0xff]
    %v1791 = vld [vmem:[#allocation11 + $0x220] sm:$0xff]
    %v1792 = vld [vmem:[#allocation11 + $0x228] sm:$0xff]
    %v1793 = vld [vmem:[#allocation11 + $0x230] sm:$0xff]
    %v1794 = vld [vmem:[#allocation11 + $0x238] sm:$0xff]
    %v1795 = vld [vmem:[#allocation11 + $0x240] sm:$0xff]
    %v1796 = vld [vmem:[#allocation11 + $0x248] sm:$0xff]
    %v1797 = vld [vmem:[#allocation11 + $0x250] sm:$0xff]
    %v1798 = vld [vmem:[#allocation11 + $0x258] sm:$0xff]
    %v1799 = vld [vmem:[#allocation11 + $0x260] sm:$0xff]
    %v1800 = vld [vmem:[#allocation11 + $0x268] sm:$0xff]
    %v1801 = vld [vmem:[#allocation11 + $0x270] sm:$0xff]
    %v1802 = vld [vmem:[#allocation11 + $0x278] sm:$0xff]
    %v1803 = vld [vmem:[#allocation11 + $0x280] sm:$0xff]
    %v1804 = vld [vmem:[#allocation11 + $0x288] sm:$0xff]
    %v1805 = vld [vmem:[#allocation11 + $0x290] sm:$0xff]
    %v1806 = vld [vmem:[#allocation11 + $0x298] sm:$0xff]
    %v1807 = vld [vmem:[#allocation11 + $0x2a0] sm:$0xff]
    %v1808 = vld [vmem:[#allocation11 + $0x2a8] sm:$0xff]
    %v1809 = vld [vmem:[#allocation11 + $0x2b0] sm:$0xff]
    %v1810 = vld [vmem:[#allocation11 + $0x2b8] sm:$0xff]
    %v1811 = vld [vmem:[#allocation11 + $0x2c0] sm:$0xff]
    %v1812 = vld [vmem:[#allocation11 + $0x2c8] sm:$0xff]
    %v1813 = vld [vmem:[#allocation11 + $0x2d0] sm:$0xff]
    %v1814 = vld [vmem:[#allocation11 + $0x2d8] sm:$0xff]
    %v1815 = vld [vmem:[#allocation11 + $0x2e0] sm:$0xff]
    %v1816 = vld [vmem:[#allocation11 + $0x2e8] sm:$0xff]
    %v1817 = vld [vmem:[#allocation11 + $0x2f0] sm:$0xff]
    %v1818 = vld [vmem:[#allocation11 + $0x2f8] sm:$0xff]
    %v1819 = vld [vmem:[#allocation11 + $0x300] sm:$0xff]
    %v1820 = vld [vmem:[#allocation11 + $0x308] sm:$0xff]
    %v1821 = vld [vmem:[#allocation11 + $0x310] sm:$0xff]
    %v1822 = vld [vmem:[#allocation11 + $0x318] sm:$0xff]
    %v1823 = vld [vmem:[#allocation11 + $0x320] sm:$0xff]
    %v1824 = vld [vmem:[#allocation11 + $0x328] sm:$0xff]
    %v1825 = vld [vmem:[#allocation11 + $0x330] sm:$0xff]
    %v1826 = vld [vmem:[#allocation11 + $0x338] sm:$0xff]
    %v1827 = vld [vmem:[#allocation11 + $0x340] sm:$0xff]
    %v1828 = vld [vmem:[#allocation11 + $0x348] sm:$0xff]
    %v1829 = vld [vmem:[#allocation11 + $0x350] sm:$0xff]
    %v1830 = vld [vmem:[#allocation11 + $0x358] sm:$0xff]
    %v1831 = vld [vmem:[#allocation11 + $0x360] sm:$0xff]
    %v1832 = vld [vmem:[#allocation11 + $0x368] sm:$0xff]
    %v1833 = vld [vmem:[#allocation11 + $0x370] sm:$0xff]
    %v1834 = vld [vmem:[#allocation11 + $0x378] sm:$0xff]
    %v1835 = vld [vmem:[#allocation11 + $0x380] sm:$0xff]
    %v1836 = vld [vmem:[#allocation11 + $0x388] sm:$0xff]
    %v1837 = vld [vmem:[#allocation11 + $0x390] sm:$0xff]
    %v1838 = vld [vmem:[#allocation11 + $0x398] sm:$0xff]
    %v1839 = vld [vmem:[#allocation11 + $0x3a0] sm:$0xff]
    %v1840 = vld [vmem:[#allocation11 + $0x3a8] sm:$0xff]
    %v1841 = vld [vmem:[#allocation11 + $0x3b0] sm:$0xff]
    %v1842 = vld [vmem:[#allocation11 + $0x3b8] sm:$0xff]
    %v1843 = vld [vmem:[#allocation11 + $0x3c0] sm:$0xff]
    %v1844 = vld [vmem:[#allocation11 + $0x3c8] sm:$0xff]
    %v1845 = vld [vmem:[#allocation11 + $0x3d0] sm:$0xff]
    %v1846 = vld [vmem:[#allocation11 + $0x3d8] sm:$0xff]
    %v1847 = vld [vmem:[#allocation11 + $0x3e0] sm:$0xff]
    %v1848 = vld [vmem:[#allocation11 + $0x3e8] sm:$0xff]
    %v1849 = vld [vmem:[#allocation11 + $0x3f0] sm:$0xff]
    %v1850 = vld [vmem:[#allocation11 + $0x3f8] sm:$0xff]
    %v1851 = vld [vmem:[#allocation11 + $0x400] sm:$0xff]
    %v1852 = vld [vmem:[#allocation11 + $0x408] sm:$0xff]
    %v1853 = vld [vmem:[#allocation11 + $0x410] sm:$0xff]
    %v1854 = vld [vmem:[#allocation11 + $0x418] sm:$0xff]
    %v1855 = vld [vmem:[#allocation11 + $0x420] sm:$0xff]
    %v1856 = vld [vmem:[#allocation11 + $0x428] sm:$0xff]
    %v1857 = vld [vmem:[#allocation11 + $0x430] sm:$0xff]
    %v1858 = vld [vmem:[#allocation11 + $0x438] sm:$0xff]
    %v1859 = vld [vmem:[#allocation11 + $0x440] sm:$0xff]
    %v1860 = vld [vmem:[#allocation11 + $0x448] sm:$0xff]
    %v1861 = vld [vmem:[#allocation11 + $0x450] sm:$0xff]
    %v1862 = vld [vmem:[#allocation11 + $0x458] sm:$0xff]
    %v1863 = vld [vmem:[#allocation11 + $0x460] sm:$0xff]
    %v1864 = vld [vmem:[#allocation11 + $0x468] sm:$0xff]
    %v1865 = vld [vmem:[#allocation11 + $0x470] sm:$0xff]
    %v1866 = vld [vmem:[#allocation11 + $0x478] sm:$0xff]
    %v1867 = vld [vmem:[#allocation11 + $0x480] sm:$0xff]
    %v1868 = vld [vmem:[#allocation11 + $0x488] sm:$0xff]
    %v1869 = vld [vmem:[#allocation11 + $0x490] sm:$0xff]
    %v1870 = vld [vmem:[#allocation11 + $0x498] sm:$0xff]
    %v1871 = vld [vmem:[#allocation11 + $0x4a0] sm:$0xff]
    %v1872 = vld [vmem:[#allocation11 + $0x4a8] sm:$0xff]
    %v1873 = vld [vmem:[#allocation11 + $0x4b0] sm:$0xff]
    %v1874 = vld [vmem:[#allocation11 + $0x4b8] sm:$0xff]
    %v1875 = vld [vmem:[#allocation11 + $0x4c0] sm:$0xff]
    %v1876 = vld [vmem:[#allocation11 + $0x4c8] sm:$0xff]
    %v1877 = vld [vmem:[#allocation11 + $0x4d0] sm:$0xff]
    %v1878 = vld [vmem:[#allocation11 + $0x4d8] sm:$0xff]
    %v1879 = vld [vmem:[#allocation11 + $0x4e0] sm:$0xff]
    %v1880 = vld [vmem:[#allocation11 + $0x4e8] sm:$0xff]
    %v1881 = vld [vmem:[#allocation11 + $0x4f0] sm:$0xff]
    %v1882 = vld [vmem:[#allocation11 + $0x4f8] sm:$0xff]
    %v1883 = vld [vmem:[#allocation11 + $0x500] sm:$0xff]
    %v1884 = vld [vmem:[#allocation11 + $0x508] sm:$0xff]
    %v1885 = vld [vmem:[#allocation11 + $0x510] sm:$0xff]
    %v1886 = vld [vmem:[#allocation11 + $0x518] sm:$0xff]
    %v1887 = vld [vmem:[#allocation11 + $0x520] sm:$0xff]
    %v1888 = vld [vmem:[#allocation11 + $0x528] sm:$0xff]
    %v1889 = vld [vmem:[#allocation11 + $0x530] sm:$0xff]
    %v1890 = vld [vmem:[#allocation11 + $0x538] sm:$0xff]
    %v1891 = vld [vmem:[#allocation11 + $0x540] sm:$0xff]
    %v1892 = vld [vmem:[#allocation11 + $0x548] sm:$0xff]
    %v1893 = vld [vmem:[#allocation11 + $0x550] sm:$0xff]
    %v1894 = vld [vmem:[#allocation11 + $0x558] sm:$0xff]
    %v1895 = vld [vmem:[#allocation11 + $0x560] sm:$0xff]
    %v1896 = vld [vmem:[#allocation11 + $0x568] sm:$0xff]
    %v1897 = vld [vmem:[#allocation11 + $0x570] sm:$0xff]
    %v1898 = vld [vmem:[#allocation11 + $0x578] sm:$0xff]
    %v1899 = vld [vmem:[#allocation11 + $0x580] sm:$0xff]
    %v1900 = vld [vmem:[#allocation11 + $0x588] sm:$0xff]
    %v1901 = vld [vmem:[#allocation11 + $0x590] sm:$0xff]
    %v1902 = vld [vmem:[#allocation11 + $0x598] sm:$0xff]
    %v1903 = vld [vmem:[#allocation11 + $0x5a0] sm:$0xff]
    %v1904 = vld [vmem:[#allocation11 + $0x5a8] sm:$0xff]
    %v1905 = vld [vmem:[#allocation11 + $0x5b0] sm:$0xff]
    %v1906 = vld [vmem:[#allocation11 + $0x5b8] sm:$0xff]
    %v1907 = vld [vmem:[#allocation11 + $0x5c0] sm:$0xff]
    %v1908 = vld [vmem:[#allocation11 + $0x5c8] sm:$0xff]
    %v1909 = vld [vmem:[#allocation11 + $0x5d0] sm:$0xff]
    %v1910 = vld [vmem:[#allocation11 + $0x5d8] sm:$0xff]
    %v1911 = vld [vmem:[#allocation11 + $0x5e0] sm:$0xff]
    %v1912 = vld [vmem:[#allocation11 + $0x5e8] sm:$0xff]
    %v1913 = vld [vmem:[#allocation11 + $0x5f0] sm:$0xff]
    %v1914 = vld [vmem:[#allocation11 + $0x5f8] sm:$0xff]
    %v1915 = vld [vmem:[#allocation11 + $0x600] sm:$0xff]
    %v1916 = vld [vmem:[#allocation11 + $0x608] sm:$0xff]
    %v1917 = vld [vmem:[#allocation11 + $0x610] sm:$0xff]
    %v1918 = vld [vmem:[#allocation11 + $0x618] sm:$0xff]
    %v1919 = vld [vmem:[#allocation11 + $0x620] sm:$0xff]
    %v1920 = vld [vmem:[#allocation11 + $0x628] sm:$0xff]
    %v1921 = vld [vmem:[#allocation11 + $0x630] sm:$0xff]
    %v1922 = vld [vmem:[#allocation11 + $0x638] sm:$0xff]
    %v1923 = vld [vmem:[#allocation11 + $0x640] sm:$0xff]
    %v1924 = vld [vmem:[#allocation11 + $0x648] sm:$0xff]
    %v1925 = vld [vmem:[#allocation11 + $0x650] sm:$0xff]
    %v1926 = vld [vmem:[#allocation11 + $0x658] sm:$0xff]
    %v1927 = vld [vmem:[#allocation11 + $0x660] sm:$0xff]
    %v1928 = vld [vmem:[#allocation11 + $0x668] sm:$0xff]
    %v1929 = vld [vmem:[#allocation11 + $0x670] sm:$0xff]
    %v1930 = vld [vmem:[#allocation11 + $0x678] sm:$0xff]
    %v1931 = vld [vmem:[#allocation11 + $0x680] sm:$0xff]
    %v1932 = vld [vmem:[#allocation11 + $0x688] sm:$0xff]
    %v1933 = vld [vmem:[#allocation11 + $0x690] sm:$0xff]
    %v1934 = vld [vmem:[#allocation11 + $0x698] sm:$0xff]
    %v1935 = vld [vmem:[#allocation11 + $0x6a0] sm:$0xff]
    %v1936 = vld [vmem:[#allocation11 + $0x6a8] sm:$0xff]
    %v1937 = vld [vmem:[#allocation11 + $0x6b0] sm:$0xff]
    %v1938 = vld [vmem:[#allocation11 + $0x6b8] sm:$0xff]
    %v1939 = vld [vmem:[#allocation11 + $0x6c0] sm:$0xff]
    %v1940 = vld [vmem:[#allocation11 + $0x6c8] sm:$0xff]
    %v1941 = vld [vmem:[#allocation11 + $0x6d0] sm:$0xff]
    %v1942 = vld [vmem:[#allocation11 + $0x6d8] sm:$0xff]
    %v1943 = vld [vmem:[#allocation11 + $0x6e0] sm:$0xff]
    %v1944 = vld [vmem:[#allocation11 + $0x6e8] sm:$0xff]
    %v1945 = vld [vmem:[#allocation11 + $0x6f0] sm:$0xff]
    %v1946 = vld [vmem:[#allocation11 + $0x6f8] sm:$0xff]
    %v1947 = vld [vmem:[#allocation11 + $0x700] sm:$0xff]
    %v1948 = vld [vmem:[#allocation11 + $0x708] sm:$0xff]
    %v1949 = vld [vmem:[#allocation11 + $0x710] sm:$0xff]
    %v1950 = vld [vmem:[#allocation11 + $0x718] sm:$0xff]
    %v1951 = vld [vmem:[#allocation11 + $0x720] sm:$0xff]
    %v1952 = vld [vmem:[#allocation11 + $0x728] sm:$0xff]
    %v1953 = vld [vmem:[#allocation11 + $0x730] sm:$0xff]
    %v1954 = vld [vmem:[#allocation11 + $0x738] sm:$0xff]
    %v1955 = vld [vmem:[#allocation11 + $0x740] sm:$0xff]
    %v1956 = vld [vmem:[#allocation11 + $0x748] sm:$0xff]
    %v1957 = vld [vmem:[#allocation11 + $0x750] sm:$0xff]
    %v1958 = vld [vmem:[#allocation11 + $0x758] sm:$0xff]
    %v1959 = vld [vmem:[#allocation11 + $0x760] sm:$0xff]
    %v1960 = vld [vmem:[#allocation11 + $0x768] sm:$0xff]
    %v1961 = vld [vmem:[#allocation11 + $0x770] sm:$0xff]
    %v1962 = vld [vmem:[#allocation11 + $0x778] sm:$0xff]
    %v1963 = vld [vmem:[#allocation11 + $0x780] sm:$0xff]
    %v1964 = vld [vmem:[#allocation11 + $0x788] sm:$0xff]
    %v1965 = vld [vmem:[#allocation11 + $0x790] sm:$0xff]
    %v1966 = vld [vmem:[#allocation11 + $0x798] sm:$0xff]
    %v1967 = vld [vmem:[#allocation11 + $0x7a0] sm:$0xff]
    %v1968 = vld [vmem:[#allocation11 + $0x7a8] sm:$0xff]
    %v1969 = vld [vmem:[#allocation11 + $0x7b0] sm:$0xff]
    %v1970 = vld [vmem:[#allocation11 + $0x7b8] sm:$0xff]
    %v1971 = vld [vmem:[#allocation11 + $0x7c0] sm:$0xff]
    %v1972 = vld [vmem:[#allocation11 + $0x7c8] sm:$0xff]
    %v1973 = vld [vmem:[#allocation11 + $0x7d0] sm:$0xff]
    %v1974 = vld [vmem:[#allocation11 + $0x7d8] sm:$0xff]
    %v1975 = vld [vmem:[#allocation11 + $0x7e0] sm:$0xff]
    %v1976 = vld [vmem:[#allocation11 + $0x7e8] sm:$0xff]
    %v1977 = vld [vmem:[#allocation11 + $0x7f0] sm:$0xff]
    %v1978 = vld [vmem:[#allocation11 + $0x7f8] sm:$0xff]
    %v1979 = vld [vmem:[#allocation13] sm:$0xff]
    %v1980 = vld [vmem:[#allocation13 + $0x8] sm:$0xff]
    %v1981 = vpack.c.bf16 %v1715, %v1707
    %v1982 = vpack.c.bf16 %v1716, %v1708
    %v1983 = vpack.c.bf16 %v1717, %v1709
    %v1984 = vpack.c.bf16 %v1718, %v1710
    %v1985 = vpack.c.bf16 %v1719, %v1711
    %v1986 = vpack.c.bf16 %v1720, %v1712
    %v1987 = vpack.c.bf16 %v1721, %v1713
    %v1988 = vpack.c.bf16 %v1722, %v1714
    %v1991 = vperm.slane %v1979, 0
    %v1992 = vperm.slane %v1979, 4
    %v1993 = vperm.slane %v1980, 0
    %v1994 = vperm.slane %v1980, 4
    %v1999 = vperm.slane %v1991, 0
    %v2000 = vperm.slane %v1992, 0
    %v2001 = vperm.slane %v1993, 0
    %v2002 = vperm.slane %v1994, 0
    %v2259 = vunpack.c.l.b16 %v1723
    %v2260 = vunpack.c.h.b16 %v1723
    %v2261 = vunpack.c.l.b16 %v1724
    %v2262 = vunpack.c.h.b16 %v1724
    %v2263 = vunpack.c.l.b16 %v1725
    %v2264 = vunpack.c.h.b16 %v1725
    %v2265 = vunpack.c.l.b16 %v1726
    %v2266 = vunpack.c.h.b16 %v1726
    %v2267 = vunpack.c.l.b16 %v1727
    %v2268 = vunpack.c.h.b16 %v1727
    %v2269 = vunpack.c.l.b16 %v1728
    %v2270 = vunpack.c.h.b16 %v1728
    %v2271 = vunpack.c.l.b16 %v1729
    %v2272 = vunpack.c.h.b16 %v1729
    %v2273 = vunpack.c.l.b16 %v1730
    %v2274 = vunpack.c.h.b16 %v1730
    %v2275 = vunpack.c.l.b16 %v1731
    %v2276 = vunpack.c.h.b16 %v1731
    %v2277 = vunpack.c.l.b16 %v1732
    %v2278 = vunpack.c.h.b16 %v1732
    %v2279 = vunpack.c.l.b16 %v1733
    %v2280 = vunpack.c.h.b16 %v1733
    %v2281 = vunpack.c.l.b16 %v1734
    %v2282 = vunpack.c.h.b16 %v1734
    %v2283 = vunpack.c.l.b16 %v1735
    %v2284 = vunpack.c.h.b16 %v1735
    %v2285 = vunpack.c.l.b16 %v1736
    %v2286 = vunpack.c.h.b16 %v1736
    %v2287 = vunpack.c.l.b16 %v1737
    %v2288 = vunpack.c.h.b16 %v1737
    %v2289 = vunpack.c.l.b16 %v1738
    %v2290 = vunpack.c.h.b16 %v1738
    %v2291 = vunpack.c.l.b16 %v1739
    %v2292 = vunpack.c.h.b16 %v1739
    %v2293 = vunpack.c.l.b16 %v1740
    %v2294 = vunpack.c.h.b16 %v1740
    %v2295 = vunpack.c.l.b16 %v1741
    %v2296 = vunpack.c.h.b16 %v1741
    %v2297 = vunpack.c.l.b16 %v1742
    %v2298 = vunpack.c.h.b16 %v1742
    %v2299 = vunpack.c.l.b16 %v1743
    %v2300 = vunpack.c.h.b16 %v1743
    %v2301 = vunpack.c.l.b16 %v1744
    %v2302 = vunpack.c.h.b16 %v1744
    %v2303 = vunpack.c.l.b16 %v1745
    %v2304 = vunpack.c.h.b16 %v1745
    %v2305 = vunpack.c.l.b16 %v1746
    %v2306 = vunpack.c.h.b16 %v1746
    %v2307 = vunpack.c.l.b16 %v1747
    %v2308 = vunpack.c.h.b16 %v1747
    %v2309 = vunpack.c.l.b16 %v1748
    %v2310 = vunpack.c.h.b16 %v1748
    %v2311 = vunpack.c.l.b16 %v1749
    %v2312 = vunpack.c.h.b16 %v1749
    %v2313 = vunpack.c.l.b16 %v1750
    %v2314 = vunpack.c.h.b16 %v1750
    %v2315 = vunpack.c.l.b16 %v1751
    %v2316 = vunpack.c.h.b16 %v1751
    %v2317 = vunpack.c.l.b16 %v1752
    %v2318 = vunpack.c.h.b16 %v1752
    %v2319 = vunpack.c.l.b16 %v1753
    %v2320 = vunpack.c.h.b16 %v1753
    %v2321 = vunpack.c.l.b16 %v1754
    %v2322 = vunpack.c.h.b16 %v1754
    %v2323 = vunpack.c.l.b16 %v1755
    %v2324 = vunpack.c.h.b16 %v1755
    %v2325 = vunpack.c.l.b16 %v1756
    %v2326 = vunpack.c.h.b16 %v1756
    %v2327 = vunpack.c.l.b16 %v1757
    %v2328 = vunpack.c.h.b16 %v1757
    %v2329 = vunpack.c.l.b16 %v1758
    %v2330 = vunpack.c.h.b16 %v1758
    %v2331 = vunpack.c.l.b16 %v1759
    %v2332 = vunpack.c.h.b16 %v1759
    %v2333 = vunpack.c.l.b16 %v1760
    %v2334 = vunpack.c.h.b16 %v1760
    %v2335 = vunpack.c.l.b16 %v1761
    %v2336 = vunpack.c.h.b16 %v1761
    %v2337 = vunpack.c.l.b16 %v1762
    %v2338 = vunpack.c.h.b16 %v1762
    %v2339 = vunpack.c.l.b16 %v1763
    %v2340 = vunpack.c.h.b16 %v1763
    %v2341 = vunpack.c.l.b16 %v1764
    %v2342 = vunpack.c.h.b16 %v1764
    %v2343 = vunpack.c.l.b16 %v1765
    %v2344 = vunpack.c.h.b16 %v1765
    %v2345 = vunpack.c.l.b16 %v1766
    %v2346 = vunpack.c.h.b16 %v1766
    %v2347 = vunpack.c.l.b16 %v1767
    %v2348 = vunpack.c.h.b16 %v1767
    %v2349 = vunpack.c.l.b16 %v1768
    %v2350 = vunpack.c.h.b16 %v1768
    %v2351 = vunpack.c.l.b16 %v1769
    %v2352 = vunpack.c.h.b16 %v1769
    %v2353 = vunpack.c.l.b16 %v1770
    %v2354 = vunpack.c.h.b16 %v1770
    %v2355 = vunpack.c.l.b16 %v1771
    %v2356 = vunpack.c.h.b16 %v1771
    %v2357 = vunpack.c.l.b16 %v1772
    %v2358 = vunpack.c.h.b16 %v1772
    %v2359 = vunpack.c.l.b16 %v1773
    %v2360 = vunpack.c.h.b16 %v1773
    %v2361 = vunpack.c.l.b16 %v1774
    %v2362 = vunpack.c.h.b16 %v1774
    %v2363 = vunpack.c.l.b16 %v1775
    %v2364 = vunpack.c.h.b16 %v1775
    %v2365 = vunpack.c.l.b16 %v1776
    %v2366 = vunpack.c.h.b16 %v1776
    %v2367 = vunpack.c.l.b16 %v1777
    %v2368 = vunpack.c.h.b16 %v1777
    %v2369 = vunpack.c.l.b16 %v1778
    %v2370 = vunpack.c.h.b16 %v1778
    %v2371 = vunpack.c.l.b16 %v1779
    %v2372 = vunpack.c.h.b16 %v1779
    %v2373 = vunpack.c.l.b16 %v1780
    %v2374 = vunpack.c.h.b16 %v1780
    %v2375 = vunpack.c.l.b16 %v1781
    %v2376 = vunpack.c.h.b16 %v1781
    %v2377 = vunpack.c.l.b16 %v1782
    %v2378 = vunpack.c.h.b16 %v1782
    %v2379 = vunpack.c.l.b16 %v1783
    %v2380 = vunpack.c.h.b16 %v1783
    %v2381 = vunpack.c.l.b16 %v1784
    %v2382 = vunpack.c.h.b16 %v1784
    %v2383 = vunpack.c.l.b16 %v1785
    %v2384 = vunpack.c.h.b16 %v1785
    %v2385 = vunpack.c.l.b16 %v1786
    %v2386 = vunpack.c.h.b16 %v1786
    %v2387 = vunpack.c.l.b16 %v1787
    %v2388 = vunpack.c.h.b16 %v1787
    %v2389 = vunpack.c.l.b16 %v1788
    %v2390 = vunpack.c.h.b16 %v1788
    %v2391 = vunpack.c.l.b16 %v1789
    %v2392 = vunpack.c.h.b16 %v1789
    %v2393 = vunpack.c.l.b16 %v1790
    %v2394 = vunpack.c.h.b16 %v1790
    %v2395 = vunpack.c.l.b16 %v1791
    %v2396 = vunpack.c.h.b16 %v1791
    %v2397 = vunpack.c.l.b16 %v1792
    %v2398 = vunpack.c.h.b16 %v1792
    %v2399 = vunpack.c.l.b16 %v1793
    %v2400 = vunpack.c.h.b16 %v1793
    %v2401 = vunpack.c.l.b16 %v1794
    %v2402 = vunpack.c.h.b16 %v1794
    %v2403 = vunpack.c.l.b16 %v1795
    %v2404 = vunpack.c.h.b16 %v1795
    %v2405 = vunpack.c.l.b16 %v1796
    %v2406 = vunpack.c.h.b16 %v1796
    %v2407 = vunpack.c.l.b16 %v1797
    %v2408 = vunpack.c.h.b16 %v1797
    %v2409 = vunpack.c.l.b16 %v1798
    %v2410 = vunpack.c.h.b16 %v1798
    %v2411 = vunpack.c.l.b16 %v1799
    %v2412 = vunpack.c.h.b16 %v1799
    %v2413 = vunpack.c.l.b16 %v1800
    %v2414 = vunpack.c.h.b16 %v1800
    %v2415 = vunpack.c.l.b16 %v1801
    %v2416 = vunpack.c.h.b16 %v1801
    %v2417 = vunpack.c.l.b16 %v1802
    %v2418 = vunpack.c.h.b16 %v1802
    %v2419 = vunpack.c.l.b16 %v1803
    %v2420 = vunpack.c.h.b16 %v1803
    %v2421 = vunpack.c.l.b16 %v1804
    %v2422 = vunpack.c.h.b16 %v1804
    %v2423 = vunpack.c.l.b16 %v1805
    %v2424 = vunpack.c.h.b16 %v1805
    %v2425 = vunpack.c.l.b16 %v1806
    %v2426 = vunpack.c.h.b16 %v1806
    %v2427 = vunpack.c.l.b16 %v1807
    %v2428 = vunpack.c.h.b16 %v1807
    %v2429 = vunpack.c.l.b16 %v1808
    %v2430 = vunpack.c.h.b16 %v1808
    %v2431 = vunpack.c.l.b16 %v1809
    %v2432 = vunpack.c.h.b16 %v1809
    %v2433 = vunpack.c.l.b16 %v1810
    %v2434 = vunpack.c.h.b16 %v1810
    %v2435 = vunpack.c.l.b16 %v1811
    %v2436 = vunpack.c.h.b16 %v1811
    %v2437 = vunpack.c.l.b16 %v1812
    %v2438 = vunpack.c.h.b16 %v1812
    %v2439 = vunpack.c.l.b16 %v1813
    %v2440 = vunpack.c.h.b16 %v1813
    %v2441 = vunpack.c.l.b16 %v1814
    %v2442 = vunpack.c.h.b16 %v1814
    %v2443 = vunpack.c.l.b16 %v1815
    %v2444 = vunpack.c.h.b16 %v1815
    %v2445 = vunpack.c.l.b16 %v1816
    %v2446 = vunpack.c.h.b16 %v1816
    %v2447 = vunpack.c.l.b16 %v1817
    %v2448 = vunpack.c.h.b16 %v1817
    %v2449 = vunpack.c.l.b16 %v1818
    %v2450 = vunpack.c.h.b16 %v1818
    %v2451 = vunpack.c.l.b16 %v1819
    %v2452 = vunpack.c.h.b16 %v1819
    %v2453 = vunpack.c.l.b16 %v1820
    %v2454 = vunpack.c.h.b16 %v1820
    %v2455 = vunpack.c.l.b16 %v1821
    %v2456 = vunpack.c.h.b16 %v1821
    %v2457 = vunpack.c.l.b16 %v1822
    %v2458 = vunpack.c.h.b16 %v1822
    %v2459 = vunpack.c.l.b16 %v1823
    %v2460 = vunpack.c.h.b16 %v1823
    %v2461 = vunpack.c.l.b16 %v1824
    %v2462 = vunpack.c.h.b16 %v1824
    %v2463 = vunpack.c.l.b16 %v1825
    %v2464 = vunpack.c.h.b16 %v1825
    %v2465 = vunpack.c.l.b16 %v1826
    %v2466 = vunpack.c.h.b16 %v1826
    %v2467 = vunpack.c.l.b16 %v1827
    %v2468 = vunpack.c.h.b16 %v1827
    %v2469 = vunpack.c.l.b16 %v1828
    %v2470 = vunpack.c.h.b16 %v1828
    %v2471 = vunpack.c.l.b16 %v1829
    %v2472 = vunpack.c.h.b16 %v1829
    %v2473 = vunpack.c.l.b16 %v1830
    %v2474 = vunpack.c.h.b16 %v1830
    %v2475 = vunpack.c.l.b16 %v1831
    %v2476 = vunpack.c.h.b16 %v1831
    %v2477 = vunpack.c.l.b16 %v1832
    %v2478 = vunpack.c.h.b16 %v1832
    %v2479 = vunpack.c.l.b16 %v1833
    %v2480 = vunpack.c.h.b16 %v1833
    %v2481 = vunpack.c.l.b16 %v1834
    %v2482 = vunpack.c.h.b16 %v1834
    %v2483 = vunpack.c.l.b16 %v1835
    %v2484 = vunpack.c.h.b16 %v1835
    %v2485 = vunpack.c.l.b16 %v1836
    %v2486 = vunpack.c.h.b16 %v1836
    %v2487 = vunpack.c.l.b16 %v1837
    %v2488 = vunpack.c.h.b16 %v1837
    %v2489 = vunpack.c.l.b16 %v1838
    %v2490 = vunpack.c.h.b16 %v1838
    %v2491 = vunpack.c.l.b16 %v1839
    %v2492 = vunpack.c.h.b16 %v1839
    %v2493 = vunpack.c.l.b16 %v1840
    %v2494 = vunpack.c.h.b16 %v1840
    %v2495 = vunpack.c.l.b16 %v1841
    %v2496 = vunpack.c.h.b16 %v1841
    %v2497 = vunpack.c.l.b16 %v1842
    %v2498 = vunpack.c.h.b16 %v1842
    %v2499 = vunpack.c.l.b16 %v1843
    %v2500 = vunpack.c.h.b16 %v1843
    %v2501 = vunpack.c.l.b16 %v1844
    %v2502 = vunpack.c.h.b16 %v1844
    %v2503 = vunpack.c.l.b16 %v1845
    %v2504 = vunpack.c.h.b16 %v1845
    %v2505 = vunpack.c.l.b16 %v1846
    %v2506 = vunpack.c.h.b16 %v1846
    %v2507 = vunpack.c.l.b16 %v1847
    %v2508 = vunpack.c.h.b16 %v1847
    %v2509 = vunpack.c.l.b16 %v1848
    %v2510 = vunpack.c.h.b16 %v1848
    %v2511 = vunpack.c.l.b16 %v1849
    %v2512 = vunpack.c.h.b16 %v1849
    %v2513 = vunpack.c.l.b16 %v1850
    %v2514 = vunpack.c.h.b16 %v1850
    %v2515 = vunpack.c.l.b16 %v1851
    %v2516 = vunpack.c.h.b16 %v1851
    %v2517 = vunpack.c.l.b16 %v1852
    %v2518 = vunpack.c.h.b16 %v1852
    %v2519 = vunpack.c.l.b16 %v1853
    %v2520 = vunpack.c.h.b16 %v1853
    %v2521 = vunpack.c.l.b16 %v1854
    %v2522 = vunpack.c.h.b16 %v1854
    %v2523 = vunpack.c.l.b16 %v1855
    %v2524 = vunpack.c.h.b16 %v1855
    %v2525 = vunpack.c.l.b16 %v1856
    %v2526 = vunpack.c.h.b16 %v1856
    %v2527 = vunpack.c.l.b16 %v1857
    %v2528 = vunpack.c.h.b16 %v1857
    %v2529 = vunpack.c.l.b16 %v1858
    %v2530 = vunpack.c.h.b16 %v1858
    %v2531 = vunpack.c.l.b16 %v1859
    %v2532 = vunpack.c.h.b16 %v1859
    %v2533 = vunpack.c.l.b16 %v1860
    %v2534 = vunpack.c.h.b16 %v1860
    %v2535 = vunpack.c.l.b16 %v1861
    %v2536 = vunpack.c.h.b16 %v1861
    %v2537 = vunpack.c.l.b16 %v1862
    %v2538 = vunpack.c.h.b16 %v1862
    %v2539 = vunpack.c.l.b16 %v1863
    %v2540 = vunpack.c.h.b16 %v1863
    %v2541 = vunpack.c.l.b16 %v1864
    %v2542 = vunpack.c.h.b16 %v1864
    %v2543 = vunpack.c.l.b16 %v1865
    %v2544 = vunpack.c.h.b16 %v1865
    %v2545 = vunpack.c.l.b16 %v1866
    %v2546 = vunpack.c.h.b16 %v1866
    %v2547 = vunpack.c.l.b16 %v1867
    %v2548 = vunpack.c.h.b16 %v1867
    %v2549 = vunpack.c.l.b16 %v1868
    %v2550 = vunpack.c.h.b16 %v1868
    %v2551 = vunpack.c.l.b16 %v1869
    %v2552 = vunpack.c.h.b16 %v1869
    %v2553 = vunpack.c.l.b16 %v1870
    %v2554 = vunpack.c.h.b16 %v1870
    %v2555 = vunpack.c.l.b16 %v1871
    %v2556 = vunpack.c.h.b16 %v1871
    %v2557 = vunpack.c.l.b16 %v1872
    %v2558 = vunpack.c.h.b16 %v1872
    %v2559 = vunpack.c.l.b16 %v1873
    %v2560 = vunpack.c.h.b16 %v1873
    %v2561 = vunpack.c.l.b16 %v1874
    %v2562 = vunpack.c.h.b16 %v1874
    %v2563 = vunpack.c.l.b16 %v1875
    %v2564 = vunpack.c.h.b16 %v1875
    %v2565 = vunpack.c.l.b16 %v1876
    %v2566 = vunpack.c.h.b16 %v1876
    %v2567 = vunpack.c.l.b16 %v1877
    %v2568 = vunpack.c.h.b16 %v1877
    %v2569 = vunpack.c.l.b16 %v1878
    %v2570 = vunpack.c.h.b16 %v1878
    %v2571 = vunpack.c.l.b16 %v1879
    %v2572 = vunpack.c.h.b16 %v1879
    %v2573 = vunpack.c.l.b16 %v1880
    %v2574 = vunpack.c.h.b16 %v1880
    %v2575 = vunpack.c.l.b16 %v1881
    %v2576 = vunpack.c.h.b16 %v1881
    %v2577 = vunpack.c.l.b16 %v1882
    %v2578 = vunpack.c.h.b16 %v1882
    %v2579 = vunpack.c.l.b16 %v1883
    %v2580 = vunpack.c.h.b16 %v1883
    %v2581 = vunpack.c.l.b16 %v1884
    %v2582 = vunpack.c.h.b16 %v1884
    %v2583 = vunpack.c.l.b16 %v1885
    %v2584 = vunpack.c.h.b16 %v1885
    %v2585 = vunpack.c.l.b16 %v1886
    %v2586 = vunpack.c.h.b16 %v1886
    %v2587 = vunpack.c.l.b16 %v1887
    %v2588 = vunpack.c.h.b16 %v1887
    %v2589 = vunpack.c.l.b16 %v1888
    %v2590 = vunpack.c.h.b16 %v1888
    %v2591 = vunpack.c.l.b16 %v1889
    %v2592 = vunpack.c.h.b16 %v1889
    %v2593 = vunpack.c.l.b16 %v1890
    %v2594 = vunpack.c.h.b16 %v1890
    %v2595 = vunpack.c.l.b16 %v1891
    %v2596 = vunpack.c.h.b16 %v1891
    %v2597 = vunpack.c.l.b16 %v1892
    %v2598 = vunpack.c.h.b16 %v1892
    %v2599 = vunpack.c.l.b16 %v1893
    %v2600 = vunpack.c.h.b16 %v1893
    %v2601 = vunpack.c.l.b16 %v1894
    %v2602 = vunpack.c.h.b16 %v1894
    %v2603 = vunpack.c.l.b16 %v1895
    %v2604 = vunpack.c.h.b16 %v1895
    %v2605 = vunpack.c.l.b16 %v1896
    %v2606 = vunpack.c.h.b16 %v1896
    %v2607 = vunpack.c.l.b16 %v1897
    %v2608 = vunpack.c.h.b16 %v1897
    %v2609 = vunpack.c.l.b16 %v1898
    %v2610 = vunpack.c.h.b16 %v1898
    %v2611 = vunpack.c.l.b16 %v1899
    %v2612 = vunpack.c.h.b16 %v1899
    %v2613 = vunpack.c.l.b16 %v1900
    %v2614 = vunpack.c.h.b16 %v1900
    %v2615 = vunpack.c.l.b16 %v1901
    %v2616 = vunpack.c.h.b16 %v1901
    %v2617 = vunpack.c.l.b16 %v1902
    %v2618 = vunpack.c.h.b16 %v1902
    %v2619 = vunpack.c.l.b16 %v1903
    %v2620 = vunpack.c.h.b16 %v1903
    %v2621 = vunpack.c.l.b16 %v1904
    %v2622 = vunpack.c.h.b16 %v1904
    %v2623 = vunpack.c.l.b16 %v1905
    %v2624 = vunpack.c.h.b16 %v1905
    %v2625 = vunpack.c.l.b16 %v1906
    %v2626 = vunpack.c.h.b16 %v1906
    %v2627 = vunpack.c.l.b16 %v1907
    %v2628 = vunpack.c.h.b16 %v1907
    %v2629 = vunpack.c.l.b16 %v1908
    %v2630 = vunpack.c.h.b16 %v1908
    %v2631 = vunpack.c.l.b16 %v1909
    %v2632 = vunpack.c.h.b16 %v1909
    %v2633 = vunpack.c.l.b16 %v1910
    %v2634 = vunpack.c.h.b16 %v1910
    %v2635 = vunpack.c.l.b16 %v1911
    %v2636 = vunpack.c.h.b16 %v1911
    %v2637 = vunpack.c.l.b16 %v1912
    %v2638 = vunpack.c.h.b16 %v1912
    %v2639 = vunpack.c.l.b16 %v1913
    %v2640 = vunpack.c.h.b16 %v1913
    %v2641 = vunpack.c.l.b16 %v1914
    %v2642 = vunpack.c.h.b16 %v1914
    %v2643 = vunpack.c.l.b16 %v1915
    %v2644 = vunpack.c.h.b16 %v1915
    %v2645 = vunpack.c.l.b16 %v1916
    %v2646 = vunpack.c.h.b16 %v1916
    %v2647 = vunpack.c.l.b16 %v1917
    %v2648 = vunpack.c.h.b16 %v1917
    %v2649 = vunpack.c.l.b16 %v1918
    %v2650 = vunpack.c.h.b16 %v1918
    %v2651 = vunpack.c.l.b16 %v1919
    %v2652 = vunpack.c.h.b16 %v1919
    %v2653 = vunpack.c.l.b16 %v1920
    %v2654 = vunpack.c.h.b16 %v1920
    %v2655 = vunpack.c.l.b16 %v1921
    %v2656 = vunpack.c.h.b16 %v1921
    %v2657 = vunpack.c.l.b16 %v1922
    %v2658 = vunpack.c.h.b16 %v1922
    %v2659 = vunpack.c.l.b16 %v1923
    %v2660 = vunpack.c.h.b16 %v1923
    %v2661 = vunpack.c.l.b16 %v1924
    %v2662 = vunpack.c.h.b16 %v1924
    %v2663 = vunpack.c.l.b16 %v1925
    %v2664 = vunpack.c.h.b16 %v1925
    %v2665 = vunpack.c.l.b16 %v1926
    %v2666 = vunpack.c.h.b16 %v1926
    %v2667 = vunpack.c.l.b16 %v1927
    %v2668 = vunpack.c.h.b16 %v1927
    %v2669 = vunpack.c.l.b16 %v1928
    %v2670 = vunpack.c.h.b16 %v1928
    %v2671 = vunpack.c.l.b16 %v1929
    %v2672 = vunpack.c.h.b16 %v1929
    %v2673 = vunpack.c.l.b16 %v1930
    %v2674 = vunpack.c.h.b16 %v1930
    %v2675 = vunpack.c.l.b16 %v1931
    %v2676 = vunpack.c.h.b16 %v1931
    %v2677 = vunpack.c.l.b16 %v1932
    %v2678 = vunpack.c.h.b16 %v1932
    %v2679 = vunpack.c.l.b16 %v1933
    %v2680 = vunpack.c.h.b16 %v1933
    %v2681 = vunpack.c.l.b16 %v1934
    %v2682 = vunpack.c.h.b16 %v1934
    %v2683 = vunpack.c.l.b16 %v1935
    %v2684 = vunpack.c.h.b16 %v1935
    %v2685 = vunpack.c.l.b16 %v1936
    %v2686 = vunpack.c.h.b16 %v1936
    %v2687 = vunpack.c.l.b16 %v1937
    %v2688 = vunpack.c.h.b16 %v1937
    %v2689 = vunpack.c.l.b16 %v1938
    %v2690 = vunpack.c.h.b16 %v1938
    %v2691 = vunpack.c.l.b16 %v1939
    %v2692 = vunpack.c.h.b16 %v1939
    %v2693 = vunpack.c.l.b16 %v1940
    %v2694 = vunpack.c.h.b16 %v1940
    %v2695 = vunpack.c.l.b16 %v1941
    %v2696 = vunpack.c.h.b16 %v1941
    %v2697 = vunpack.c.l.b16 %v1942
    %v2698 = vunpack.c.h.b16 %v1942
    %v2699 = vunpack.c.l.b16 %v1943
    %v2700 = vunpack.c.h.b16 %v1943
    %v2701 = vunpack.c.l.b16 %v1944
    %v2702 = vunpack.c.h.b16 %v1944
    %v2703 = vunpack.c.l.b16 %v1945
    %v2704 = vunpack.c.h.b16 %v1945
    %v2705 = vunpack.c.l.b16 %v1946
    %v2706 = vunpack.c.h.b16 %v1946
    %v2707 = vunpack.c.l.b16 %v1947
    %v2708 = vunpack.c.h.b16 %v1947
    %v2709 = vunpack.c.l.b16 %v1948
    %v2710 = vunpack.c.h.b16 %v1948
    %v2711 = vunpack.c.l.b16 %v1949
    %v2712 = vunpack.c.h.b16 %v1949
    %v2713 = vunpack.c.l.b16 %v1950
    %v2714 = vunpack.c.h.b16 %v1950
    %v2715 = vunpack.c.l.b16 %v1951
    %v2716 = vunpack.c.h.b16 %v1951
    %v2717 = vunpack.c.l.b16 %v1952
    %v2718 = vunpack.c.h.b16 %v1952
    %v2719 = vunpack.c.l.b16 %v1953
    %v2720 = vunpack.c.h.b16 %v1953
    %v2721 = vunpack.c.l.b16 %v1954
    %v2722 = vunpack.c.h.b16 %v1954
    %v2723 = vunpack.c.l.b16 %v1955
    %v2724 = vunpack.c.h.b16 %v1955
    %v2725 = vunpack.c.l.b16 %v1956
    %v2726 = vunpack.c.h.b16 %v1956
    %v2727 = vunpack.c.l.b16 %v1957
    %v2728 = vunpack.c.h.b16 %v1957
    %v2729 = vunpack.c.l.b16 %v1958
    %v2730 = vunpack.c.h.b16 %v1958
    %v2731 = vunpack.c.l.b16 %v1959
    %v2732 = vunpack.c.h.b16 %v1959
    %v2733 = vunpack.c.l.b16 %v1960
    %v2734 = vunpack.c.h.b16 %v1960
    %v2735 = vunpack.c.l.b16 %v1961
    %v2736 = vunpack.c.h.b16 %v1961
    %v2737 = vunpack.c.l.b16 %v1962
    %v2738 = vunpack.c.h.b16 %v1962
    %v2739 = vunpack.c.l.b16 %v1963
    %v2740 = vunpack.c.h.b16 %v1963
    %v2741 = vunpack.c.l.b16 %v1964
    %v2742 = vunpack.c.h.b16 %v1964
    %v2743 = vunpack.c.l.b16 %v1965
    %v2744 = vunpack.c.h.b16 %v1965
    %v2745 = vunpack.c.l.b16 %v1966
    %v2746 = vunpack.c.h.b16 %v1966
    %v2747 = vunpack.c.l.b16 %v1967
    %v2748 = vunpack.c.h.b16 %v1967
    %v2749 = vunpack.c.l.b16 %v1968
    %v2750 = vunpack.c.h.b16 %v1968
    %v2751 = vunpack.c.l.b16 %v1969
    %v2752 = vunpack.c.h.b16 %v1969
    %v2753 = vunpack.c.l.b16 %v1970
    %v2754 = vunpack.c.h.b16 %v1970
    %v2755 = vunpack.c.l.b16 %v1971
    %v2756 = vunpack.c.h.b16 %v1971
    %v2757 = vunpack.c.l.b16 %v1972
    %v2758 = vunpack.c.h.b16 %v1972
    %v2759 = vunpack.c.l.b16 %v1973
    %v2760 = vunpack.c.h.b16 %v1973
    %v2761 = vunpack.c.l.b16 %v1974
    %v2762 = vunpack.c.h.b16 %v1974
    %v2763 = vunpack.c.l.b16 %v1975
    %v2764 = vunpack.c.h.b16 %v1975
    %v2765 = vunpack.c.l.b16 %v1976
    %v2766 = vunpack.c.h.b16 %v1976
    %v2767 = vunpack.c.l.b16 %v1977
    %v2768 = vunpack.c.h.b16 %v1977
    %v2769 = vunpack.c.l.b16 %v1978
    %v2770 = vunpack.c.h.b16 %v1978
    %v2771 = vpack.c.b16 %v2263, %v2259
    %v2772 = vpack.c.b16 %v2264, %v2260
    %v2773 = vpack.c.b16 %v2265, %v2261
    %v2774 = vpack.c.b16 %v2266, %v2262
    %v2775 = vpack.c.b16 %v2271, %v2267
    %v2776 = vpack.c.b16 %v2272, %v2268
    %v2777 = vpack.c.b16 %v2273, %v2269
    %v2778 = vpack.c.b16 %v2274, %v2270
    %v2779 = vpack.c.b16 %v2279, %v2275
    %v2780 = vpack.c.b16 %v2280, %v2276
    %v2781 = vpack.c.b16 %v2281, %v2277
    %v2782 = vpack.c.b16 %v2282, %v2278
    %v2783 = vpack.c.b16 %v2287, %v2283
    %v2784 = vpack.c.b16 %v2288, %v2284
    %v2785 = vpack.c.b16 %v2289, %v2285
    %v2786 = vpack.c.b16 %v2290, %v2286
    %v2787 = vpack.c.b16 %v2295, %v2291
    %v2788 = vpack.c.b16 %v2296, %v2292
    %v2789 = vpack.c.b16 %v2297, %v2293
    %v2790 = vpack.c.b16 %v2298, %v2294
    %v2791 = vpack.c.b16 %v2303, %v2299
    %v2792 = vpack.c.b16 %v2304, %v2300
    %v2793 = vpack.c.b16 %v2305, %v2301
    %v2794 = vpack.c.b16 %v2306, %v2302
    %v2795 = vpack.c.b16 %v2311, %v2307
    %v2796 = vpack.c.b16 %v2312, %v2308
    %v2797 = vpack.c.b16 %v2313, %v2309
    %v2798 = vpack.c.b16 %v2314, %v2310
    %v2799 = vpack.c.b16 %v2319, %v2315
    %v2800 = vpack.c.b16 %v2320, %v2316
    %v2801 = vpack.c.b16 %v2321, %v2317
    %v2802 = vpack.c.b16 %v2322, %v2318
    %v2803 = vpack.c.b16 %v2327, %v2323
    %v2804 = vpack.c.b16 %v2328, %v2324
    %v2805 = vpack.c.b16 %v2329, %v2325
    %v2806 = vpack.c.b16 %v2330, %v2326
    %v2807 = vpack.c.b16 %v2335, %v2331
    %v2808 = vpack.c.b16 %v2336, %v2332
    %v2809 = vpack.c.b16 %v2337, %v2333
    %v2810 = vpack.c.b16 %v2338, %v2334
    %v2811 = vpack.c.b16 %v2343, %v2339
    %v2812 = vpack.c.b16 %v2344, %v2340
    %v2813 = vpack.c.b16 %v2345, %v2341
    %v2814 = vpack.c.b16 %v2346, %v2342
    %v2815 = vpack.c.b16 %v2351, %v2347
    %v2816 = vpack.c.b16 %v2352, %v2348
    %v2817 = vpack.c.b16 %v2353, %v2349
    %v2818 = vpack.c.b16 %v2354, %v2350
    %v2819 = vpack.c.b16 %v2359, %v2355
    %v2820 = vpack.c.b16 %v2360, %v2356
    %v2821 = vpack.c.b16 %v2361, %v2357
    %v2822 = vpack.c.b16 %v2362, %v2358
    %v2823 = vpack.c.b16 %v2367, %v2363
    %v2824 = vpack.c.b16 %v2368, %v2364
    %v2825 = vpack.c.b16 %v2369, %v2365
    %v2826 = vpack.c.b16 %v2370, %v2366
    %v2827 = vpack.c.b16 %v2375, %v2371
    %v2828 = vpack.c.b16 %v2376, %v2372
    %v2829 = vpack.c.b16 %v2377, %v2373
    %v2830 = vpack.c.b16 %v2378, %v2374
    %v2831 = vpack.c.b16 %v2383, %v2379
    %v2832 = vpack.c.b16 %v2384, %v2380
    %v2833 = vpack.c.b16 %v2385, %v2381
    %v2834 = vpack.c.b16 %v2386, %v2382
    %v2835 = vpack.c.b16 %v2391, %v2387
    %v2836 = vpack.c.b16 %v2392, %v2388
    %v2837 = vpack.c.b16 %v2393, %v2389
    %v2838 = vpack.c.b16 %v2394, %v2390
    %v2839 = vpack.c.b16 %v2399, %v2395
    %v2840 = vpack.c.b16 %v2400, %v2396
    %v2841 = vpack.c.b16 %v2401, %v2397
    %v2842 = vpack.c.b16 %v2402, %v2398
    %v2843 = vpack.c.b16 %v2407, %v2403
    %v2844 = vpack.c.b16 %v2408, %v2404
    %v2845 = vpack.c.b16 %v2409, %v2405
    %v2846 = vpack.c.b16 %v2410, %v2406
    %v2847 = vpack.c.b16 %v2415, %v2411
    %v2848 = vpack.c.b16 %v2416, %v2412
    %v2849 = vpack.c.b16 %v2417, %v2413
    %v2850 = vpack.c.b16 %v2418, %v2414
    %v2851 = vpack.c.b16 %v2423, %v2419
    %v2852 = vpack.c.b16 %v2424, %v2420
    %v2853 = vpack.c.b16 %v2425, %v2421
    %v2854 = vpack.c.b16 %v2426, %v2422
    %v2855 = vpack.c.b16 %v2431, %v2427
    %v2856 = vpack.c.b16 %v2432, %v2428
    %v2857 = vpack.c.b16 %v2433, %v2429
    %v2858 = vpack.c.b16 %v2434, %v2430
    %v2859 = vpack.c.b16 %v2439, %v2435
    %v2860 = vpack.c.b16 %v2440, %v2436
    %v2861 = vpack.c.b16 %v2441, %v2437
    %v2862 = vpack.c.b16 %v2442, %v2438
    %v2863 = vpack.c.b16 %v2447, %v2443
    %v2864 = vpack.c.b16 %v2448, %v2444
    %v2865 = vpack.c.b16 %v2449, %v2445
    %v2866 = vpack.c.b16 %v2450, %v2446
    %v2867 = vpack.c.b16 %v2455, %v2451
    %v2868 = vpack.c.b16 %v2456, %v2452
    %v2869 = vpack.c.b16 %v2457, %v2453
    %v2870 = vpack.c.b16 %v2458, %v2454
    %v2871 = vpack.c.b16 %v2463, %v2459
    %v2872 = vpack.c.b16 %v2464, %v2460
    %v2873 = vpack.c.b16 %v2465, %v2461
    %v2874 = vpack.c.b16 %v2466, %v2462
    %v2875 = vpack.c.b16 %v2471, %v2467
    %v2876 = vpack.c.b16 %v2472, %v2468
    %v2877 = vpack.c.b16 %v2473, %v2469
    %v2878 = vpack.c.b16 %v2474, %v2470
    %v2879 = vpack.c.b16 %v2479, %v2475
    %v2880 = vpack.c.b16 %v2480, %v2476
    %v2881 = vpack.c.b16 %v2481, %v2477
    %v2882 = vpack.c.b16 %v2482, %v2478
    %v2883 = vpack.c.b16 %v2487, %v2483
    %v2884 = vpack.c.b16 %v2488, %v2484
    %v2885 = vpack.c.b16 %v2489, %v2485
    %v2886 = vpack.c.b16 %v2490, %v2486
    %v2887 = vpack.c.b16 %v2495, %v2491
    %v2888 = vpack.c.b16 %v2496, %v2492
    %v2889 = vpack.c.b16 %v2497, %v2493
    %v2890 = vpack.c.b16 %v2498, %v2494
    %v2891 = vpack.c.b16 %v2503, %v2499
    %v2892 = vpack.c.b16 %v2504, %v2500
    %v2893 = vpack.c.b16 %v2505, %v2501
    %v2894 = vpack.c.b16 %v2506, %v2502
    %v2895 = vpack.c.b16 %v2511, %v2507
    %v2896 = vpack.c.b16 %v2512, %v2508
    %v2897 = vpack.c.b16 %v2513, %v2509
    %v2898 = vpack.c.b16 %v2514, %v2510
    %v2899 = vpack.c.b16 %v2519, %v2515
    %v2900 = vpack.c.b16 %v2520, %v2516
    %v2901 = vpack.c.b16 %v2521, %v2517
    %v2902 = vpack.c.b16 %v2522, %v2518
    %v2903 = vpack.c.b16 %v2527, %v2523
    %v2904 = vpack.c.b16 %v2528, %v2524
    %v2905 = vpack.c.b16 %v2529, %v2525
    %v2906 = vpack.c.b16 %v2530, %v2526
    %v2907 = vpack.c.b16 %v2535, %v2531
    %v2908 = vpack.c.b16 %v2536, %v2532
    %v2909 = vpack.c.b16 %v2537, %v2533
    %v2910 = vpack.c.b16 %v2538, %v2534
    %v2911 = vpack.c.b16 %v2543, %v2539
    %v2912 = vpack.c.b16 %v2544, %v2540
    %v2913 = vpack.c.b16 %v2545, %v2541
    %v2914 = vpack.c.b16 %v2546, %v2542
    %v2915 = vpack.c.b16 %v2551, %v2547
    %v2916 = vpack.c.b16 %v2552, %v2548
    %v2917 = vpack.c.b16 %v2553, %v2549
    %v2918 = vpack.c.b16 %v2554, %v2550
    %v2919 = vpack.c.b16 %v2559, %v2555
    %v2920 = vpack.c.b16 %v2560, %v2556
    %v2921 = vpack.c.b16 %v2561, %v2557
    %v2922 = vpack.c.b16 %v2562, %v2558
    %v2923 = vpack.c.b16 %v2567, %v2563
    %v2924 = vpack.c.b16 %v2568, %v2564
    %v2925 = vpack.c.b16 %v2569, %v2565
    %v2926 = vpack.c.b16 %v2570, %v2566
    %v2927 = vpack.c.b16 %v2575, %v2571
    %v2928 = vpack.c.b16 %v2576, %v2572
    %v2929 = vpack.c.b16 %v2577, %v2573
    %v2930 = vpack.c.b16 %v2578, %v2574
    %v2931 = vpack.c.b16 %v2583, %v2579
    %v2932 = vpack.c.b16 %v2584, %v2580
    %v2933 = vpack.c.b16 %v2585, %v2581
    %v2934 = vpack.c.b16 %v2586, %v2582
    %v2935 = vpack.c.b16 %v2591, %v2587
    %v2936 = vpack.c.b16 %v2592, %v2588
    %v2937 = vpack.c.b16 %v2593, %v2589
    %v2938 = vpack.c.b16 %v2594, %v2590
    %v2939 = vpack.c.b16 %v2599, %v2595
    %v2940 = vpack.c.b16 %v2600, %v2596
    %v2941 = vpack.c.b16 %v2601, %v2597
    %v2942 = vpack.c.b16 %v2602, %v2598
    %v2943 = vpack.c.b16 %v2607, %v2603
    %v2944 = vpack.c.b16 %v2608, %v2604
    %v2945 = vpack.c.b16 %v2609, %v2605
    %v2946 = vpack.c.b16 %v2610, %v2606
    %v2947 = vpack.c.b16 %v2615, %v2611
    %v2948 = vpack.c.b16 %v2616, %v2612
    %v2949 = vpack.c.b16 %v2617, %v2613
    %v2950 = vpack.c.b16 %v2618, %v2614
    %v2951 = vpack.c.b16 %v2623, %v2619
    %v2952 = vpack.c.b16 %v2624, %v2620
    %v2953 = vpack.c.b16 %v2625, %v2621
    %v2954 = vpack.c.b16 %v2626, %v2622
    %v2955 = vpack.c.b16 %v2631, %v2627
    %v2956 = vpack.c.b16 %v2632, %v2628
    %v2957 = vpack.c.b16 %v2633, %v2629
    %v2958 = vpack.c.b16 %v2634, %v2630
    %v2959 = vpack.c.b16 %v2639, %v2635
    %v2960 = vpack.c.b16 %v2640, %v2636
    %v2961 = vpack.c.b16 %v2641, %v2637
    %v2962 = vpack.c.b16 %v2642, %v2638
    %v2963 = vpack.c.b16 %v2647, %v2643
    %v2964 = vpack.c.b16 %v2648, %v2644
    %v2965 = vpack.c.b16 %v2649, %v2645
    %v2966 = vpack.c.b16 %v2650, %v2646
    %v2967 = vpack.c.b16 %v2655, %v2651
    %v2968 = vpack.c.b16 %v2656, %v2652
    %v2969 = vpack.c.b16 %v2657, %v2653
    %v2970 = vpack.c.b16 %v2658, %v2654
    %v2971 = vpack.c.b16 %v2663, %v2659
    %v2972 = vpack.c.b16 %v2664, %v2660
    %v2973 = vpack.c.b16 %v2665, %v2661
    %v2974 = vpack.c.b16 %v2666, %v2662
    %v2975 = vpack.c.b16 %v2671, %v2667
    %v2976 = vpack.c.b16 %v2672, %v2668
    %v2977 = vpack.c.b16 %v2673, %v2669
    %v2978 = vpack.c.b16 %v2674, %v2670
    %v2979 = vpack.c.b16 %v2679, %v2675
    %v2980 = vpack.c.b16 %v2680, %v2676
    %v2981 = vpack.c.b16 %v2681, %v2677
    %v2982 = vpack.c.b16 %v2682, %v2678
    %v2983 = vpack.c.b16 %v2687, %v2683
    %v2984 = vpack.c.b16 %v2688, %v2684
    %v2985 = vpack.c.b16 %v2689, %v2685
    %v2986 = vpack.c.b16 %v2690, %v2686
    %v2987 = vpack.c.b16 %v2695, %v2691
    %v2988 = vpack.c.b16 %v2696, %v2692
    %v2989 = vpack.c.b16 %v2697, %v2693
    %v2990 = vpack.c.b16 %v2698, %v2694
    %v2991 = vpack.c.b16 %v2703, %v2699
    %v2992 = vpack.c.b16 %v2704, %v2700
    %v2993 = vpack.c.b16 %v2705, %v2701
    %v2994 = vpack.c.b16 %v2706, %v2702
    %v2995 = vpack.c.b16 %v2711, %v2707
    %v2996 = vpack.c.b16 %v2712, %v2708
    %v2997 = vpack.c.b16 %v2713, %v2709
    %v2998 = vpack.c.b16 %v2714, %v2710
    %v2999 = vpack.c.b16 %v2719, %v2715
    %v3000 = vpack.c.b16 %v2720, %v2716
    %v3001 = vpack.c.b16 %v2721, %v2717
    %v3002 = vpack.c.b16 %v2722, %v2718
    %v3003 = vpack.c.b16 %v2727, %v2723
    %v3004 = vpack.c.b16 %v2728, %v2724
    %v3005 = vpack.c.b16 %v2729, %v2725
    %v3006 = vpack.c.b16 %v2730, %v2726
    %v3007 = vpack.c.b16 %v2735, %v2731
    %v3008 = vpack.c.b16 %v2736, %v2732
    %v3009 = vpack.c.b16 %v2737, %v2733
    %v3010 = vpack.c.b16 %v2738, %v2734
    %v3011 = vpack.c.b16 %v2743, %v2739
    %v3012 = vpack.c.b16 %v2744, %v2740
    %v3013 = vpack.c.b16 %v2745, %v2741
    %v3014 = vpack.c.b16 %v2746, %v2742
    %v3015 = vpack.c.b16 %v2751, %v2747
    %v3016 = vpack.c.b16 %v2752, %v2748
    %v3017 = vpack.c.b16 %v2753, %v2749
    %v3018 = vpack.c.b16 %v2754, %v2750
    %v3019 = vpack.c.b16 %v2759, %v2755
    %v3020 = vpack.c.b16 %v2760, %v2756
    %v3021 = vpack.c.b16 %v2761, %v2757
    %v3022 = vpack.c.b16 %v2762, %v2758
    %v3023 = vpack.c.b16 %v2767, %v2763
    %v3024 = vpack.c.b16 %v2768, %v2764
    %v3025 = vpack.c.b16 %v2769, %v2765
    %v3026 = vpack.c.b16 %v2770, %v2766
    %3283 = vmatpush.bf16.msra.mxu0 %v2799
    %3284 = vmatpush.bf16.msra.mxu0 %v2795
    %3285 = vmatpush.bf16.msra.mxu0 %v2791
    %3286 = vmatpush.bf16.msra.mxu0 %v2787
    %3287 = vmatpush.bf16.msra.mxu0 %v2783
    %3288 = vmatpush.bf16.msra.mxu0 %v2779
    %3289 = vmatpush.bf16.msra.mxu0 %v2775
    %3290 = vmatpush.bf16.msra.mxu0 %v2771
    %3291 = vmatmul.bf16.gmra.mxu0 %v1981
    %v3292 = vpop.f32.mrf.mxu0
    %v3293 = vadd.f32 %v1999, %v3292
    %v3294 = vpop.f32.mrf.mxu0
    %v3295 = vadd.f32 %v1999, %v3294
    %3296 = vdwg.mxu0
    %3297 = vmatpush.bf16.msra.mxu0 %v2831
    %3298 = vmatpush.bf16.msra.mxu0 %v2827
    %3299 = vmatpush.bf16.msra.mxu0 %v2823
    %3300 = vmatpush.bf16.msra.mxu0 %v2819
    %3301 = vmatpush.bf16.msra.mxu0 %v2815
    %3302 = vmatpush.bf16.msra.mxu0 %v2811
    %3303 = vmatpush.bf16.msra.mxu0 %v2807
    %3304 = vmatpush.bf16.msra.mxu0 %v2803
    %3305 = vmatmul.bf16.gmra.mxu0 %v1982
    %v3306 = vpop.f32.mrf.mxu0
    %v3307 = vadd.f32 %v3293, %v3306
    %v3308 = vpop.f32.mrf.mxu0
    %v3309 = vadd.f32 %v3295, %v3308
    %3310 = vdwg.mxu0
    %3311 = vmatpush.bf16.msra.mxu0 %v2863
    %3312 = vmatpush.bf16.msra.mxu0 %v2859
    %3313 = vmatpush.bf16.msra.mxu0 %v2855
    %3314 = vmatpush.bf16.msra.mxu0 %v2851
    %3315 = vmatpush.bf16.msra.mxu0 %v2847
    %3316 = vmatpush.bf16.msra.mxu0 %v2843
    %3317 = vmatpush.bf16.msra.mxu0 %v2839
    %3318 = vmatpush.bf16.msra.mxu0 %v2835
    %3319 = vmatmul.bf16.gmra.mxu0 %v1983
    %v3320 = vpop.f32.mrf.mxu0
    %v3321 = vadd.f32 %v3307, %v3320
    %v3322 = vpop.f32.mrf.mxu0
    %v3323 = vadd.f32 %v3309, %v3322
    %3324 = vdwg.mxu0
    %3325 = vmatpush.bf16.msra.mxu0 %v2895
    %3326 = vmatpush.bf16.msra.mxu0 %v2891
    %3327 = vmatpush.bf16.msra.mxu0 %v2887
    %3328 = vmatpush.bf16.msra.mxu0 %v2883
    %3329 = vmatpush.bf16.msra.mxu0 %v2879
    %3330 = vmatpush.bf16.msra.mxu0 %v2875
    %3331 = vmatpush.bf16.msra.mxu0 %v2871
    %3332 = vmatpush.bf16.msra.mxu0 %v2867
    %3333 = vmatmul.bf16.gmra.mxu0 %v1984
    %v3334 = vpop.f32.mrf.mxu0
    %v3335 = vadd.f32 %v3321, %v3334
    %v3336 = vpop.f32.mrf.mxu0
    %v3337 = vadd.f32 %v3323, %v3336
    %3338 = vdwg.mxu0
    %3339 = vmatpush.bf16.msra.mxu0 %v2927
    %3340 = vmatpush.bf16.msra.mxu0 %v2923
    %3341 = vmatpush.bf16.msra.mxu0 %v2919
    %3342 = vmatpush.bf16.msra.mxu0 %v2915
    %3343 = vmatpush.bf16.msra.mxu0 %v2911
    %3344 = vmatpush.bf16.msra.mxu0 %v2907
    %3345 = vmatpush.bf16.msra.mxu0 %v2903
    %3346 = vmatpush.bf16.msra.mxu0 %v2899
    %3347 = vmatmul.bf16.gmra.mxu0 %v1985
    %v3348 = vpop.f32.mrf.mxu0
    %v3349 = vadd.f32 %v3335, %v3348
    %v3350 = vpop.f32.mrf.mxu0
    %v3351 = vadd.f32 %v3337, %v3350
    %3352 = vdwg.mxu0
    %3353 = vmatpush.bf16.msra.mxu0 %v2959
    %3354 = vmatpush.bf16.msra.mxu0 %v2955
    %3355 = vmatpush.bf16.msra.mxu0 %v2951
    %3356 = vmatpush.bf16.msra.mxu0 %v2947
    %3357 = vmatpush.bf16.msra.mxu0 %v2943
    %3358 = vmatpush.bf16.msra.mxu0 %v2939
    %3359 = vmatpush.bf16.msra.mxu0 %v2935
    %3360 = vmatpush.bf16.msra.mxu0 %v2931
    %3361 = vmatmul.bf16.gmra.mxu0 %v1986
    %v3362 = vpop.f32.mrf.mxu0
    %v3363 = vadd.f32 %v3349, %v3362
    %v3364 = vpop.f32.mrf.mxu0
    %v3365 = vadd.f32 %v3351, %v3364
    %3366 = vdwg.mxu0
    %3367 = vmatpush.bf16.msra.mxu0 %v2991
    %3368 = vmatpush.bf16.msra.mxu0 %v2987
    %3369 = vmatpush.bf16.msra.mxu0 %v2983
    %3370 = vmatpush.bf16.msra.mxu0 %v2979
    %3371 = vmatpush.bf16.msra.mxu0 %v2975
    %3372 = vmatpush.bf16.msra.mxu0 %v2971
    %3373 = vmatpush.bf16.msra.mxu0 %v2967
    %3374 = vmatpush.bf16.msra.mxu0 %v2963
    %3375 = vmatmul.bf16.gmra.mxu0 %v1987
    %v3376 = vpop.f32.mrf.mxu0
    %v3377 = vadd.f32 %v3363, %v3376
    %v3378 = vpop.f32.mrf.mxu0
    %v3379 = vadd.f32 %v3365, %v3378
    %3380 = vdwg.mxu0
    %3381 = vmatpush.bf16.msra.mxu0 %v3023
    %3382 = vmatpush.bf16.msra.mxu0 %v3019
    %3383 = vmatpush.bf16.msra.mxu0 %v3015
    %3384 = vmatpush.bf16.msra.mxu0 %v3011
    %3385 = vmatpush.bf16.msra.mxu0 %v3007
    %3386 = vmatpush.bf16.msra.mxu0 %v3003
    %3387 = vmatpush.bf16.msra.mxu0 %v2999
    %3388 = vmatpush.bf16.msra.mxu0 %v2995
    %3389 = vmatmul.bf16.gmra.mxu0 %v1988
    %v3390 = vpop.f32.mrf.mxu0
    %v3391 = vadd.f32 %v3377, %v3390
    %v3392 = vpop.f32.mrf.mxu0
    %v3393 = vadd.f32 %v3379, %v3392
    %3394 = vdwg.mxu0
    %3395 = vmatpush.bf16.msra.mxu0 %v2800
    %3396 = vmatpush.bf16.msra.mxu0 %v2796
    %3397 = vmatpush.bf16.msra.mxu0 %v2792
    %3398 = vmatpush.bf16.msra.mxu0 %v2788
    %3399 = vmatpush.bf16.msra.mxu0 %v2784
    %3400 = vmatpush.bf16.msra.mxu0 %v2780
    %3401 = vmatpush.bf16.msra.mxu0 %v2776
    %3402 = vmatpush.bf16.msra.mxu0 %v2772
    %3403 = vmatmul.bf16.gmra.mxu0 %v1981
    %v3404 = vpop.f32.mrf.mxu0
    %v3405 = vadd.f32 %v2000, %v3404
    %v3406 = vpop.f32.mrf.mxu0
    %v3407 = vadd.f32 %v2000, %v3406
    %3408 = vdwg.mxu0
    %3409 = vmatpush.bf16.msra.mxu0 %v2832
    %3410 = vmatpush.bf16.msra.mxu0 %v2828
    %3411 = vmatpush.bf16.msra.mxu0 %v2824
    %3412 = vmatpush.bf16.msra.mxu0 %v2820
    %3413 = vmatpush.bf16.msra.mxu0 %v2816
    %3414 = vmatpush.bf16.msra.mxu0 %v2812
    %3415 = vmatpush.bf16.msra.mxu0 %v2808
    %3416 = vmatpush.bf16.msra.mxu0 %v2804
    %3417 = vmatmul.bf16.gmra.mxu0 %v1982
    %v3418 = vpop.f32.mrf.mxu0
    %v3419 = vadd.f32 %v3405, %v3418
    %v3420 = vpop.f32.mrf.mxu0
    %v3421 = vadd.f32 %v3407, %v3420
    %3422 = vdwg.mxu0
    %3423 = vmatpush.bf16.msra.mxu0 %v2864
    %3424 = vmatpush.bf16.msra.mxu0 %v2860
    %3425 = vmatpush.bf16.msra.mxu0 %v2856
    %3426 = vmatpush.bf16.msra.mxu0 %v2852
    %3427 = vmatpush.bf16.msra.mxu0 %v2848
    %3428 = vmatpush.bf16.msra.mxu0 %v2844
    %3429 = vmatpush.bf16.msra.mxu0 %v2840
    %3430 = vmatpush.bf16.msra.mxu0 %v2836
    %3431 = vmatmul.bf16.gmra.mxu0 %v1983
    %v3432 = vpop.f32.mrf.mxu0
    %v3433 = vadd.f32 %v3419, %v3432
    %v3434 = vpop.f32.mrf.mxu0
    %v3435 = vadd.f32 %v3421, %v3434
    %3436 = vdwg.mxu0
    %3437 = vmatpush.bf16.msra.mxu0 %v2896
    %3438 = vmatpush.bf16.msra.mxu0 %v2892
    %3439 = vmatpush.bf16.msra.mxu0 %v2888
    %3440 = vmatpush.bf16.msra.mxu0 %v2884
    %3441 = vmatpush.bf16.msra.mxu0 %v2880
    %3442 = vmatpush.bf16.msra.mxu0 %v2876
    %3443 = vmatpush.bf16.msra.mxu0 %v2872
    %3444 = vmatpush.bf16.msra.mxu0 %v2868
    %3445 = vmatmul.bf16.gmra.mxu0 %v1984
    %v3446 = vpop.f32.mrf.mxu0
    %v3447 = vadd.f32 %v3433, %v3446
    %v3448 = vpop.f32.mrf.mxu0
    %v3449 = vadd.f32 %v3435, %v3448
    %3450 = vdwg.mxu0
    %3451 = vmatpush.bf16.msra.mxu0 %v2928
    %3452 = vmatpush.bf16.msra.mxu0 %v2924
    %3453 = vmatpush.bf16.msra.mxu0 %v2920
    %3454 = vmatpush.bf16.msra.mxu0 %v2916
    %3455 = vmatpush.bf16.msra.mxu0 %v2912
    %3456 = vmatpush.bf16.msra.mxu0 %v2908
    %3457 = vmatpush.bf16.msra.mxu0 %v2904
    %3458 = vmatpush.bf16.msra.mxu0 %v2900
    %3459 = vmatmul.bf16.gmra.mxu0 %v1985
    %v3460 = vpop.f32.mrf.mxu0
    %v3461 = vadd.f32 %v3447, %v3460
    %v3462 = vpop.f32.mrf.mxu0
    %v3463 = vadd.f32 %v3449, %v3462
    %3464 = vdwg.mxu0
    %3465 = vmatpush.bf16.msra.mxu0 %v2960
    %3466 = vmatpush.bf16.msra.mxu0 %v2956
    %3467 = vmatpush.bf16.msra.mxu0 %v2952
    %3468 = vmatpush.bf16.msra.mxu0 %v2948
    %3469 = vmatpush.bf16.msra.mxu0 %v2944
    %3470 = vmatpush.bf16.msra.mxu0 %v2940
    %3471 = vmatpush.bf16.msra.mxu0 %v2936
    %3472 = vmatpush.bf16.msra.mxu0 %v2932
    %3473 = vmatmul.bf16.gmra.mxu0 %v1986
    %v3474 = vpop.f32.mrf.mxu0
    %v3475 = vadd.f32 %v3461, %v3474
    %v3476 = vpop.f32.mrf.mxu0
    %v3477 = vadd.f32 %v3463, %v3476
    %3478 = vdwg.mxu0
    %3479 = vmatpush.bf16.msra.mxu0 %v2992
    %3480 = vmatpush.bf16.msra.mxu0 %v2988
    %3481 = vmatpush.bf16.msra.mxu0 %v2984
    %3482 = vmatpush.bf16.msra.mxu0 %v2980
    %3483 = vmatpush.bf16.msra.mxu0 %v2976
    %3484 = vmatpush.bf16.msra.mxu0 %v2972
    %3485 = vmatpush.bf16.msra.mxu0 %v2968
    %3486 = vmatpush.bf16.msra.mxu0 %v2964
    %3487 = vmatmul.bf16.gmra.mxu0 %v1987
    %v3488 = vpop.f32.mrf.mxu0
    %v3489 = vadd.f32 %v3475, %v3488
    %v3490 = vpop.f32.mrf.mxu0
    %v3491 = vadd.f32 %v3477, %v3490
    %3492 = vdwg.mxu0
    %3493 = vmatpush.bf16.msra.mxu0 %v3024
    %3494 = vmatpush.bf16.msra.mxu0 %v3020
    %3495 = vmatpush.bf16.msra.mxu0 %v3016
    %3496 = vmatpush.bf16.msra.mxu0 %v3012
    %3497 = vmatpush.bf16.msra.mxu0 %v3008
    %3498 = vmatpush.bf16.msra.mxu0 %v3004
    %3499 = vmatpush.bf16.msra.mxu0 %v3000
    %3500 = vmatpush.bf16.msra.mxu0 %v2996
    %3501 = vmatmul.bf16.gmra.mxu0 %v1988
    %v3502 = vpop.f32.mrf.mxu0
    %v3503 = vadd.f32 %v3489, %v3502
    %v3504 = vpop.f32.mrf.mxu0
    %v3505 = vadd.f32 %v3491, %v3504
    %3506 = vdwg.mxu0
    %3507 = vmatpush.bf16.msra.mxu0 %v2801
    %3508 = vmatpush.bf16.msra.mxu0 %v2797
    %3509 = vmatpush.bf16.msra.mxu0 %v2793
    %3510 = vmatpush.bf16.msra.mxu0 %v2789
    %3511 = vmatpush.bf16.msra.mxu0 %v2785
    %3512 = vmatpush.bf16.msra.mxu0 %v2781
    %3513 = vmatpush.bf16.msra.mxu0 %v2777
    %3514 = vmatpush.bf16.msra.mxu0 %v2773
    %3515 = vmatmul.bf16.gmra.mxu0 %v1981
    %v3516 = vpop.f32.mrf.mxu0
    %v3517 = vadd.f32 %v2001, %v3516
    %v3518 = vpop.f32.mrf.mxu0
    %v3519 = vadd.f32 %v2001, %v3518
    %3520 = vdwg.mxu0
    %3521 = vmatpush.bf16.msra.mxu0 %v2833
    %3522 = vmatpush.bf16.msra.mxu0 %v2829
    %3523 = vmatpush.bf16.msra.mxu0 %v2825
    %3524 = vmatpush.bf16.msra.mxu0 %v2821
    %3525 = vmatpush.bf16.msra.mxu0 %v2817
    %3526 = vmatpush.bf16.msra.mxu0 %v2813
    %3527 = vmatpush.bf16.msra.mxu0 %v2809
    %3528 = vmatpush.bf16.msra.mxu0 %v2805
    %3529 = vmatmul.bf16.gmra.mxu0 %v1982
    %v3530 = vpop.f32.mrf.mxu0
    %v3531 = vadd.f32 %v3517, %v3530
    %v3532 = vpop.f32.mrf.mxu0
    %v3533 = vadd.f32 %v3519, %v3532
    %3534 = vdwg.mxu0
    %3535 = vmatpush.bf16.msra.mxu0 %v2865
    %3536 = vmatpush.bf16.msra.mxu0 %v2861
    %3537 = vmatpush.bf16.msra.mxu0 %v2857
    %3538 = vmatpush.bf16.msra.mxu0 %v2853
    %3539 = vmatpush.bf16.msra.mxu0 %v2849
    %3540 = vmatpush.bf16.msra.mxu0 %v2845
    %3541 = vmatpush.bf16.msra.mxu0 %v2841
    %3542 = vmatpush.bf16.msra.mxu0 %v2837
    %3543 = vmatmul.bf16.gmra.mxu0 %v1983
    %v3544 = vpop.f32.mrf.mxu0
    %v3545 = vadd.f32 %v3531, %v3544
    %v3546 = vpop.f32.mrf.mxu0
    %v3547 = vadd.f32 %v3533, %v3546
    %3548 = vdwg.mxu0
    %3549 = vmatpush.bf16.msra.mxu0 %v2897
    %3550 = vmatpush.bf16.msra.mxu0 %v2893
    %3551 = vmatpush.bf16.msra.mxu0 %v2889
    %3552 = vmatpush.bf16.msra.mxu0 %v2885
    %3553 = vmatpush.bf16.msra.mxu0 %v2881
    %3554 = vmatpush.bf16.msra.mxu0 %v2877
    %3555 = vmatpush.bf16.msra.mxu0 %v2873
    %3556 = vmatpush.bf16.msra.mxu0 %v2869
    %3557 = vmatmul.bf16.gmra.mxu0 %v1984
    %v3558 = vpop.f32.mrf.mxu0
    %v3559 = vadd.f32 %v3545, %v3558
    %v3560 = vpop.f32.mrf.mxu0
    %v3561 = vadd.f32 %v3547, %v3560
    %3562 = vdwg.mxu0
    %3563 = vmatpush.bf16.msra.mxu0 %v2929
    %3564 = vmatpush.bf16.msra.mxu0 %v2925
    %3565 = vmatpush.bf16.msra.mxu0 %v2921
    %3566 = vmatpush.bf16.msra.mxu0 %v2917
    %3567 = vmatpush.bf16.msra.mxu0 %v2913
    %3568 = vmatpush.bf16.msra.mxu0 %v2909
    %3569 = vmatpush.bf16.msra.mxu0 %v2905
    %3570 = vmatpush.bf16.msra.mxu0 %v2901
    %3571 = vmatmul.bf16.gmra.mxu0 %v1985
    %v3572 = vpop.f32.mrf.mxu0
    %v3573 = vadd.f32 %v3559, %v3572
    %v3574 = vpop.f32.mrf.mxu0
    %v3575 = vadd.f32 %v3561, %v3574
    %3576 = vdwg.mxu0
    %3577 = vmatpush.bf16.msra.mxu0 %v2961
    %3578 = vmatpush.bf16.msra.mxu0 %v2957
    %3579 = vmatpush.bf16.msra.mxu0 %v2953
    %3580 = vmatpush.bf16.msra.mxu0 %v2949
    %3581 = vmatpush.bf16.msra.mxu0 %v2945
    %3582 = vmatpush.bf16.msra.mxu0 %v2941
    %3583 = vmatpush.bf16.msra.mxu0 %v2937
    %3584 = vmatpush.bf16.msra.mxu0 %v2933
    %3585 = vmatmul.bf16.gmra.mxu0 %v1986
    %v3586 = vpop.f32.mrf.mxu0
    %v3587 = vadd.f32 %v3573, %v3586
    %v3588 = vpop.f32.mrf.mxu0
    %v3589 = vadd.f32 %v3575, %v3588
    %3590 = vdwg.mxu0
    %3591 = vmatpush.bf16.msra.mxu0 %v2993
    %3592 = vmatpush.bf16.msra.mxu0 %v2989
    %3593 = vmatpush.bf16.msra.mxu0 %v2985
    %3594 = vmatpush.bf16.msra.mxu0 %v2981
    %3595 = vmatpush.bf16.msra.mxu0 %v2977
    %3596 = vmatpush.bf16.msra.mxu0 %v2973
    %3597 = vmatpush.bf16.msra.mxu0 %v2969
    %3598 = vmatpush.bf16.msra.mxu0 %v2965
    %3599 = vmatmul.bf16.gmra.mxu0 %v1987
    %v3600 = vpop.f32.mrf.mxu0
    %v3601 = vadd.f32 %v3587, %v3600
    %v3602 = vpop.f32.mrf.mxu0
    %v3603 = vadd.f32 %v3589, %v3602
    %3604 = vdwg.mxu0
    %3605 = vmatpush.bf16.msra.mxu0 %v3025
    %3606 = vmatpush.bf16.msra.mxu0 %v3021
    %3607 = vmatpush.bf16.msra.mxu0 %v3017
    %3608 = vmatpush.bf16.msra.mxu0 %v3013
    %3609 = vmatpush.bf16.msra.mxu0 %v3009
    %3610 = vmatpush.bf16.msra.mxu0 %v3005
    %3611 = vmatpush.bf16.msra.mxu0 %v3001
    %3612 = vmatpush.bf16.msra.mxu0 %v2997
    %3613 = vmatmul.bf16.gmra.mxu0 %v1988
    %v3614 = vpop.f32.mrf.mxu0
    %v3615 = vadd.f32 %v3601, %v3614
    %v3616 = vpop.f32.mrf.mxu0
    %v3617 = vadd.f32 %v3603, %v3616
    %3618 = vdwg.mxu0
    %3619 = vmatpush.bf16.msra.mxu0 %v2802
    %3620 = vmatpush.bf16.msra.mxu0 %v2798
    %3621 = vmatpush.bf16.msra.mxu0 %v2794
    %3622 = vmatpush.bf16.msra.mxu0 %v2790
    %3623 = vmatpush.bf16.msra.mxu0 %v2786
    %3624 = vmatpush.bf16.msra.mxu0 %v2782
    %3625 = vmatpush.bf16.msra.mxu0 %v2778
    %3626 = vmatpush.bf16.msra.mxu0 %v2774
    %3627 = vmatmul.bf16.gmra.mxu0 %v1981
    %v3628 = vpop.f32.mrf.mxu0
    %v3629 = vadd.f32 %v2002, %v3628
    %v3630 = vpop.f32.mrf.mxu0
    %v3631 = vadd.f32 %v2002, %v3630
    %3632 = vdwg.mxu0
    %3633 = vmatpush.bf16.msra.mxu0 %v2834
    %3634 = vmatpush.bf16.msra.mxu0 %v2830
    %3635 = vmatpush.bf16.msra.mxu0 %v2826
    %3636 = vmatpush.bf16.msra.mxu0 %v2822
    %3637 = vmatpush.bf16.msra.mxu0 %v2818
    %3638 = vmatpush.bf16.msra.mxu0 %v2814
    %3639 = vmatpush.bf16.msra.mxu0 %v2810
    %3640 = vmatpush.bf16.msra.mxu0 %v2806
    %3641 = vmatmul.bf16.gmra.mxu0 %v1982
    %v3642 = vpop.f32.mrf.mxu0
    %v3643 = vadd.f32 %v3629, %v3642
    %v3644 = vpop.f32.mrf.mxu0
    %v3645 = vadd.f32 %v3631, %v3644
    %3646 = vdwg.mxu0
    %3647 = vmatpush.bf16.msra.mxu0 %v2866
    %3648 = vmatpush.bf16.msra.mxu0 %v2862
    %3649 = vmatpush.bf16.msra.mxu0 %v2858
    %3650 = vmatpush.bf16.msra.mxu0 %v2854
    %3651 = vmatpush.bf16.msra.mxu0 %v2850
    %3652 = vmatpush.bf16.msra.mxu0 %v2846
    %3653 = vmatpush.bf16.msra.mxu0 %v2842
    %3654 = vmatpush.bf16.msra.mxu0 %v2838
    %3655 = vmatmul.bf16.gmra.mxu0 %v1983
    %v3656 = vpop.f32.mrf.mxu0
    %v3657 = vadd.f32 %v3643, %v3656
    %v3658 = vpop.f32.mrf.mxu0
    %v3659 = vadd.f32 %v3645, %v3658
    %3660 = vdwg.mxu0
    %3661 = vmatpush.bf16.msra.mxu0 %v2898
    %3662 = vmatpush.bf16.msra.mxu0 %v2894
    %3663 = vmatpush.bf16.msra.mxu0 %v2890
    %3664 = vmatpush.bf16.msra.mxu0 %v2886
    %3665 = vmatpush.bf16.msra.mxu0 %v2882
    %3666 = vmatpush.bf16.msra.mxu0 %v2878
    %3667 = vmatpush.bf16.msra.mxu0 %v2874
    %3668 = vmatpush.bf16.msra.mxu0 %v2870
    %3669 = vmatmul.bf16.gmra.mxu0 %v1984
    %v3670 = vpop.f32.mrf.mxu0
    %v3671 = vadd.f32 %v3657, %v3670
    %v3672 = vpop.f32.mrf.mxu0
    %v3673 = vadd.f32 %v3659, %v3672
    %3674 = vdwg.mxu0
    %3675 = vmatpush.bf16.msra.mxu0 %v2930
    %3676 = vmatpush.bf16.msra.mxu0 %v2926
    %3677 = vmatpush.bf16.msra.mxu0 %v2922
    %3678 = vmatpush.bf16.msra.mxu0 %v2918
    %3679 = vmatpush.bf16.msra.mxu0 %v2914
    %3680 = vmatpush.bf16.msra.mxu0 %v2910
    %3681 = vmatpush.bf16.msra.mxu0 %v2906
    %3682 = vmatpush.bf16.msra.mxu0 %v2902
    %3683 = vmatmul.bf16.gmra.mxu0 %v1985
    %v3684 = vpop.f32.mrf.mxu0
    %v3685 = vadd.f32 %v3671, %v3684
    %v3686 = vpop.f32.mrf.mxu0
    %v3687 = vadd.f32 %v3673, %v3686
    %3688 = vdwg.mxu0
    %3689 = vmatpush.bf16.msra.mxu0 %v2962
    %3690 = vmatpush.bf16.msra.mxu0 %v2958
    %3691 = vmatpush.bf16.msra.mxu0 %v2954
    %3692 = vmatpush.bf16.msra.mxu0 %v2950
    %3693 = vmatpush.bf16.msra.mxu0 %v2946
    %3694 = vmatpush.bf16.msra.mxu0 %v2942
    %3695 = vmatpush.bf16.msra.mxu0 %v2938
    %3696 = vmatpush.bf16.msra.mxu0 %v2934
    %3697 = vmatmul.bf16.gmra.mxu0 %v1986
    %v3698 = vpop.f32.mrf.mxu0
    %v3699 = vadd.f32 %v3685, %v3698
    %v3700 = vpop.f32.mrf.mxu0
    %v3701 = vadd.f32 %v3687, %v3700
    %3702 = vdwg.mxu0
    %3703 = vmatpush.bf16.msra.mxu0 %v2994
    %3704 = vmatpush.bf16.msra.mxu0 %v2990
    %3705 = vmatpush.bf16.msra.mxu0 %v2986
    %3706 = vmatpush.bf16.msra.mxu0 %v2982
    %3707 = vmatpush.bf16.msra.mxu0 %v2978
    %3708 = vmatpush.bf16.msra.mxu0 %v2974
    %3709 = vmatpush.bf16.msra.mxu0 %v2970
    %3710 = vmatpush.bf16.msra.mxu0 %v2966
    %3711 = vmatmul.bf16.gmra.mxu0 %v1987
    %v3712 = vpop.f32.mrf.mxu0
    %v3713 = vadd.f32 %v3699, %v3712
    %v3714 = vpop.f32.mrf.mxu0
    %v3715 = vadd.f32 %v3701, %v3714
    %3716 = vdwg.mxu0
    %3717 = vmatpush.bf16.msra.mxu0 %v3026
    %3718 = vmatpush.bf16.msra.mxu0 %v3022
    %3719 = vmatpush.bf16.msra.mxu0 %v3018
    %3720 = vmatpush.bf16.msra.mxu0 %v3014
    %3721 = vmatpush.bf16.msra.mxu0 %v3010
    %3722 = vmatpush.bf16.msra.mxu0 %v3006
    %3723 = vmatpush.bf16.msra.mxu0 %v3002
    %3724 = vmatpush.bf16.msra.mxu0 %v2998
    %3725 = vmatmul.bf16.gmra.mxu0 %v1988
    %v3726 = vpop.f32.mrf.mxu0
    %v3727 = vadd.f32 %v3713, %v3726
    %v3728 = vpop.f32.mrf.mxu0
    %v3729 = vadd.f32 %v3715, %v3728
    %3730 = vdwg.mxu0
    %v3731 = vsel %vm1179, %v3393, 0.0
    %v3732 = vadd.f32 %v3391, %v3731
    %v3733 = vrot.slane %v3732, 4
    %v3734 = vadd.f32 %v3732, %v3733
    %v3735 = vrot.slane %v3734, 2
    %v3736 = vadd.f32 %v3734, %v3735
    %v3737 = vrot.slane %v3736, 1
    %v3738 = vadd.f32 %v3736, %v3737
    %v3739 = vsel %vm1179, %v3505, 0.0
    %v3740 = vadd.f32 %v3503, %v3739
    %v3741 = vrot.slane %v3740, 4
    %v3742 = vadd.f32 %v3740, %v3741
    %v3743 = vrot.slane %v3742, 2
    %v3744 = vadd.f32 %v3742, %v3743
    %v3745 = vrot.slane %v3744, 1
    %v3746 = vadd.f32 %v3744, %v3745
    %v3747 = vsel %vm1179, %v3617, 0.0
    %v3748 = vadd.f32 %v3615, %v3747
    %v3749 = vrot.slane %v3748, 4
    %v3750 = vadd.f32 %v3748, %v3749
    %v3751 = vrot.slane %v3750, 2
    %v3752 = vadd.f32 %v3750, %v3751
    %v3753 = vrot.slane %v3752, 1
    %v3754 = vadd.f32 %v3752, %v3753
    %v3755 = vsel %vm1179, %v3729, 0.0
    %v3756 = vadd.f32 %v3727, %v3755
    %v3757 = vrot.slane %v3756, 4
    %v3758 = vadd.f32 %v3756, %v3757
    %v3759 = vrot.slane %v3758, 2
    %v3760 = vadd.f32 %v3758, %v3759
    %v3761 = vrot.slane %v3760, 1
    %v3762 = vadd.f32 %v3760, %v3761
    %v3763 = vmul.f32 %v3738, %v1250
    %v3764 = vmul.f32 %v3746, %v1250
    %v3765 = vmul.f32 %v3754, %v1250
    %v3766 = vmul.f32 %v3762, %v1250
    %v3767 = vperm.slane %v1979, 3
    %v3768 = vperm.slane %v1979, 7
    %v3769 = vperm.slane %v1980, 3
    %v3770 = vperm.slane %v1980, 7
    %v3775 = vmul.f32 %v3763, %v3767
    %v3776 = vmul.f32 %v3764, %v3768
    %v3777 = vmul.f32 %v3765, %v3769
    %v3778 = vmul.f32 %v3766, %v3770
    %v3779 = vperm.slane %v3775, 0
    %v3780 = vperm.slane %v3776, 0
    %v3781 = vperm.slane %v3777, 0
    %v3782 = vperm.slane %v3778, 0
    %v3783 = vsub.f32 %v3391, %v3779
    %v3784 = vsub.f32 %v3503, %v3780
    %v3785 = vsub.f32 %v3615, %v3781
    %v3786 = vsub.f32 %v3727, %v3782
    %v3787 = vsub.f32 %v3393, %v3779
    %v3788 = vsub.f32 %v3505, %v3780
    %v3789 = vsub.f32 %v3617, %v3781
    %v3790 = vsub.f32 %v3729, %v3782
    %v3791 = vmul.f32 %v3783, %v3783
    %v3792 = vmul.f32 %v3784, %v3784
    %v3793 = vmul.f32 %v3785, %v3785
    %v3794 = vmul.f32 %v3786, %v3786
    %v3795 = vmul.f32 %v3787, %v3787
    %v3796 = vmul.f32 %v3788, %v3788
    %v3797 = vmul.f32 %v3789, %v3789
    %v3798 = vmul.f32 %v3790, %v3790
    %v3799 = vsel %vm1179, %v3795, 0.0
    %v3800 = vadd.f32 %v3791, %v3799
    %v3801 = vrot.slane %v3800, 4
    %v3802 = vadd.f32 %v3800, %v3801
    %v3803 = vrot.slane %v3802, 2
    %v3804 = vadd.f32 %v3802, %v3803
    %v3805 = vrot.slane %v3804, 1
    %v3806 = vadd.f32 %v3804, %v3805
    %v3807 = vsel %vm1179, %v3796, 0.0
    %v3808 = vadd.f32 %v3792, %v3807
    %v3809 = vrot.slane %v3808, 4
    %v3810 = vadd.f32 %v3808, %v3809
    %v3811 = vrot.slane %v3810, 2
    %v3812 = vadd.f32 %v3810, %v3811
    %v3813 = vrot.slane %v3812, 1
    %v3814 = vadd.f32 %v3812, %v3813
    %v3815 = vsel %vm1179, %v3797, 0.0
    %v3816 = vadd.f32 %v3793, %v3815
    %v3817 = vrot.slane %v3816, 4
    %v3818 = vadd.f32 %v3816, %v3817
    %v3819 = vrot.slane %v3818, 2
    %v3820 = vadd.f32 %v3818, %v3819
    %v3821 = vrot.slane %v3820, 1
    %v3822 = vadd.f32 %v3820, %v3821
    %v3823 = vsel %vm1179, %v3798, 0.0
    %v3824 = vadd.f32 %v3794, %v3823
    %v3825 = vrot.slane %v3824, 4
    %v3826 = vadd.f32 %v3824, %v3825
    %v3827 = vrot.slane %v3826, 2
    %v3828 = vadd.f32 %v3826, %v3827
    %v3829 = vrot.slane %v3828, 1
    %v3830 = vadd.f32 %v3828, %v3829
    %v3831 = vmul.f32 %v3806, %v1250
    %v3832 = vmul.f32 %v3814, %v1250
    %v3833 = vmul.f32 %v3822, %v1250
    %v3834 = vmul.f32 %v3830, %v1250
    %v3835 = vperm.slane %v1979, 1
    %v3836 = vperm.slane %v1979, 5
    %v3837 = vperm.slane %v1980, 1
    %v3838 = vperm.slane %v1980, 5
    %v3843 = vperm.slane %v3835, 1
    %v3844 = vperm.slane %v3836, 1
    %v3845 = vperm.slane %v3837, 1
    %v3846 = vperm.slane %v3838, 1
    %v3847 = vmul.f32 %v3843, %v3783
    %v3848 = vmul.f32 %v3844, %v3784
    %v3849 = vmul.f32 %v3845, %v3785
    %v3850 = vmul.f32 %v3846, %v3786
    %v3851 = vmul.f32 %v3843, %v3787
    %v3852 = vmul.f32 %v3844, %v3788
    %v3853 = vmul.f32 %v3845, %v3789
    %v3854 = vmul.f32 %v3846, %v3790
    %v3855 = vadd.f32 %v3831, 1e-05
    %v3856 = vadd.f32 %v3832, 1e-05
    %v3857 = vadd.f32 %v3833, 1e-05
    %v3858 = vadd.f32 %v3834, 1e-05
    %v3859 = vrsqrt.pop %v3855
    %v3860 = vmul.f32 %v3859, %v3855
    %v3861 = vmul.f32 %v3860, %v3859
    %v3862 = vmul.f32 0.5, %v3861
    %v3863 = vsub.f32 1.5, %v3862
    %v3864 = vmul.f32 %v3859, %v3863
    %vm3865 = vweird.f32 %v3855
    %vm3866 = vweird.f32 %v3859
    %vm3867 = vmor %vm3865, %vm3866
    %v3868 = vsel %vm3867, %v3859, %v3864
    %v3869 = vrsqrt.pop %v3856
    %v3870 = vmul.f32 %v3869, %v3856
    %v3871 = vmul.f32 %v3870, %v3869
    %v3872 = vmul.f32 0.5, %v3871
    %v3873 = vsub.f32 1.5, %v3872
    %v3874 = vmul.f32 %v3869, %v3873
    %vm3875 = vweird.f32 %v3856
    %vm3876 = vweird.f32 %v3869
    %vm3877 = vmor %vm3875, %vm3876
    %v3878 = vsel %vm3877, %v3869, %v3874
    %v3879 = vrsqrt.pop %v3857
    %v3880 = vmul.f32 %v3879, %v3857
    %v3881 = vmul.f32 %v3880, %v3879
    %v3882 = vmul.f32 0.5, %v3881
    %v3883 = vsub.f32 1.5, %v3882
    %v3884 = vmul.f32 %v3879, %v3883
    %vm3885 = vweird.f32 %v3857
    %vm3886 = vweird.f32 %v3879
    %vm3887 = vmor %vm3885, %vm3886
    %v3888 = vsel %vm3887, %v3879, %v3884
    %v3889 = vrsqrt.pop %v3858
    %v3890 = vmul.f32 %v3889, %v3858
    %v3891 = vmul.f32 %v3890, %v3889
    %v3892 = vmul.f32 0.5, %v3891
    %v3893 = vsub.f32 1.5, %v3892
    %v3894 = vmul.f32 %v3889, %v3893
    %vm3895 = vweird.f32 %v3858
    %vm3896 = vweird.f32 %v3889
    %vm3897 = vmor %vm3895, %vm3896
    %v3898 = vsel %vm3897, %v3889, %v3894
    %v3899 = vmul.f32 %v3847, %v3868
    %v3900 = vmul.f32 %v3848, %v3878
    %v3901 = vmul.f32 %v3849, %v3888
    %v3902 = vmul.f32 %v3850, %v3898
    %v3903 = vmul.f32 %v3851, %v3868
    %v3904 = vmul.f32 %v3852, %v3878
    %v3905 = vmul.f32 %v3853, %v3888
    %v3906 = vmul.f32 %v3854, %v3898
    %v3907 = vperm.slane %v1979, 2
    %v3908 = vperm.slane %v1979, 6
    %v3909 = vperm.slane %v1980, 2
    %v3910 = vperm.slane %v1980, 6
    %v3915 = vperm.slane %v3907, 2
    %v3916 = vperm.slane %v3908, 2
    %v3917 = vperm.slane %v3909, 2
    %v3918 = vperm.slane %v3910, 2
    %v3919 = vadd.f32 %v3899, %v3915
    %v3920 = vadd.f32 %v3900, %v3916
    %v3921 = vadd.f32 %v3901, %v3917
    %v3922 = vadd.f32 %v3902, %v3918
    %v3923 = vadd.f32 %v3903, %v3915
    %v3924 = vadd.f32 %v3904, %v3916
    %v3925 = vadd.f32 %v3905, %v3917
    %v3926 = vadd.f32 %v3906, %v3918
    %v3927 = vmul.f32 %v3919, 0.5
    %v3928 = vmul.f32 %v3920, 0.5
    %v3929 = vmul.f32 %v3921, 0.5
    %v3930 = vmul.f32 %v3922, 0.5
    %v3931 = vmul.f32 %v3923, 0.5
    %v3932 = vmul.f32 %v3924, 0.5
    %v3933 = vmul.f32 %v3925, 0.5
    %v3934 = vmul.f32 %v3926, 0.5
    %v3935 = vmul.f32 %v3919, 0.044715
    %v3936 = vmul.f32 %v3920, 0.044715
    %v3937 = vmul.f32 %v3921, 0.044715
    %v3938 = vmul.f32 %v3922, 0.044715
    %v3939 = vmul.f32 %v3923, 0.044715
    %v3940 = vmul.f32 %v3924, 0.044715
    %v3941 = vmul.f32 %v3925, 0.044715
    %v3942 = vmul.f32 %v3926, 0.044715
    %v3943 = vmul.f32 %v3935, %v3919
    %v3944 = vmul.f32 %v3936, %v3920
    %v3945 = vmul.f32 %v3937, %v3921
    %v3946 = vmul.f32 %v3938, %v3922
    %v3947 = vmul.f32 %v3939, %v3923
    %v3948 = vmul.f32 %v3940, %v3924
    %v3949 = vmul.f32 %v3941, %v3925
    %v3950 = vmul.f32 %v3942, %v3926
    %v3951 = vmul.f32 %v3943, %v3919
    %v3952 = vmul.f32 %v3944, %v3920
    %v3953 = vmul.f32 %v3945, %v3921
    %v3954 = vmul.f32 %v3946, %v3922
    %v3955 = vmul.f32 %v3947, %v3923
    %v3956 = vmul.f32 %v3948, %v3924
    %v3957 = vmul.f32 %v3949, %v3925
    %v3958 = vmul.f32 %v3950, %v3926
    %v3959 = vadd.f32 %v3919, %v3951
    %v3960 = vadd.f32 %v3920, %v3952
    %v3961 = vadd.f32 %v3921, %v3953
    %v3962 = vadd.f32 %v3922, %v3954
    %v3963 = vadd.f32 %v3923, %v3955
    %v3964 = vadd.f32 %v3924, %v3956
    %v3965 = vadd.f32 %v3925, %v3957
    %v3966 = vadd.f32 %v3926, %v3958
    %v3967 = vmul.f32 %v3959, 0.7978846
    %v3968 = vmul.f32 %v3960, 0.7978846
    %v3969 = vmul.f32 %v3961, 0.7978846
    %v3970 = vmul.f32 %v3962, 0.7978846
    %v3971 = vmul.f32 %v3963, 0.7978846
    %v3972 = vmul.f32 %v3964, 0.7978846
    %v3973 = vmul.f32 %v3965, 0.7978846
    %v3974 = vmul.f32 %v3966, 0.7978846
    %v3975 = vtanh.pop %v3967
    %v3976 = vtanh.pop %v3968
    %v3977 = vtanh.pop %v3969
    %v3978 = vtanh.pop %v3970
    %v3979 = vtanh.pop %v3971
    %v3980 = vtanh.pop %v3972
    %v3981 = vtanh.pop %v3973
    %v3982 = vtanh.pop %v3974
    %v3983 = vadd.f32 %v3975, 1.0
    %v3984 = vadd.f32 %v3976, 1.0
    %v3985 = vadd.f32 %v3977, 1.0
    %v3986 = vadd.f32 %v3978, 1.0
    %v3987 = vadd.f32 %v3979, 1.0
    %v3988 = vadd.f32 %v3980, 1.0
    %v3989 = vadd.f32 %v3981, 1.0
    %v3990 = vadd.f32 %v3982, 1.0
    %v3991 = vmul.f32 %v3927, %v3983
    %v3992 = vmul.f32 %v3928, %v3984
    %v3993 = vmul.f32 %v3929, %v3985
    %v3994 = vmul.f32 %v3930, %v3986
    %v3995 = vmul.f32 %v3931, %v3987
    %v3996 = vmul.f32 %v3932, %v3988
    %v3997 = vmul.f32 %v3933, %v3989
    %v3998 = vmul.f32 %v3934, %v3990
    %v3999 = vld [vmem:[#allocation14] sm:$0xf]
    %v4000 = vld [vmem:[#allocation14 + $0x4] sm:$0xf]
    %v4001 = vld [vmem:[#allocation14 + $0x8] sm:$0xf]
    %v4002 = vld [vmem:[#allocation14 + $0xc] sm:$0xf]
    %v4003 = vld [vmem:[#allocation14 + $0x10] sm:$0xf]
    %v4004 = vld [vmem:[#allocation14 + $0x14] sm:$0xf]
    %v4005 = vld [vmem:[#allocation14 + $0x18] sm:$0xf]
    %v4006 = vld [vmem:[#allocation14 + $0x1c] sm:$0xf]
    %v4007 = vld [vmem:[#allocation14 + $0x20] sm:$0xf]
    %v4008 = vld [vmem:[#allocation14 + $0x24] sm:$0xf]
    %v4009 = vld [vmem:[#allocation14 + $0x28] sm:$0xf]
    %v4010 = vld [vmem:[#allocation14 + $0x2c] sm:$0xf]
    %v4011 = vld [vmem:[#allocation14 + $0x30] sm:$0xf]
    %v4012 = vld [vmem:[#allocation14 + $0x34] sm:$0xf]
    %v4013 = vld [vmem:[#allocation14 + $0x38] sm:$0xf]
    %v4014 = vld [vmem:[#allocation14 + $0x3c] sm:$0xf]
    %v4015 = vld [vmem:[#allocation14 + $0x40] sm:$0xf]
    %v4016 = vld [vmem:[#allocation14 + $0x44] sm:$0xf]
    %v4017 = vld [vmem:[#allocation14 + $0x48] sm:$0xf]
    %v4018 = vld [vmem:[#allocation14 + $0x4c] sm:$0xf]
    %v4019 = vld [vmem:[#allocation14 + $0x50] sm:$0xf]
    %v4020 = vld [vmem:[#allocation14 + $0x54] sm:$0xf]
    %v4021 = vld [vmem:[#allocation14 + $0x58] sm:$0xf]
    %v4022 = vld [vmem:[#allocation14 + $0x5c] sm:$0xf]
    %v4023 = vld [vmem:[#allocation14 + $0x60] sm:$0xf]
    %v4024 = vld [vmem:[#allocation14 + $0x64] sm:$0xf]
    %v4025 = vld [vmem:[#allocation14 + $0x68] sm:$0xf]
    %v4026 = vld [vmem:[#allocation14 + $0x6c] sm:$0xf]
    %v4027 = vld [vmem:[#allocation14 + $0x70] sm:$0xf]
    %v4028 = vld [vmem:[#allocation14 + $0x74] sm:$0xf]
    %v4029 = vld [vmem:[#allocation14 + $0x78] sm:$0xf]
    %v4030 = vld [vmem:[#allocation14 + $0x7c] sm:$0xf]
    %v4031 = vld [vmem:[#allocation14 + $0x80] sm:$0xf]
    %v4032 = vld [vmem:[#allocation14 + $0x84] sm:$0xf]
    %v4033 = vld [vmem:[#allocation14 + $0x88] sm:$0xf]
    %v4034 = vld [vmem:[#allocation14 + $0x8c] sm:$0xf]
    %v4035 = vld [vmem:[#allocation14 + $0x90] sm:$0xf]
    %v4036 = vld [vmem:[#allocation14 + $0x94] sm:$0xf]
    %v4037 = vld [vmem:[#allocation14 + $0x98] sm:$0xf]
    %v4038 = vld [vmem:[#allocation14 + $0x9c] sm:$0xf]
    %v4039 = vld [vmem:[#allocation14 + $0xa0] sm:$0xf]
    %v4040 = vld [vmem:[#allocation14 + $0xa4] sm:$0xf]
    %v4041 = vld [vmem:[#allocation14 + $0xa8] sm:$0xf]
    %v4042 = vld [vmem:[#allocation14 + $0xac] sm:$0xf]
    %v4043 = vld [vmem:[#allocation14 + $0xb0] sm:$0xf]
    %v4044 = vld [vmem:[#allocation14 + $0xb4] sm:$0xf]
    %v4045 = vld [vmem:[#allocation14 + $0xb8] sm:$0xf]
    %v4046 = vld [vmem:[#allocation14 + $0xbc] sm:$0xf]
    %v4047 = vld [vmem:[#allocation14 + $0xc0] sm:$0xf]
    %v4048 = vld [vmem:[#allocation14 + $0xc4] sm:$0xf]
    %v4049 = vld [vmem:[#allocation14 + $0xc8] sm:$0xf]
    %v4050 = vld [vmem:[#allocation14 + $0xcc] sm:$0xf]
    %v4051 = vld [vmem:[#allocation14 + $0xd0] sm:$0xf]
    %v4052 = vld [vmem:[#allocation14 + $0xd4] sm:$0xf]
    %v4053 = vld [vmem:[#allocation14 + $0xd8] sm:$0xf]
    %v4054 = vld [vmem:[#allocation14 + $0xdc] sm:$0xf]
    %v4055 = vld [vmem:[#allocation14 + $0xe0] sm:$0xf]
    %v4056 = vld [vmem:[#allocation14 + $0xe4] sm:$0xf]
    %v4057 = vld [vmem:[#allocation14 + $0xe8] sm:$0xf]
    %v4058 = vld [vmem:[#allocation14 + $0xec] sm:$0xf]
    %v4059 = vld [vmem:[#allocation14 + $0xf0] sm:$0xf]
    %v4060 = vld [vmem:[#allocation14 + $0xf4] sm:$0xf]
    %v4061 = vld [vmem:[#allocation14 + $0xf8] sm:$0xf]
    %v4062 = vld [vmem:[#allocation14 + $0xfc] sm:$0xf]
    %v4063 = vld [vmem:[#allocation16] sm:$0xf]
    %v4064 = vpack.c.bf16 %v3995, %v3991
    %v4065 = vpack.c.bf16 %v3996, %v3992
    %v4066 = vpack.c.bf16 %v3997, %v3993
    %v4067 = vpack.c.bf16 %v3998, %v3994
    %v4068 = vperm.slane %v4063, 0
    %v4133 = vunpack.c.l.b16 %v3999
    %v4134 = vunpack.c.l.b16 %v4000
    %v4135 = vunpack.c.l.b16 %v4001
    %v4136 = vunpack.c.l.b16 %v4002
    %v4137 = vunpack.c.l.b16 %v4003
    %v4138 = vunpack.c.l.b16 %v4004
    %v4139 = vunpack.c.l.b16 %v4005
    %v4140 = vunpack.c.l.b16 %v4006
    %v4141 = vunpack.c.l.b16 %v4007
    %v4142 = vunpack.c.l.b16 %v4008
    %v4143 = vunpack.c.l.b16 %v4009
    %v4144 = vunpack.c.l.b16 %v4010
    %v4145 = vunpack.c.l.b16 %v4011
    %v4146 = vunpack.c.l.b16 %v4012
    %v4147 = vunpack.c.l.b16 %v4013
    %v4148 = vunpack.c.l.b16 %v4014
    %v4149 = vunpack.c.l.b16 %v4015
    %v4150 = vunpack.c.l.b16 %v4016
    %v4151 = vunpack.c.l.b16 %v4017
    %v4152 = vunpack.c.l.b16 %v4018
    %v4153 = vunpack.c.l.b16 %v4019
    %v4154 = vunpack.c.l.b16 %v4020
    %v4155 = vunpack.c.l.b16 %v4021
    %v4156 = vunpack.c.l.b16 %v4022
    %v4157 = vunpack.c.l.b16 %v4023
    %v4158 = vunpack.c.l.b16 %v4024
    %v4159 = vunpack.c.l.b16 %v4025
    %v4160 = vunpack.c.l.b16 %v4026
    %v4161 = vunpack.c.l.b16 %v4027
    %v4162 = vunpack.c.l.b16 %v4028
    %v4163 = vunpack.c.l.b16 %v4029
    %v4164 = vunpack.c.l.b16 %v4030
    %v4165 = vunpack.c.l.b16 %v4031
    %v4166 = vunpack.c.l.b16 %v4032
    %v4167 = vunpack.c.l.b16 %v4033
    %v4168 = vunpack.c.l.b16 %v4034
    %v4169 = vunpack.c.l.b16 %v4035
    %v4170 = vunpack.c.l.b16 %v4036
    %v4171 = vunpack.c.l.b16 %v4037
    %v4172 = vunpack.c.l.b16 %v4038
    %v4173 = vunpack.c.l.b16 %v4039
    %v4174 = vunpack.c.l.b16 %v4040
    %v4175 = vunpack.c.l.b16 %v4041
    %v4176 = vunpack.c.l.b16 %v4042
    %v4177 = vunpack.c.l.b16 %v4043
    %v4178 = vunpack.c.l.b16 %v4044
    %v4179 = vunpack.c.l.b16 %v4045
    %v4180 = vunpack.c.l.b16 %v4046
    %v4181 = vunpack.c.l.b16 %v4047
    %v4182 = vunpack.c.l.b16 %v4048
    %v4183 = vunpack.c.l.b16 %v4049
    %v4184 = vunpack.c.l.b16 %v4050
    %v4185 = vunpack.c.l.b16 %v4051
    %v4186 = vunpack.c.l.b16 %v4052
    %v4187 = vunpack.c.l.b16 %v4053
    %v4188 = vunpack.c.l.b16 %v4054
    %v4189 = vunpack.c.l.b16 %v4055
    %v4190 = vunpack.c.l.b16 %v4056
    %v4191 = vunpack.c.l.b16 %v4057
    %v4192 = vunpack.c.l.b16 %v4058
    %v4193 = vunpack.c.l.b16 %v4059
    %v4194 = vunpack.c.l.b16 %v4060
    %v4195 = vunpack.c.l.b16 %v4061
    %v4196 = vunpack.c.l.b16 %v4062
    %v4197 = vpack.c.b16 %v4134, %v4133
    %v4198 = vpack.c.b16 %v4136, %v4135
    %v4199 = vpack.c.b16 %v4138, %v4137
    %v4200 = vpack.c.b16 %v4140, %v4139
    %v4201 = vpack.c.b16 %v4142, %v4141
    %v4202 = vpack.c.b16 %v4144, %v4143
    %v4203 = vpack.c.b16 %v4146, %v4145
    %v4204 = vpack.c.b16 %v4148, %v4147
    %v4205 = vpack.c.b16 %v4150, %v4149
    %v4206 = vpack.c.b16 %v4152, %v4151
    %v4207 = vpack.c.b16 %v4154, %v4153
    %v4208 = vpack.c.b16 %v4156, %v4155
    %v4209 = vpack.c.b16 %v4158, %v4157
    %v4210 = vpack.c.b16 %v4160, %v4159
    %v4211 = vpack.c.b16 %v4162, %v4161
    %v4212 = vpack.c.b16 %v4164, %v4163
    %v4213 = vpack.c.b16 %v4166, %v4165
    %v4214 = vpack.c.b16 %v4168, %v4167
    %v4215 = vpack.c.b16 %v4170, %v4169
    %v4216 = vpack.c.b16 %v4172, %v4171
    %v4217 = vpack.c.b16 %v4174, %v4173
    %v4218 = vpack.c.b16 %v4176, %v4175
    %v4219 = vpack.c.b16 %v4178, %v4177
    %v4220 = vpack.c.b16 %v4180, %v4179
    %v4221 = vpack.c.b16 %v4182, %v4181
    %v4222 = vpack.c.b16 %v4184, %v4183
    %v4223 = vpack.c.b16 %v4186, %v4185
    %v4224 = vpack.c.b16 %v4188, %v4187
    %v4225 = vpack.c.b16 %v4190, %v4189
    %v4226 = vpack.c.b16 %v4192, %v4191
    %v4227 = vpack.c.b16 %v4194, %v4193
    %v4228 = vpack.c.b16 %v4196, %v4195
    %4261 = vmatpush.bf16.msra.mxu0 %v4204
    %4262 = vmatpush.bf16.msra.mxu0 %v4203
    %4263 = vmatpush.bf16.msra.mxu0 %v4202
    %4264 = vmatpush.bf16.msra.mxu0 %v4201
    %4265 = vmatpush.bf16.msra.mxu0 %v4200
    %4266 = vmatpush.bf16.msra.mxu0 %v4199
    %4267 = vmatpush.bf16.msra.mxu0 %v4198
    %4268 = vmatpush.bf16.msra.mxu0 %v4197
    %4269 = vmatmul.bf16.gmra.mxu0 %v4064
    %v4270 = vpop.f32.mrf.mxu0
    %v4271 = vadd.f32 %v4068, %v4270
    %v4272 = vpop.f32.mrf.mxu0
    %v4273 = vadd.f32 %v4068, %v4272
    %4274 = vdwg.mxu0
    %4275 = vmatpush.bf16.msra.mxu0 %v4212
    %4276 = vmatpush.bf16.msra.mxu0 %v4211
    %4277 = vmatpush.bf16.msra.mxu0 %v4210
    %4278 = vmatpush.bf16.msra.mxu0 %v4209
    %4279 = vmatpush.bf16.msra.mxu0 %v4208
    %4280 = vmatpush.bf16.msra.mxu0 %v4207
    %4281 = vmatpush.bf16.msra.mxu0 %v4206
    %4282 = vmatpush.bf16.msra.mxu0 %v4205
    %4283 = vmatmul.bf16.gmra.mxu0 %v4065
    %v4284 = vpop.f32.mrf.mxu0
    %v4285 = vadd.f32 %v4271, %v4284
    %v4286 = vpop.f32.mrf.mxu0
    %v4287 = vadd.f32 %v4273, %v4286
    %4288 = vdwg.mxu0
    %4289 = vmatpush.bf16.msra.mxu0 %v4220
    %4290 = vmatpush.bf16.msra.mxu0 %v4219
    %4291 = vmatpush.bf16.msra.mxu0 %v4218
    %4292 = vmatpush.bf16.msra.mxu0 %v4217
    %4293 = vmatpush.bf16.msra.mxu0 %v4216
    %4294 = vmatpush.bf16.msra.mxu0 %v4215
    %4295 = vmatpush.bf16.msra.mxu0 %v4214
    %4296 = vmatpush.bf16.msra.mxu0 %v4213
    %4297 = vmatmul.bf16.gmra.mxu0 %v4066
    %v4298 = vpop.f32.mrf.mxu0
    %v4299 = vadd.f32 %v4285, %v4298
    %v4300 = vpop.f32.mrf.mxu0
    %v4301 = vadd.f32 %v4287, %v4300
    %4302 = vdwg.mxu0
    %4303 = vmatpush.bf16.msra.mxu0 %v4228
    %4304 = vmatpush.bf16.msra.mxu0 %v4227
    %4305 = vmatpush.bf16.msra.mxu0 %v4226
    %4306 = vmatpush.bf16.msra.mxu0 %v4225
    %4307 = vmatpush.bf16.msra.mxu0 %v4224
    %4308 = vmatpush.bf16.msra.mxu0 %v4223
    %4309 = vmatpush.bf16.msra.mxu0 %v4222
    %4310 = vmatpush.bf16.msra.mxu0 %v4221
    %4311 = vmatmul.bf16.gmra.mxu0 %v4067
    %v4312 = vpop.f32.mrf.mxu0
    %v4313 = vadd.f32 %v4299, %v4312
    %v4314 = vpop.f32.mrf.mxu0
    %v4315 = vadd.f32 %v4301, %v4314
    %4316 = vdwg.mxu0
    %v4317 = vsel %vm1179, %v4315, 0.0
    %v4318 = vadd.f32 %v4313, %v4317
    %v4319 = vrot.slane %v4318, 4
    %v4320 = vadd.f32 %v4318, %v4319
    %v4321 = vrot.slane %v4320, 2
    %v4322 = vadd.f32 %v4320, %v4321
    %v4323 = vrot.slane %v4322, 1
    %v4324 = vadd.f32 %v4322, %v4323
    %v4325 = vmul.f32 %v4324, %v1250
    %v4326 = vmul.f32 %v4325, %v4063
    %v4327 = vperm.slane %v4326, 3
    %v4328 = vsub.f32 %v4313, %v4327
    %v4329 = vsub.f32 %v4315, %v4327
    %v4330 = vmul.f32 %v4328, %v4328
    %v4331 = vmul.f32 %v4329, %v4329
    %v4332 = vsel %vm1179, %v4331, 0.0
    %v4333 = vadd.f32 %v4330, %v4332
    %v4334 = vrot.slane %v4333, 4
    %v4335 = vadd.f32 %v4333, %v4334
    %v4336 = vrot.slane %v4335, 2
    %v4337 = vadd.f32 %v4335, %v4336
    %v4338 = vrot.slane %v4337, 1
    %v4339 = vadd.f32 %v4337, %v4338
    %v4340 = vmul.f32 %v4339, %v1250
    %v4341 = vperm.slane %v4063, 1
    %v4342 = vmul.f32 %v4341, %v4328
    %v4343 = vmul.f32 %v4341, %v4329
    %v4344 = vadd.f32 %v4340, 1e-05
    %v4345 = vrsqrt.pop %v4344
    %v4346 = vmul.f32 %v4345, %v4344
    %v4347 = vmul.f32 %v4346, %v4345
    %v4348 = vmul.f32 0.5, %v4347
    %v4349 = vsub.f32 1.5, %v4348
    %v4350 = vmul.f32 %v4345, %v4349
    %vm4351 = vweird.f32 %v4344
    %vm4352 = vweird.f32 %v4345
    %vm4353 = vmor %vm4351, %vm4352
    %v4354 = vsel %vm4353, %v4345, %v4350
    %v4355 = vmul.f32 %v4342, %v4354
    %v4356 = vmul.f32 %v4343, %v4354
    %v4357 = vperm.slane %v4063, 2
    %v4358 = vadd.f32 %v4355, %v4357
    %v4359 = vadd.f32 %v4356, %v4357
    %v4360 = vmul.f32 %v4358, 0.5
    %v4361 = vmul.f32 %v4359, 0.5
    %v4362 = vmul.f32 %v4358, 0.044715
    %v4363 = vmul.f32 %v4359, 0.044715
    %v4364 = vmul.f32 %v4362, %v4358
    %v4365 = vmul.f32 %v4363, %v4359
    %v4366 = vmul.f32 %v4364, %v4358
    %v4367 = vmul.f32 %v4365, %v4359
    %v4368 = vadd.f32 %v4358, %v4366
    %v4369 = vadd.f32 %v4359, %v4367
    %v4370 = vmul.f32 %v4368, 0.7978846
    %v4371 = vmul.f32 %v4369, 0.7978846
    %v4372 = vtanh.pop %v4370
    %v4373 = vtanh.pop %v4371
    %v4374 = vadd.f32 %v4372, 1.0
    %v4375 = vadd.f32 %v4373, 1.0
    %v4376 = vmul.f32 %v4360, %v4374
    %v4377 = vmul.f32 %v4361, %v4375
    %v4378 = vld [vmem:[#allocation17] sm:$0xf]
    %v4379 = vld [vmem:[#allocation17 + $0x4] sm:$0xf]
    %v4380 = vld [vmem:[#allocation17 + $0x8] sm:$0xf]
    %v4381 = vld [vmem:[#allocation17 + $0xc] sm:$0xf]
    %v4382 = vld [vmem:[#allocation17 + $0x10] sm:$0xf]
    %v4383 = vld [vmem:[#allocation17 + $0x14] sm:$0xf]
    %v4384 = vld [vmem:[#allocation17 + $0x18] sm:$0xf]
    %v4385 = vld [vmem:[#allocation17 + $0x1c] sm:$0xf]
    %v4386 = vld [vmem:[#allocation17 + $0x20] sm:$0xf]
    %v4387 = vld [vmem:[#allocation17 + $0x24] sm:$0xf]
    %v4388 = vld [vmem:[#allocation17 + $0x28] sm:$0xf]
    %v4389 = vld [vmem:[#allocation17 + $0x2c] sm:$0xf]
    %v4390 = vld [vmem:[#allocation17 + $0x30] sm:$0xf]
    %v4391 = vld [vmem:[#allocation17 + $0x34] sm:$0xf]
    %v4392 = vld [vmem:[#allocation17 + $0x38] sm:$0xf]
    %v4393 = vld [vmem:[#allocation17 + $0x3c] sm:$0xf]
    %v4394 = vld [vmem:[#allocation19] sm:$0xf]
    %v4395 = vpack.c.bf16 %v4377, %v4376
    %v4396 = vperm.slane %v4394, 0
    %v4413 = vunpack.c.l.b16 %v4378
    %v4414 = vunpack.c.l.b16 %v4379
    %v4415 = vunpack.c.l.b16 %v4380
    %v4416 = vunpack.c.l.b16 %v4381
    %v4417 = vunpack.c.l.b16 %v4382
    %v4418 = vunpack.c.l.b16 %v4383
    %v4419 = vunpack.c.l.b16 %v4384
    %v4420 = vunpack.c.l.b16 %v4385
    %v4421 = vunpack.c.l.b16 %v4386
    %v4422 = vunpack.c.l.b16 %v4387
    %v4423 = vunpack.c.l.b16 %v4388
    %v4424 = vunpack.c.l.b16 %v4389
    %v4425 = vunpack.c.l.b16 %v4390
    %v4426 = vunpack.c.l.b16 %v4391
    %v4427 = vunpack.c.l.b16 %v4392
    %v4428 = vunpack.c.l.b16 %v4393
    %v4429 = vpack.c.b16 %v4414, %v4413
    %v4430 = vpack.c.b16 %v4416, %v4415
    %v4431 = vpack.c.b16 %v4418, %v4417
    %v4432 = vpack.c.b16 %v4420, %v4419
    %v4433 = vpack.c.b16 %v4422, %v4421
    %v4434 = vpack.c.b16 %v4424, %v4423
    %v4435 = vpack.c.b16 %v4426, %v4425
    %v4436 = vpack.c.b16 %v4428, %v4427
    %4445 = vmatpush.bf16.msra.mxu0 %v4436
    %4446 = vmatpush.bf16.msra.mxu0 %v4435
    %4447 = vmatpush.bf16.msra.mxu0 %v4434
    %4448 = vmatpush.bf16.msra.mxu0 %v4433
    %4449 = vmatpush.bf16.msra.mxu0 %v4432
    %4450 = vmatpush.bf16.msra.mxu0 %v4431
    %4451 = vmatpush.bf16.msra.mxu0 %v4430
    %4452 = vmatpush.bf16.msra.mxu0 %v4429
    %4453 = vmatmul.bf16.gmra.mxu0 %v4395
    %v4454 = vpop.f32.mrf.mxu0
    %v4455 = vadd.f32 %v4396, %v4454
    %v4456 = vpop.f32.mrf.mxu0
    %v4457 = vadd.f32 %v4396, %v4456
    %4458 = vdwg.mxu0
    %v4459 = vmul.f32 %v4455, 0.5
    %v4460 = vmul.f32 %v4457, 0.5
    %v4461 = vmul.f32 %v4455, 0.044715
    %v4462 = vmul.f32 %v4457, 0.044715
    %v4463 = vmul.f32 %v4461, %v4455
    %v4464 = vmul.f32 %v4462, %v4457
    %v4465 = vmul.f32 %v4463, %v4455
    %v4466 = vmul.f32 %v4464, %v4457
    %v4467 = vadd.f32 %v4455, %v4465
    %v4468 = vadd.f32 %v4457, %v4466
    %v4469 = vmul.f32 %v4467, 0.7978846
    %v4470 = vmul.f32 %v4468, 0.7978846
    %v4471 = vtanh.pop %v4469
    %v4472 = vtanh.pop %v4470
    %v4473 = vadd.f32 %v4471, 1.0
    %v4474 = vadd.f32 %v4472, 1.0
    %v4475 = vmul.f32 %v4459, %v4473
    %v4476 = vmul.f32 %v4460, %v4474
    %v4477 = vadd.f32 %v4475, %v616
    %v4478 = vadd.f32 %v4476, %v618
    %v4479 = vpack.c.bf16 %v4478, %v4477
    %v4481 = vsel %vm331, %v4479, 0
    %4483 = vmatpush.bf16.msra.mxu0 0
    %4484 = vmatpush.bf16.msra.mxu0 0
    %4485 = vmatpush.bf16.msra.mxu0 0
    %4486 = vmatpush.bf16.msra.mxu0 0
    %4487 = vmatpush.bf16.msra.mxu0 0
    %4488 = vmatpush.bf16.msra.mxu0 0
    %4489 = vmatpush.bf16.msra.mxu0 0
    %4490 = vmatpush.bf16.msra.mxu0 %v4481
    %4491 = vmatmul.bf16.gmra.mxu0 %v329
    %v4492 = vpop.f32.mrf.mxu0
    %v4493 = vadd.f32 0.0, %v4492
    %v4494 = vpop.f32.mrf.mxu0
    %4495 = vdwg.mxu0
    %v4496 = vmul.f32 %v4493, 0.5
    %v4497 = vmul.f32 %v4493, 0.044715
    %v4498 = vmul.f32 %v4497, %v4493
    %v4499 = vmul.f32 %v4498, %v4493
    %v4500 = vadd.f32 %v4493, %v4499
    %v4501 = vmul.f32 %v4500, 0.7978846
    %v4502 = vtanh.pop %v4501
    %v4503 = vadd.f32 %v4502, 1.0
    %v4504 = vmul.f32 %v4496, %v4503
    %4505 = vmatpush.bf16.msra.mxu0 0
    %4506 = vmatpush.bf16.msra.mxu0 0
    %4507 = vmatpush.bf16.msra.mxu0 0
    %4508 = vmatpush.bf16.msra.mxu0 0
    %4509 = vmatpush.bf16.msra.mxu0 0
    %4510 = vmatpush.bf16.msra.mxu0 0
    %4511 = vmatpush.bf16.msra.mxu0 0
    %4512 = vmatpush.bf16.msra.mxu0 %v4481
    %4513 = vmatmul.bf16.gmra.mxu0 %v631
    %v4514 = vpop.f32.mrf.mxu0
    %v4515 = vadd.f32 %v4477, %v4514
    %v4516 = vpop.f32.mrf.mxu0
    %v4517 = vadd.f32 %v4478, %v4516
    %4518 = vdwg.mxu0
    %v4519 = vld [vmem:[#allocation20] sm:$0xff]
    %v4520 = vld [vmem:[#allocation20 + $0x8] sm:$0xff]
    %v4521 = vld [vmem:[#allocation20 + $0x10] sm:$0xff]
    %v4522 = vld [vmem:[#allocation20 + $0x18] sm:$0xff]
    %v4523 = vld [vmem:[#allocation20 + $0x20] sm:$0xff]
    %v4524 = vld [vmem:[#allocation20 + $0x28] sm:$0xff]
    %v4525 = vld [vmem:[#allocation20 + $0x30] sm:$0xff]
    %v4526 = vld [vmem:[#allocation20 + $0x38] sm:$0xff]
    %v4527 = vld [vmem:[#allocation20 + $0x40] sm:$0xff]
    %v4528 = vld [vmem:[#allocation20 + $0x48] sm:$0xff]
    %v4529 = vld [vmem:[#allocation20 + $0x50] sm:$0xff]
    %v4530 = vld [vmem:[#allocation20 + $0x58] sm:$0xff]
    %v4531 = vld [vmem:[#allocation20 + $0x60] sm:$0xff]
    %v4532 = vld [vmem:[#allocation20 + $0x68] sm:$0xff]
    %v4533 = vld [vmem:[#allocation20 + $0x70] sm:$0xff]
    %v4534 = vld [vmem:[#allocation20 + $0x78] sm:$0xff]
    %v4535 = vld [vmem:[%s17] sm:$0xff]
    %v4536 = vpack.c.bf16 %v4517, %v4515
    %v4538 = vperm.slane %v4535, 0
    %v4539 = vperm.slane %v4535, 4
    %v4542 = vperm.slane %v4538, 0
    %v4543 = vperm.slane %v4539, 0
    %v4560 = vunpack.c.l.b16 %v4519
    %v4561 = vunpack.c.h.b16 %v4519
    %v4562 = vunpack.c.l.b16 %v4520
    %v4563 = vunpack.c.h.b16 %v4520
    %v4564 = vunpack.c.l.b16 %v4521
    %v4565 = vunpack.c.h.b16 %v4521
    %v4566 = vunpack.c.l.b16 %v4522
    %v4567 = vunpack.c.h.b16 %v4522
    %v4568 = vunpack.c.l.b16 %v4523
    %v4569 = vunpack.c.h.b16 %v4523
    %v4570 = vunpack.c.l.b16 %v4524
    %v4571 = vunpack.c.h.b16 %v4524
    %v4572 = vunpack.c.l.b16 %v4525
    %v4573 = vunpack.c.h.b16 %v4525
    %v4574 = vunpack.c.l.b16 %v4526
    %v4575 = vunpack.c.h.b16 %v4526
    %v4576 = vunpack.c.l.b16 %v4527
    %v4577 = vunpack.c.h.b16 %v4527
    %v4578 = vunpack.c.l.b16 %v4528
    %v4579 = vunpack.c.h.b16 %v4528
    %v4580 = vunpack.c.l.b16 %v4529
    %v4581 = vunpack.c.h.b16 %v4529
    %v4582 = vunpack.c.l.b16 %v4530
    %v4583 = vunpack.c.h.b16 %v4530
    %v4584 = vunpack.c.l.b16 %v4531
    %v4585 = vunpack.c.h.b16 %v4531
    %v4586 = vunpack.c.l.b16 %v4532
    %v4587 = vunpack.c.h.b16 %v4532
    %v4588 = vunpack.c.l.b16 %v4533
    %v4589 = vunpack.c.h.b16 %v4533
    %v4590 = vunpack.c.l.b16 %v4534
    %v4591 = vunpack.c.h.b16 %v4534
    %v4592 = vpack.c.b16 %v4562, %v4560
    %v4593 = vpack.c.b16 %v4563, %v4561
    %v4594 = vpack.c.b16 %v4566, %v4564
    %v4595 = vpack.c.b16 %v4567, %v4565
    %v4596 = vpack.c.b16 %v4570, %v4568
    %v4597 = vpack.c.b16 %v4571, %v4569
    %v4598 = vpack.c.b16 %v4574, %v4572
    %v4599 = vpack.c.b16 %v4575, %v4573
    %v4600 = vpack.c.b16 %v4578, %v4576
    %v4601 = vpack.c.b16 %v4579, %v4577
    %v4602 = vpack.c.b16 %v4582, %v4580
    %v4603 = vpack.c.b16 %v4583, %v4581
    %v4604 = vpack.c.b16 %v4586, %v4584
    %v4605 = vpack.c.b16 %v4587, %v4585
    %v4606 = vpack.c.b16 %v4590, %v4588
    %v4607 = vpack.c.b16 %v4591, %v4589
    %4624 = vmatpush.bf16.msra.mxu0 %v4606
    %4625 = vmatpush.bf16.msra.mxu0 %v4604
    %4626 = vmatpush.bf16.msra.mxu0 %v4602
    %4627 = vmatpush.bf16.msra.mxu0 %v4600
    %4628 = vmatpush.bf16.msra.mxu0 %v4598
    %4629 = vmatpush.bf16.msra.mxu0 %v4596
    %4630 = vmatpush.bf16.msra.mxu0 %v4594
    %4631 = vmatpush.bf16.msra.mxu0 %v4592
    %4632 = vmatmul.bf16.gmra.mxu0 %v4536
    %v4633 = vpop.f32.mrf.mxu0
    %v4634 = vadd.f32 %v4542, %v4633
    %v4635 = vpop.f32.mrf.mxu0
    %v4636 = vadd.f32 %v4542, %v4635
    %4637 = vdwg.mxu0
    %4638 = vmatpush.bf16.msra.mxu0 %v4607
    %4639 = vmatpush.bf16.msra.mxu0 %v4605
    %4640 = vmatpush.bf16.msra.mxu0 %v4603
    %4641 = vmatpush.bf16.msra.mxu0 %v4601
    %4642 = vmatpush.bf16.msra.mxu0 %v4599
    %4643 = vmatpush.bf16.msra.mxu0 %v4597
    %4644 = vmatpush.bf16.msra.mxu0 %v4595
    %4645 = vmatpush.bf16.msra.mxu0 %v4593
    %4646 = vmatmul.bf16.gmra.mxu0 %v4536
    %v4647 = vpop.f32.mrf.mxu0
    %v4648 = vadd.f32 %v4543, %v4647
    %v4649 = vpop.f32.mrf.mxu0
    %v4650 = vadd.f32 %v4543, %v4649
    %4651 = vdwg.mxu0
    %v4652 = vsel %vm1179, %v4636, 0.0
    %v4653 = vadd.f32 %v4634, %v4652
    %v4654 = vrot.slane %v4653, 4
    %v4655 = vadd.f32 %v4653, %v4654
    %v4656 = vrot.slane %v4655, 2
    %v4657 = vadd.f32 %v4655, %v4656
    %v4658 = vrot.slane %v4657, 1
    %v4659 = vadd.f32 %v4657, %v4658
    %v4660 = vsel %vm1179, %v4650, 0.0
    %v4661 = vadd.f32 %v4648, %v4660
    %v4662 = vrot.slane %v4661, 4
    %v4663 = vadd.f32 %v4661, %v4662
    %v4664 = vrot.slane %v4663, 2
    %v4665 = vadd.f32 %v4663, %v4664
    %v4666 = vrot.slane %v4665, 1
    %v4667 = vadd.f32 %v4665, %v4666
    %v4668 = vmul.f32 %v4659, %v1250
    %v4669 = vmul.f32 %v4667, %v1250
    %v4670 = vperm.slane %v4535, 3
    %v4671 = vperm.slane %v4535, 7
    %v4674 = vmul.f32 %v4668, %v4670
    %v4675 = vmul.f32 %v4669, %v4671
    %v4676 = vperm.slane %v4674, 0
    %v4677 = vperm.slane %v4675, 0
    %v4678 = vsub.f32 %v4634, %v4676
    %v4679 = vsub.f32 %v4648, %v4677
    %v4680 = vsub.f32 %v4636, %v4676
    %v4681 = vsub.f32 %v4650, %v4677
    %v4682 = vmul.f32 %v4678, %v4678
    %v4683 = vmul.f32 %v4679, %v4679
    %v4684 = vmul.f32 %v4680, %v4680
    %v4685 = vmul.f32 %v4681, %v4681
    %v4686 = vsel %vm1179, %v4684, 0.0
    %v4687 = vadd.f32 %v4682, %v4686
    %v4688 = vrot.slane %v4687, 4
    %v4689 = vadd.f32 %v4687, %v4688
    %v4690 = vrot.slane %v4689, 2
    %v4691 = vadd.f32 %v4689, %v4690
    %v4692 = vrot.slane %v4691, 1
    %v4693 = vadd.f32 %v4691, %v4692
    %v4694 = vsel %vm1179, %v4685, 0.0
    %v4695 = vadd.f32 %v4683, %v4694
    %v4696 = vrot.slane %v4695, 4
    %v4697 = vadd.f32 %v4695, %v4696
    %v4698 = vrot.slane %v4697, 2
    %v4699 = vadd.f32 %v4697, %v4698
    %v4700 = vrot.slane %v4699, 1
    %v4701 = vadd.f32 %v4699, %v4700
    %v4702 = vmul.f32 %v4693, %v1250
    %v4703 = vmul.f32 %v4701, %v1250
    %v4704 = vperm.slane %v4535, 1
    %v4705 = vperm.slane %v4535, 5
    %v4708 = vperm.slane %v4704, 1
    %v4709 = vperm.slane %v4705, 1
    %v4710 = vmul.f32 %v4708, %v4678
    %v4711 = vmul.f32 %v4709, %v4679
    %v4712 = vmul.f32 %v4708, %v4680
    %v4713 = vmul.f32 %v4709, %v4681
    %v4714 = vadd.f32 %v4702, 1e-05
    %v4715 = vadd.f32 %v4703, 1e-05
    %v4716 = vrsqrt.pop %v4714
    %v4717 = vmul.f32 %v4716, %v4714
    %v4718 = vmul.f32 %v4717, %v4716
    %v4719 = vmul.f32 0.5, %v4718
    %v4720 = vsub.f32 1.5, %v4719
    %v4721 = vmul.f32 %v4716, %v4720
    %vm4722 = vweird.f32 %v4714
    %vm4723 = vweird.f32 %v4716
    %vm4724 = vmor %vm4722, %vm4723
    %v4725 = vsel %vm4724, %v4716, %v4721
    %v4726 = vrsqrt.pop %v4715
    %v4727 = vmul.f32 %v4726, %v4715
    %v4728 = vmul.f32 %v4727, %v4726
    %v4729 = vmul.f32 0.5, %v4728
    %v4730 = vsub.f32 1.5, %v4729
    %v4731 = vmul.f32 %v4726, %v4730
    %vm4732 = vweird.f32 %v4715
    %vm4733 = vweird.f32 %v4726
    %vm4734 = vmor %vm4732, %vm4733
    %v4735 = vsel %vm4734, %v4726, %v4731
    %v4736 = vmul.f32 %v4710, %v4725
    %v4737 = vmul.f32 %v4711, %v4735
    %v4738 = vmul.f32 %v4712, %v4725
    %v4739 = vmul.f32 %v4713, %v4735
    %v4740 = vperm.slane %v4535, 2
    %v4741 = vperm.slane %v4535, 6
    %v4744 = vperm.slane %v4740, 2
    %v4745 = vperm.slane %v4741, 2
    %v4746 = vadd.f32 %v4736, %v4744
    %v4747 = vadd.f32 %v4737, %v4745
    %v4748 = vadd.f32 %v4738, %v4744
    %v4749 = vadd.f32 %v4739, %v4745
    %v4750 = vmul.f32 %v4746, 0.5
    %v4751 = vmul.f32 %v4747, 0.5
    %v4752 = vmul.f32 %v4748, 0.5
    %v4753 = vmul.f32 %v4749, 0.5
    %v4754 = vmul.f32 %v4746, 0.044715
    %v4755 = vmul.f32 %v4747, 0.044715
    %v4756 = vmul.f32 %v4748, 0.044715
    %v4757 = vmul.f32 %v4749, 0.044715
    %v4758 = vmul.f32 %v4754, %v4746
    %v4759 = vmul.f32 %v4755, %v4747
    %v4760 = vmul.f32 %v4756, %v4748
    %v4761 = vmul.f32 %v4757, %v4749
    %v4762 = vmul.f32 %v4758, %v4746
    %v4763 = vmul.f32 %v4759, %v4747
    %v4764 = vmul.f32 %v4760, %v4748
    %v4765 = vmul.f32 %v4761, %v4749
    %v4766 = vadd.f32 %v4746, %v4762
    %v4767 = vadd.f32 %v4747, %v4763
    %v4768 = vadd.f32 %v4748, %v4764
    %v4769 = vadd.f32 %v4749, %v4765
    %v4770 = vmul.f32 %v4766, 0.7978846
    %v4771 = vmul.f32 %v4767, 0.7978846
    %v4772 = vmul.f32 %v4768, 0.7978846
    %v4773 = vmul.f32 %v4769, 0.7978846
    %v4774 = vtanh.pop %v4770
    %v4775 = vtanh.pop %v4771
    %v4776 = vtanh.pop %v4772
    %v4777 = vtanh.pop %v4773
    %v4778 = vadd.f32 %v4774, 1.0
    %v4779 = vadd.f32 %v4775, 1.0
    %v4780 = vadd.f32 %v4776, 1.0
    %v4781 = vadd.f32 %v4777, 1.0
    %v4782 = vmul.f32 %v4750, %v4778
    %v4783 = vmul.f32 %v4751, %v4779
    %v4784 = vmul.f32 %v4752, %v4780
    %v4785 = vmul.f32 %v4753, %v4781
    %v4786 = vld [vmem:[#allocation22] sm:$0xf]
    %v4787 = vld [vmem:[#allocation22 + $0x4] sm:$0xf]
    %v4788 = vld [vmem:[#allocation22 + $0x8] sm:$0xf]
    %v4789 = vld [vmem:[#allocation22 + $0xc] sm:$0xf]
    %v4790 = vld [vmem:[#allocation22 + $0x10] sm:$0xf]
    %v4791 = vld [vmem:[#allocation22 + $0x14] sm:$0xf]
    %v4792 = vld [vmem:[#allocation22 + $0x18] sm:$0xf]
    %v4793 = vld [vmem:[#allocation22 + $0x1c] sm:$0xf]
    %v4794 = vld [vmem:[#allocation22 + $0x20] sm:$0xf]
    %v4795 = vld [vmem:[#allocation22 + $0x24] sm:$0xf]
    %v4796 = vld [vmem:[#allocation22 + $0x28] sm:$0xf]
    %v4797 = vld [vmem:[#allocation22 + $0x2c] sm:$0xf]
    %v4798 = vld [vmem:[#allocation22 + $0x30] sm:$0xf]
    %v4799 = vld [vmem:[#allocation22 + $0x34] sm:$0xf]
    %v4800 = vld [vmem:[#allocation22 + $0x38] sm:$0xf]
    %v4801 = vld [vmem:[#allocation22 + $0x3c] sm:$0xf]
    %v4802 = vld [vmem:[#allocation22 + $0x40] sm:$0xf]
    %v4803 = vld [vmem:[#allocation22 + $0x44] sm:$0xf]
    %v4804 = vld [vmem:[#allocation22 + $0x48] sm:$0xf]
    %v4805 = vld [vmem:[#allocation22 + $0x4c] sm:$0xf]
    %v4806 = vld [vmem:[#allocation22 + $0x50] sm:$0xf]
    %v4807 = vld [vmem:[#allocation22 + $0x54] sm:$0xf]
    %v4808 = vld [vmem:[#allocation22 + $0x58] sm:$0xf]
    %v4809 = vld [vmem:[#allocation22 + $0x5c] sm:$0xf]
    %v4810 = vld [vmem:[#allocation22 + $0x60] sm:$0xf]
    %v4811 = vld [vmem:[#allocation22 + $0x64] sm:$0xf]
    %v4812 = vld [vmem:[#allocation22 + $0x68] sm:$0xf]
    %v4813 = vld [vmem:[#allocation22 + $0x6c] sm:$0xf]
    %v4814 = vld [vmem:[#allocation22 + $0x70] sm:$0xf]
    %v4815 = vld [vmem:[#allocation22 + $0x74] sm:$0xf]
    %v4816 = vld [vmem:[#allocation22 + $0x78] sm:$0xf]
    %v4817 = vld [vmem:[#allocation22 + $0x7c] sm:$0xf]
    %v4818 = vld [vmem:[#allocation23] sm:$0xf]
    %v4819 = vpack.c.bf16 %v4784, %v4782
    %v4820 = vpack.c.bf16 %v4785, %v4783
    %v4821 = vperm.slane %v4818, 0
    %v4854 = vunpack.c.l.b16 %v4786
    %v4855 = vunpack.c.l.b16 %v4787
    %v4856 = vunpack.c.l.b16 %v4788
    %v4857 = vunpack.c.l.b16 %v4789
    %v4858 = vunpack.c.l.b16 %v4790
    %v4859 = vunpack.c.l.b16 %v4791
    %v4860 = vunpack.c.l.b16 %v4792
    %v4861 = vunpack.c.l.b16 %v4793
    %v4862 = vunpack.c.l.b16 %v4794
    %v4863 = vunpack.c.l.b16 %v4795
    %v4864 = vunpack.c.l.b16 %v4796
    %v4865 = vunpack.c.l.b16 %v4797
    %v4866 = vunpack.c.l.b16 %v4798
    %v4867 = vunpack.c.l.b16 %v4799
    %v4868 = vunpack.c.l.b16 %v4800
    %v4869 = vunpack.c.l.b16 %v4801
    %v4870 = vunpack.c.l.b16 %v4802
    %v4871 = vunpack.c.l.b16 %v4803
    %v4872 = vunpack.c.l.b16 %v4804
    %v4873 = vunpack.c.l.b16 %v4805
    %v4874 = vunpack.c.l.b16 %v4806
    %v4875 = vunpack.c.l.b16 %v4807
    %v4876 = vunpack.c.l.b16 %v4808
    %v4877 = vunpack.c.l.b16 %v4809
    %v4878 = vunpack.c.l.b16 %v4810
    %v4879 = vunpack.c.l.b16 %v4811
    %v4880 = vunpack.c.l.b16 %v4812
    %v4881 = vunpack.c.l.b16 %v4813
    %v4882 = vunpack.c.l.b16 %v4814
    %v4883 = vunpack.c.l.b16 %v4815
    %v4884 = vunpack.c.l.b16 %v4816
    %v4885 = vunpack.c.l.b16 %v4817
    %v4886 = vpack.c.b16 %v4855, %v4854
    %v4887 = vpack.c.b16 %v4857, %v4856
    %v4888 = vpack.c.b16 %v4859, %v4858
    %v4889 = vpack.c.b16 %v4861, %v4860
    %v4890 = vpack.c.b16 %v4863, %v4862
    %v4891 = vpack.c.b16 %v4865, %v4864
    %v4892 = vpack.c.b16 %v4867, %v4866
    %v4893 = vpack.c.b16 %v4869, %v4868
    %v4894 = vpack.c.b16 %v4871, %v4870
    %v4895 = vpack.c.b16 %v4873, %v4872
    %v4896 = vpack.c.b16 %v4875, %v4874
    %v4897 = vpack.c.b16 %v4877, %v4876
    %v4898 = vpack.c.b16 %v4879, %v4878
    %v4899 = vpack.c.b16 %v4881, %v4880
    %v4900 = vpack.c.b16 %v4883, %v4882
    %v4901 = vpack.c.b16 %v4885, %v4884
    %4918 = vmatpush.bf16.msra.mxu0 %v4893
    %4919 = vmatpush.bf16.msra.mxu0 %v4892
    %4920 = vmatpush.bf16.msra.mxu0 %v4891
    %4921 = vmatpush.bf16.msra.mxu0 %v4890
    %4922 = vmatpush.bf16.msra.mxu0 %v4889
    %4923 = vmatpush.bf16.msra.mxu0 %v4888
    %4924 = vmatpush.bf16.msra.mxu0 %v4887
    %4925 = vmatpush.bf16.msra.mxu0 %v4886
    %4926 = vmatmul.bf16.gmra.mxu0 %v4819
    %v4927 = vpop.f32.mrf.mxu0
    %v4928 = vadd.f32 %v4821, %v4927
    %v4929 = vpop.f32.mrf.mxu0
    %v4930 = vadd.f32 %v4821, %v4929
    %4931 = vdwg.mxu0
    %4932 = vmatpush.bf16.msra.mxu0 %v4901
    %4933 = vmatpush.bf16.msra.mxu0 %v4900
    %4934 = vmatpush.bf16.msra.mxu0 %v4899
    %4935 = vmatpush.bf16.msra.mxu0 %v4898
    %4936 = vmatpush.bf16.msra.mxu0 %v4897
    %4937 = vmatpush.bf16.msra.mxu0 %v4896
    %4938 = vmatpush.bf16.msra.mxu0 %v4895
    %4939 = vmatpush.bf16.msra.mxu0 %v4894
    %4940 = vmatmul.bf16.gmra.mxu0 %v4820
    %v4941 = vpop.f32.mrf.mxu0
    %v4942 = vadd.f32 %v4928, %v4941
    %v4943 = vpop.f32.mrf.mxu0
    %v4944 = vadd.f32 %v4930, %v4943
    %4945 = vdwg.mxu0
    %v4946 = vsel %vm1179, %v4944, 0.0
    %v4947 = vadd.f32 %v4942, %v4946
    %v4948 = vrot.slane %v4947, 4
    %v4949 = vadd.f32 %v4947, %v4948
    %v4950 = vrot.slane %v4949, 2
    %v4951 = vadd.f32 %v4949, %v4950
    %v4952 = vrot.slane %v4951, 1
    %v4953 = vadd.f32 %v4951, %v4952
    %v4954 = vmul.f32 %v4953, %v1250
    %v4955 = vmul.f32 %v4954, %v4818
    %v4956 = vperm.slane %v4955, 3
    %v4957 = vsub.f32 %v4942, %v4956
    %v4958 = vsub.f32 %v4944, %v4956
    %v4959 = vmul.f32 %v4957, %v4957
    %v4960 = vmul.f32 %v4958, %v4958
    %v4961 = vsel %vm1179, %v4960, 0.0
    %v4962 = vadd.f32 %v4959, %v4961
    %v4963 = vrot.slane %v4962, 4
    %v4964 = vadd.f32 %v4962, %v4963
    %v4965 = vrot.slane %v4964, 2
    %v4966 = vadd.f32 %v4964, %v4965
    %v4967 = vrot.slane %v4966, 1
    %v4968 = vadd.f32 %v4966, %v4967
    %v4969 = vmul.f32 %v4968, %v1250
    %v4970 = vperm.slane %v4818, 1
    %v4971 = vmul.f32 %v4970, %v4957
    %v4972 = vmul.f32 %v4970, %v4958
    %v4973 = vadd.f32 %v4969, 1e-05
    %v4974 = vrsqrt.pop %v4973
    %v4975 = vmul.f32 %v4974, %v4973
    %v4976 = vmul.f32 %v4975, %v4974
    %v4977 = vmul.f32 0.5, %v4976
    %v4978 = vsub.f32 1.5, %v4977
    %v4979 = vmul.f32 %v4974, %v4978
    %vm4980 = vweird.f32 %v4973
    %vm4981 = vweird.f32 %v4974
    %vm4982 = vmor %vm4980, %vm4981
    %v4983 = vsel %vm4982, %v4974, %v4979
    %v4984 = vmul.f32 %v4971, %v4983
    %v4985 = vmul.f32 %v4972, %v4983
    %v4986 = vperm.slane %v4818, 2
    %v4987 = vadd.f32 %v4984, %v4986
    %v4988 = vadd.f32 %v4985, %v4986
    %v4989 = vmul.f32 %v4987, 0.5
    %v4990 = vmul.f32 %v4988, 0.5
    %v4991 = vmul.f32 %v4987, 0.044715
    %v4992 = vmul.f32 %v4988, 0.044715
    %v4993 = vmul.f32 %v4991, %v4987
    %v4994 = vmul.f32 %v4992, %v4988
    %v4995 = vmul.f32 %v4993, %v4987
    %v4996 = vmul.f32 %v4994, %v4988
    %v4997 = vadd.f32 %v4987, %v4995
    %v4998 = vadd.f32 %v4988, %v4996
    %v4999 = vmul.f32 %v4997, 0.7978846
    %v5000 = vmul.f32 %v4998, 0.7978846
    %v5001 = vtanh.pop %v4999
    %v5002 = vtanh.pop %v5000
    %v5003 = vadd.f32 %v5001, 1.0
    %v5004 = vadd.f32 %v5002, 1.0
    %v5005 = vmul.f32 %v4989, %v5003
    %v5006 = vmul.f32 %v4990, %v5004
    %v5007 = vld [vmem:[#allocation25] sm:$0xff]
    %v5008 = vld [vmem:[#allocation25 + $0x8] sm:$0xff]
    %v5009 = vld [vmem:[#allocation25 + $0x10] sm:$0xff]
    %v5010 = vld [vmem:[#allocation25 + $0x18] sm:$0xff]
    %v5011 = vld [vmem:[#allocation25 + $0x20] sm:$0xff]
    %v5012 = vld [vmem:[#allocation25 + $0x28] sm:$0xff]
    %v5013 = vld [vmem:[#allocation25 + $0x30] sm:$0xff]
    %v5014 = vld [vmem:[#allocation25 + $0x38] sm:$0xff]
    %v5015 = vld [vmem:[#allocation25 + $0x40] sm:$0xff]
    %v5016 = vld [vmem:[#allocation25 + $0x48] sm:$0xff]
    %v5017 = vld [vmem:[#allocation25 + $0x50] sm:$0xff]
    %v5018 = vld [vmem:[#allocation25 + $0x58] sm:$0xff]
    %v5019 = vld [vmem:[#allocation25 + $0x60] sm:$0xff]
    %v5020 = vld [vmem:[#allocation25 + $0x68] sm:$0xff]
    %v5021 = vld [vmem:[#allocation25 + $0x70] sm:$0xff]
    %v5022 = vld [vmem:[#allocation25 + $0x78] sm:$0xff]
    %v5023 = vld [vmem:[%s21] sm:$0xff]
    %v5024 = vpack.c.bf16 %v5006, %v5005
    %v5026 = vperm.slane %v5023, 0
    %v5027 = vperm.slane %v5023, 4
    %v5030 = vperm.slane %v5026, 0
    %v5031 = vperm.slane %v5027, 0
    %v5048 = vunpack.c.l.b16 %v5007
    %v5049 = vunpack.c.h.b16 %v5007
    %v5050 = vunpack.c.l.b16 %v5008
    %v5051 = vunpack.c.h.b16 %v5008
    %v5052 = vunpack.c.l.b16 %v5009
    %v5053 = vunpack.c.h.b16 %v5009
    %v5054 = vunpack.c.l.b16 %v5010
    %v5055 = vunpack.c.h.b16 %v5010
    %v5056 = vunpack.c.l.b16 %v5011
    %v5057 = vunpack.c.h.b16 %v5011
    %v5058 = vunpack.c.l.b16 %v5012
    %v5059 = vunpack.c.h.b16 %v5012
    %v5060 = vunpack.c.l.b16 %v5013
    %v5061 = vunpack.c.h.b16 %v5013
    %v5062 = vunpack.c.l.b16 %v5014
    %v5063 = vunpack.c.h.b16 %v5014
    %v5064 = vunpack.c.l.b16 %v5015
    %v5065 = vunpack.c.h.b16 %v5015
    %v5066 = vunpack.c.l.b16 %v5016
    %v5067 = vunpack.c.h.b16 %v5016
    %v5068 = vunpack.c.l.b16 %v5017
    %v5069 = vunpack.c.h.b16 %v5017
    %v5070 = vunpack.c.l.b16 %v5018
    %v5071 = vunpack.c.h.b16 %v5018
    %v5072 = vunpack.c.l.b16 %v5019
    %v5073 = vunpack.c.h.b16 %v5019
    %v5074 = vunpack.c.l.b16 %v5020
    %v5075 = vunpack.c.h.b16 %v5020
    %v5076 = vunpack.c.l.b16 %v5021
    %v5077 = vunpack.c.h.b16 %v5021
    %v5078 = vunpack.c.l.b16 %v5022
    %v5079 = vunpack.c.h.b16 %v5022
    %v5080 = vpack.c.b16 %v5050, %v5048
    %v5081 = vpack.c.b16 %v5051, %v5049
    %v5082 = vpack.c.b16 %v5054, %v5052
    %v5083 = vpack.c.b16 %v5055, %v5053
    %v5084 = vpack.c.b16 %v5058, %v5056
    %v5085 = vpack.c.b16 %v5059, %v5057
    %v5086 = vpack.c.b16 %v5062, %v5060
    %v5087 = vpack.c.b16 %v5063, %v5061
    %v5088 = vpack.c.b16 %v5066, %v5064
    %v5089 = vpack.c.b16 %v5067, %v5065
    %v5090 = vpack.c.b16 %v5070, %v5068
    %v5091 = vpack.c.b16 %v5071, %v5069
    %v5092 = vpack.c.b16 %v5074, %v5072
    %v5093 = vpack.c.b16 %v5075, %v5073
    %v5094 = vpack.c.b16 %v5078, %v5076
    %v5095 = vpack.c.b16 %v5079, %v5077
    %5112 = vmatpush.bf16.msra.mxu0 %v5094
    %5113 = vmatpush.bf16.msra.mxu0 %v5092
    %5114 = vmatpush.bf16.msra.mxu0 %v5090
    %5115 = vmatpush.bf16.msra.mxu0 %v5088
    %5116 = vmatpush.bf16.msra.mxu0 %v5086
    %5117 = vmatpush.bf16.msra.mxu0 %v5084
    %5118 = vmatpush.bf16.msra.mxu0 %v5082
    %5119 = vmatpush.bf16.msra.mxu0 %v5080
    %5120 = vmatmul.bf16.gmra.mxu0 %v5024
    %v5121 = vpop.f32.mrf.mxu0
    %v5122 = vadd.f32 %v5030, %v5121
    %v5123 = vpop.f32.mrf.mxu0
    %v5124 = vadd.f32 %v5030, %v5123
    %5125 = vdwg.mxu0
    %5126 = vmatpush.bf16.msra.mxu0 %v5095
    %5127 = vmatpush.bf16.msra.mxu0 %v5093
    %5128 = vmatpush.bf16.msra.mxu0 %v5091
    %5129 = vmatpush.bf16.msra.mxu0 %v5089
    %5130 = vmatpush.bf16.msra.mxu0 %v5087
    %5131 = vmatpush.bf16.msra.mxu0 %v5085
    %5132 = vmatpush.bf16.msra.mxu0 %v5083
    %5133 = vmatpush.bf16.msra.mxu0 %v5081
    %5134 = vmatmul.bf16.gmra.mxu0 %v5024
    %v5135 = vpop.f32.mrf.mxu0
    %v5136 = vadd.f32 %v5031, %v5135
    %v5137 = vpop.f32.mrf.mxu0
    %v5138 = vadd.f32 %v5031, %v5137
    %5139 = vdwg.mxu0
    %v5140 = vsel %vm1179, %v5124, 0.0
    %v5141 = vadd.f32 %v5122, %v5140
    %v5142 = vrot.slane %v5141, 4
    %v5143 = vadd.f32 %v5141, %v5142
    %v5144 = vrot.slane %v5143, 2
    %v5145 = vadd.f32 %v5143, %v5144
    %v5146 = vrot.slane %v5145, 1
    %v5147 = vadd.f32 %v5145, %v5146
    %v5148 = vsel %vm1179, %v5138, 0.0
    %v5149 = vadd.f32 %v5136, %v5148
    %v5150 = vrot.slane %v5149, 4
    %v5151 = vadd.f32 %v5149, %v5150
    %v5152 = vrot.slane %v5151, 2
    %v5153 = vadd.f32 %v5151, %v5152
    %v5154 = vrot.slane %v5153, 1
    %v5155 = vadd.f32 %v5153, %v5154
    %v5156 = vmul.f32 %v5147, %v1250
    %v5157 = vmul.f32 %v5155, %v1250
    %v5158 = vperm.slane %v5023, 3
    %v5159 = vperm.slane %v5023, 7
    %v5162 = vmul.f32 %v5156, %v5158
    %v5163 = vmul.f32 %v5157, %v5159
    %v5164 = vperm.slane %v5162, 0
    %v5165 = vperm.slane %v5163, 0
    %v5166 = vsub.f32 %v5122, %v5164
    %v5167 = vsub.f32 %v5136, %v5165
    %v5168 = vsub.f32 %v5124, %v5164
    %v5169 = vsub.f32 %v5138, %v5165
    %v5170 = vmul.f32 %v5166, %v5166
    %v5171 = vmul.f32 %v5167, %v5167
    %v5172 = vmul.f32 %v5168, %v5168
    %v5173 = vmul.f32 %v5169, %v5169
    %v5174 = vsel %vm1179, %v5172, 0.0
    %v5175 = vadd.f32 %v5170, %v5174
    %v5176 = vrot.slane %v5175, 4
    %v5177 = vadd.f32 %v5175, %v5176
    %v5178 = vrot.slane %v5177, 2
    %v5179 = vadd.f32 %v5177, %v5178
    %v5180 = vrot.slane %v5179, 1
    %v5181 = vadd.f32 %v5179, %v5180
    %v5182 = vsel %vm1179, %v5173, 0.0
    %v5183 = vadd.f32 %v5171, %v5182
    %v5184 = vrot.slane %v5183, 4
    %v5185 = vadd.f32 %v5183, %v5184
    %v5186 = vrot.slane %v5185, 2
    %v5187 = vadd.f32 %v5185, %v5186
    %v5188 = vrot.slane %v5187, 1
    %v5189 = vadd.f32 %v5187, %v5188
    %v5190 = vmul.f32 %v5181, %v1250
    %v5191 = vmul.f32 %v5189, %v1250
    %v5192 = vperm.slane %v5023, 1
    %v5193 = vperm.slane %v5023, 5
    %v5196 = vperm.slane %v5192, 1
    %v5197 = vperm.slane %v5193, 1
    %v5198 = vmul.f32 %v5196, %v5166
    %v5199 = vmul.f32 %v5197, %v5167
    %v5200 = vmul.f32 %v5196, %v5168
    %v5201 = vmul.f32 %v5197, %v5169
    %v5202 = vadd.f32 %v5190, 1e-05
    %v5203 = vadd.f32 %v5191, 1e-05
    %v5204 = vrsqrt.pop %v5202
    %v5205 = vmul.f32 %v5204, %v5202
    %v5206 = vmul.f32 %v5205, %v5204
    %v5207 = vmul.f32 0.5, %v5206
    %v5208 = vsub.f32 1.5, %v5207
    %v5209 = vmul.f32 %v5204, %v5208
    %vm5210 = vweird.f32 %v5202
    %vm5211 = vweird.f32 %v5204
    %vm5212 = vmor %vm5210, %vm5211
    %v5213 = vsel %vm5212, %v5204, %v5209
    %v5214 = vrsqrt.pop %v5203
    %v5215 = vmul.f32 %v5214, %v5203
    %v5216 = vmul.f32 %v5215, %v5214
    %v5217 = vmul.f32 0.5, %v5216
    %v5218 = vsub.f32 1.5, %v5217
    %v5219 = vmul.f32 %v5214, %v5218
    %vm5220 = vweird.f32 %v5203
    %vm5221 = vweird.f32 %v5214
    %vm5222 = vmor %vm5220, %vm5221
    %v5223 = vsel %vm5222, %v5214, %v5219
    %v5224 = vmul.f32 %v5198, %v5213
    %v5225 = vmul.f32 %v5199, %v5223
    %v5226 = vmul.f32 %v5200, %v5213
    %v5227 = vmul.f32 %v5201, %v5223
    %v5228 = vperm.slane %v5023, 2
    %v5229 = vperm.slane %v5023, 6
    %v5232 = vperm.slane %v5228, 2
    %v5233 = vperm.slane %v5229, 2
    %v5234 = vadd.f32 %v5224, %v5232
    %v5235 = vadd.f32 %v5225, %v5233
    %v5236 = vadd.f32 %v5226, %v5232
    %v5237 = vadd.f32 %v5227, %v5233
    %v5238 = vmul.f32 %v5234, 0.5
    %v5239 = vmul.f32 %v5235, 0.5
    %v5240 = vmul.f32 %v5236, 0.5
    %v5241 = vmul.f32 %v5237, 0.5
    %v5242 = vmul.f32 %v5234, 0.044715
    %v5243 = vmul.f32 %v5235, 0.044715
    %v5244 = vmul.f32 %v5236, 0.044715
    %v5245 = vmul.f32 %v5237, 0.044715
    %v5246 = vmul.f32 %v5242, %v5234
    %v5247 = vmul.f32 %v5243, %v5235
    %v5248 = vmul.f32 %v5244, %v5236
    %v5249 = vmul.f32 %v5245, %v5237
    %v5250 = vmul.f32 %v5246, %v5234
    %v5251 = vmul.f32 %v5247, %v5235
    %v5252 = vmul.f32 %v5248, %v5236
    %v5253 = vmul.f32 %v5249, %v5237
    %v5254 = vadd.f32 %v5234, %v5250
    %v5255 = vadd.f32 %v5235, %v5251
    %v5256 = vadd.f32 %v5236, %v5252
    %v5257 = vadd.f32 %v5237, %v5253
    %v5258 = vmul.f32 %v5254, 0.7978846
    %v5259 = vmul.f32 %v5255, 0.7978846
    %v5260 = vmul.f32 %v5256, 0.7978846
    %v5261 = vmul.f32 %v5257, 0.7978846
    %v5262 = vtanh.pop %v5258
    %v5263 = vtanh.pop %v5259
    %v5264 = vtanh.pop %v5260
    %v5265 = vtanh.pop %v5261
    %v5266 = vadd.f32 %v5262, 1.0
    %v5267 = vadd.f32 %v5263, 1.0
    %v5268 = vadd.f32 %v5264, 1.0
    %v5269 = vadd.f32 %v5265, 1.0
    %v5270 = vmul.f32 %v5238, %v5266
    %v5271 = vmul.f32 %v5239, %v5267
    %v5272 = vmul.f32 %v5240, %v5268
    %v5273 = vmul.f32 %v5241, %v5269
    %v5274 = vld [vmem:[#allocation26] sm:$0xf]
    %v5275 = vld [vmem:[#allocation26 + $0x4] sm:$0xf]
    %v5276 = vld [vmem:[#allocation26 + $0x8] sm:$0xf]
    %v5277 = vld [vmem:[#allocation26 + $0xc] sm:$0xf]
    %v5278 = vld [vmem:[#allocation26 + $0x10] sm:$0xf]
    %v5279 = vld [vmem:[#allocation26 + $0x14] sm:$0xf]
    %v5280 = vld [vmem:[#allocation26 + $0x18] sm:$0xf]
    %v5281 = vld [vmem:[#allocation26 + $0x1c] sm:$0xf]
    %v5282 = vld [vmem:[#allocation26 + $0x20] sm:$0xf]
    %v5283 = vld [vmem:[#allocation26 + $0x24] sm:$0xf]
    %v5284 = vld [vmem:[#allocation26 + $0x28] sm:$0xf]
    %v5285 = vld [vmem:[#allocation26 + $0x2c] sm:$0xf]
    %v5286 = vld [vmem:[#allocation26 + $0x30] sm:$0xf]
    %v5287 = vld [vmem:[#allocation26 + $0x34] sm:$0xf]
    %v5288 = vld [vmem:[#allocation26 + $0x38] sm:$0xf]
    %v5289 = vld [vmem:[#allocation26 + $0x3c] sm:$0xf]
    %v5290 = vld [vmem:[#allocation26 + $0x40] sm:$0xf]
    %v5291 = vld [vmem:[#allocation26 + $0x44] sm:$0xf]
    %v5292 = vld [vmem:[#allocation26 + $0x48] sm:$0xf]
    %v5293 = vld [vmem:[#allocation26 + $0x4c] sm:$0xf]
    %v5294 = vld [vmem:[#allocation26 + $0x50] sm:$0xf]
    %v5295 = vld [vmem:[#allocation26 + $0x54] sm:$0xf]
    %v5296 = vld [vmem:[#allocation26 + $0x58] sm:$0xf]
    %v5297 = vld [vmem:[#allocation26 + $0x5c] sm:$0xf]
    %v5298 = vld [vmem:[#allocation26 + $0x60] sm:$0xf]
    %v5299 = vld [vmem:[#allocation26 + $0x64] sm:$0xf]
    %v5300 = vld [vmem:[#allocation26 + $0x68] sm:$0xf]
    %v5301 = vld [vmem:[#allocation26 + $0x6c] sm:$0xf]
    %v5302 = vld [vmem:[#allocation26 + $0x70] sm:$0xf]
    %v5303 = vld [vmem:[#allocation26 + $0x74] sm:$0xf]
    %v5304 = vld [vmem:[#allocation26 + $0x78] sm:$0xf]
    %v5305 = vld [vmem:[#allocation26 + $0x7c] sm:$0xf]
    %v5306 = vld [vmem:[%s23] sm:$0xf]
    %v5307 = vpack.c.bf16 %v5272, %v5270
    %v5308 = vpack.c.bf16 %v5273, %v5271
    %v5309 = vperm.slane %v5306, 0
    %v5342 = vunpack.c.l.b16 %v5274
    %v5343 = vunpack.c.l.b16 %v5275
    %v5344 = vunpack.c.l.b16 %v5276
    %v5345 = vunpack.c.l.b16 %v5277
    %v5346 = vunpack.c.l.b16 %v5278
    %v5347 = vunpack.c.l.b16 %v5279
    %v5348 = vunpack.c.l.b16 %v5280
    %v5349 = vunpack.c.l.b16 %v5281
    %v5350 = vunpack.c.l.b16 %v5282
    %v5351 = vunpack.c.l.b16 %v5283
    %v5352 = vunpack.c.l.b16 %v5284
    %v5353 = vunpack.c.l.b16 %v5285
    %v5354 = vunpack.c.l.b16 %v5286
    %v5355 = vunpack.c.l.b16 %v5287
    %v5356 = vunpack.c.l.b16 %v5288
    %v5357 = vunpack.c.l.b16 %v5289
    %v5358 = vunpack.c.l.b16 %v5290
    %v5359 = vunpack.c.l.b16 %v5291
    %v5360 = vunpack.c.l.b16 %v5292
    %v5361 = vunpack.c.l.b16 %v5293
    %v5362 = vunpack.c.l.b16 %v5294
    %v5363 = vunpack.c.l.b16 %v5295
    %v5364 = vunpack.c.l.b16 %v5296
    %v5365 = vunpack.c.l.b16 %v5297
    %v5366 = vunpack.c.l.b16 %v5298
    %v5367 = vunpack.c.l.b16 %v5299
    %v5368 = vunpack.c.l.b16 %v5300
    %v5369 = vunpack.c.l.b16 %v5301
    %v5370 = vunpack.c.l.b16 %v5302
    %v5371 = vunpack.c.l.b16 %v5303
    %v5372 = vunpack.c.l.b16 %v5304
    %v5373 = vunpack.c.l.b16 %v5305
    %v5374 = vpack.c.b16 %v5343, %v5342
    %v5375 = vpack.c.b16 %v5345, %v5344
    %v5376 = vpack.c.b16 %v5347, %v5346
    %v5377 = vpack.c.b16 %v5349, %v5348
    %v5378 = vpack.c.b16 %v5351, %v5350
    %v5379 = vpack.c.b16 %v5353, %v5352
    %v5380 = vpack.c.b16 %v5355, %v5354
    %v5381 = vpack.c.b16 %v5357, %v5356
    %v5382 = vpack.c.b16 %v5359, %v5358
    %v5383 = vpack.c.b16 %v5361, %v5360
    %v5384 = vpack.c.b16 %v5363, %v5362
    %v5385 = vpack.c.b16 %v5365, %v5364
    %v5386 = vpack.c.b16 %v5367, %v5366
    %v5387 = vpack.c.b16 %v5369, %v5368
    %v5388 = vpack.c.b16 %v5371, %v5370
    %v5389 = vpack.c.b16 %v5373, %v5372
    %5406 = vmatpush.bf16.msra.mxu0 %v5381
    %5407 = vmatpush.bf16.msra.mxu0 %v5380
    %5408 = vmatpush.bf16.msra.mxu0 %v5379
    %5409 = vmatpush.bf16.msra.mxu0 %v5378
    %5410 = vmatpush.bf16.msra.mxu0 %v5377
    %5411 = vmatpush.bf16.msra.mxu0 %v5376
    %5412 = vmatpush.bf16.msra.mxu0 %v5375
    %5413 = vmatpush.bf16.msra.mxu0 %v5374
    %5414 = vmatmul.bf16.gmra.mxu0 %v5307
    %v5415 = vpop.f32.mrf.mxu0
    %v5416 = vadd.f32 %v5309, %v5415
    %v5417 = vpop.f32.mrf.mxu0
    %v5418 = vadd.f32 %v5309, %v5417
    %5419 = vdwg.mxu0
    %5420 = vmatpush.bf16.msra.mxu0 %v5389
    %5421 = vmatpush.bf16.msra.mxu0 %v5388
    %5422 = vmatpush.bf16.msra.mxu0 %v5387
    %5423 = vmatpush.bf16.msra.mxu0 %v5386
    %5424 = vmatpush.bf16.msra.mxu0 %v5385
    %5425 = vmatpush.bf16.msra.mxu0 %v5384
    %5426 = vmatpush.bf16.msra.mxu0 %v5383
    %5427 = vmatpush.bf16.msra.mxu0 %v5382
    %5428 = vmatmul.bf16.gmra.mxu0 %v5308
    %v5429 = vpop.f32.mrf.mxu0
    %v5430 = vadd.f32 %v5416, %v5429
    %v5431 = vpop.f32.mrf.mxu0
    %v5432 = vadd.f32 %v5418, %v5431
    %5433 = vdwg.mxu0
    %v5434 = vmul.f32 %v5430, 0.5
    %v5435 = vmul.f32 %v5432, 0.5
    %v5436 = vmul.f32 %v5430, 0.044715
    %v5437 = vmul.f32 %v5432, 0.044715
    %v5438 = vmul.f32 %v5436, %v5430
    %v5439 = vmul.f32 %v5437, %v5432
    %v5440 = vmul.f32 %v5438, %v5430
    %v5441 = vmul.f32 %v5439, %v5432
    %v5442 = vadd.f32 %v5430, %v5440
    %v5443 = vadd.f32 %v5432, %v5441
    %v5444 = vmul.f32 %v5442, 0.7978846
    %v5445 = vmul.f32 %v5443, 0.7978846
    %v5446 = vtanh.pop %v5444
    %v5447 = vtanh.pop %v5445
    %v5448 = vadd.f32 %v5446, 1.0
    %v5449 = vadd.f32 %v5447, 1.0
    %v5450 = vmul.f32 %v5434, %v5448
    %v5451 = vmul.f32 %v5435, %v5449
    %v5452 = vpack.c.bf16 %v5451, %v5450
    %v5454 = vsel %vm331, %v5452, 0
    %5456 = vmatpush.bf16.msra.mxu0 0
    %5457 = vmatpush.bf16.msra.mxu0 0
    %5458 = vmatpush.bf16.msra.mxu0 0
    %5459 = vmatpush.bf16.msra.mxu0 0
    %5460 = vmatpush.bf16.msra.mxu0 0
    %5461 = vmatpush.bf16.msra.mxu0 0
    %5462 = vmatpush.bf16.msra.mxu0 0
    %5463 = vmatpush.bf16.msra.mxu0 %v5454
    %5464 = vmatmul.bf16.gmra.mxu0 %v329
    %v5465 = vpop.f32.mrf.mxu0
    %v5466 = vadd.f32 0.0, %v5465
    %v5467 = vpop.f32.mrf.mxu0
    %5468 = vdwg.mxu0
    %v5469 = vmul.f32 %v5466, 0.5
    %v5470 = vmul.f32 %v5466, 0.044715
    %v5471 = vmul.f32 %v5470, %v5466
    %v5472 = vmul.f32 %v5471, %v5466
    %v5473 = vadd.f32 %v5466, %v5472
    %v5474 = vmul.f32 %v5473, 0.7978846
    %v5475 = vtanh.pop %v5474
    %v5476 = vadd.f32 %v5475, 1.0
    %v5477 = vmul.f32 %v5469, %v5476
    %v5478 = vadd.f32 %v4504, %v5477
    %5479 = vst [vmem:[#allocation28] sm:$0x3] %v5478
    // Predicated region
    $region162: #{tpu_custom_call.1} parent=1 // pred_check
      _
    $region163: #{tpu_custom_call.1} parent=1 // pred_check_branch
      %5481 = sbr.rel (0) target = $region165
    $region164: #{tpu_custom_call.1} parent=1 // pred_region
      %5483 = vsyncadd [#allocation4], 0
      %s5485 = sshll.u32 [#allocation28], 4
      %s5486 = int_to_ptr.vmem [resolvable:$true] %s5485
      %s5487 = sshll.u32 %s24, 4
      %s5488 = int_to_ptr.hbm [resolvable:$true] %s5487
      %5490 = dma.vmem_to_hbm [thread:$0]  %s5486, 32, %s5488, [#allocation4]
    $region165: #{tpu_custom_call.1} parent=1 // pred_fallthru
      _
    // Predicated region
    $region166: #{tpu_custom_call.1} parent=1 // pred_check
      _
    $region167: #{tpu_custom_call.1} parent=1 // pred_check_branch
      %5492 = sbr.rel (0) target = $region169
    $region168: #{tpu_custom_call.1} parent=1 // pred_region
      %5494 = vsyncadd [#allocation30], 0
      %s5495 = sshll.u32 [#allocation29], 4
      %s5496 = int_to_ptr.vmem [resolvable:$true] %s5495
      %s5497 = sshll.u32 %s25, 4
      %s5498 = int_to_ptr.hbm [resolvable:$true] %s5497
      %5503 = dma.vmem_to_hbm [thread:$0]  %s5496, 256, %s5498, [#allocation30], 128, 128, 8
    $region169: #{tpu_custom_call.1} parent=1 // pred_fallthru
      _
    // Predicated region
    $region170: #{tpu_custom_call.1} parent=1 // pred_check
      _
    $region171: #{tpu_custom_call.1} parent=1 // pred_check_branch
      %5505 = sbr.rel (0) target = $region173
    $region172: #{tpu_custom_call.1} parent=1 // pred_region
      %5507 = dma.done [#allocation4], 32
    $region173: #{tpu_custom_call.1} parent=1 // pred_fallthru
      _
    // Predicated region
    $region174: #{tpu_custom_call.1} parent=1 // pred_check
      _
    $region175: #{tpu_custom_call.1} parent=1 // pred_check_branch
      %5509 = sbr.rel (0) target = $region177
    $region176: #{tpu_custom_call.1} parent=1 // pred_region
      %5511 = dma.done [#allocation30], 256
    $region177: #{tpu_custom_call.1} parent=1 // pred_fallthru
      _
    %5512 = vsyncpa [#allocation3], 1
    %5513 = vsyncpa [#allocation6], 1
    %5514 = vsyncpa [#allocation9], 1
    %5515 = vsyncpa [#allocation12], 1
    %5516 = vsyncpa [#allocation15], 1
    %5517 = vsyncpa [#allocation18], 1
    %5518 = vsyncpa [#allocation21], 1
    %5519 = vsyncpa [#allocation24], 1
    %5520 = vsyncpa [#allocation27], 1
    %5521 = vsyncpa [#allocation4], 1
    %5522 = vsyncpa [#allocation30], 1

</llo_original>
